<compile_context>
chip_gen: v7x
topology: tpu7x:2x2x1
jax: 0.10.0
libtpu: 0.0.40
codegen_flags: <defaults>
</compile_context>

<pallas_src>
import functools

import jax
import jax.numpy as jnp
import numpy as np
from jax.experimental import pallas as pl
from jax.experimental.pallas import tpu as pltpu

EPS = 1e-5
F32 = jnp.float32
BF16 = jnp.bfloat16


# --------------------------------------------------------------------------- #
# Pallas kernel: full Bottle2neck forward for one sample per grid step.
# --------------------------------------------------------------------------- #
def _bottle2neck_kernel(x_ref,
                        w1_ref, b1_ref, sc1_ref, sh1_ref,
                        wg_ref, bg_ref, scg_ref, shg_ref,
                        wfc_ref, bfc_ref, wfcs_ref, bfcs_ref,
                        w3_ref, b3_ref, sc3_ref, sh3_ref,
                        wse1_ref, bse1_ref, scse_ref, shse_ref,
                        wse2_ref, bse2_ref,
                        out_ref, o_buf, *, nums, width, kmax, dilation):
    T = x_ref.shape[2]
    x = x_ref[0]                                        # [Cin, T] f32
    kpad = wg_ref.shape[2]                              # padded im2col K (mult of 16)
    pad_rows = kpad - kmax * width

    def mm(a_bf16, b_bf16):                             # MXU dot, f32 accumulation
        return jnp.dot(a_bf16, b_bf16, preferred_element_type=jnp.float32)

    # ---- conv1 (1x1) -> ReLU -> BN1 (folded, eval) --------------------------
    h = mm(w1_ref[...], x.astype(BF16))                 # [width*scale, T]
    h = jnp.maximum(h + b1_ref[...], 0.0) * sc1_ref[...] + sh1_ref[...]

    # loop-invariant helpers (hoisted: lane-index iota for halo masks, K-pad block)
    t_iota = jax.lax.broadcasted_iota(jnp.int32, (width, T), 1)
    zero_pad = jnp.zeros((pad_rows, T), F32) if pad_rows > 0 else None

    sp = None
    for i in range(nums):                               # sequential Res2Net groups
        spx_i = h[i * width:(i + 1) * width, :]         # [w, T] f32
        sp = spx_i if i == 0 else sp + spx_i

        # ---- time-shifted conv taps via XLU rolls + VPU halo masks ----------
        # patches row-block j holds sp[:, t + (j - kmax//2)*dilation], zero halo.
        taps = []
        for j in range(kmax):
            off = (j - kmax // 2) * dilation
            if off == 0:
                taps.append(sp)
            else:
                shifted = pltpu.roll(sp, shift=(-off) % T, axis=1)
                if off > 0:
                    shifted = jnp.where(t_iota < T - off, shifted, 0.0)
                else:
                    shifted = jnp.where(t_iota >= -off, shifted, 0.0)
                taps.append(shifted)
        if zero_pad is not None:
            taps.append(zero_pad)
        patches = jnp.concatenate(taps, axis=0)          # [kpad, T] f32 (full tiles)

        # ---- fused SK branch convs (k=5 and k=7 together, one matmul) -------
        y = mm(wg_ref[i], patches.astype(BF16))          # [2w, T]
        f = jnp.maximum(y + bg_ref[i], 0.0) * scg_ref[i] + shg_ref[i]
        f1, f2 = f[:width], f[width:]                    # branch k=5 / k=7

        # ---- SK attention: pool -> fc -> relu -> per-branch fc -> softmax ---
        u = f1 + f2
        s = jnp.mean(u, axis=1, keepdims=True)           # [w, 1]
        sb = jnp.broadcast_to(s, (width, T))             # lane-dense replicated map
        z = jnp.maximum(mm(wfc_ref[i], sb.astype(BF16)) + bfc_ref[i], 0.0)   # [D, T]
        l = mm(wfcs_ref[i], z.astype(BF16)) + bfcs_ref[i]                    # [2w, T]
        l1, l2 = l[:width], l[width:]
        m = jnp.maximum(l1, l2)
        e1 = jnp.exp(l1 - m)
        e2 = jnp.exp(l2 - m)
        inv = pl.reciprocal(e1 + e2, approx=True)        # EUP, off the VALU chain
        sp = (e1 * inv) * f1 + (e2 * inv) * f2            # [w, T]
        o_buf[i * width:(i + 1) * width, :] = sp          # stage into VMEM scratch

    o_buf[nums * width:, :] = h[nums * width:, :]         # last (untouched) split

    # ---- conv3 (1x1) -> ReLU -> BN3 -----------------------------------------
    o = mm(w3_ref[...], o_buf[...].astype(BF16))
    o = jnp.maximum(o + b3_ref[...], 0.0) * sc3_ref[...] + sh3_ref[...]      # [planes, T]

    # ---- SE module -----------------------------------------------------------
    planes = o.shape[0]
    s = jnp.mean(o, axis=1, keepdims=True)
    sb = jnp.broadcast_to(s, (planes, T))
    h1 = jnp.maximum(mm(wse1_ref[...], sb.astype(BF16)) + bse1_ref[...], 0.0)
    h1 = h1 * scse_ref[...] + shse_ref[...]               # [bottleneck, T]
    g = mm(wse2_ref[...], h1.astype(BF16)) + bse2_ref[...]
    g = pl.reciprocal(1.0 + jnp.exp(-g), approx=True)     # sigmoid gate, [planes, T]

    # ---- gate + residual (lane-dense [planes, 128] store) --------------------
    out_ref[0] = (o * g + x).astype(out_ref.dtype)


# --------------------------------------------------------------------------- #
# Wrapper
# --------------------------------------------------------------------------- #
def _full_spec(shape):
    nd = len(shape)
    return pl.BlockSpec(shape, lambda b, _nd=nd: (0,) * _nd)


def _cost_estimate(B, C, T, kp):
    mat_keys = ("w1", "wg", "wfc", "wfcs", "w3", "wse1", "wse2")
    flops = int(2 * T * sum(int(np.prod(kp[k].shape)) for k in mat_keys)) * B
    nums, two_w, _ = kp["wg"].shape
    planes = kp["wse2"].shape[0]
    transcendentals = int(B * T * (nums * two_w + planes))
    bytes_accessed = int(2 * B * C * T * 4 + sum(
        int(np.prod(a.shape)) * jnp.dtype(a.dtype).itemsize for a in kp.values()))
    return pl.CostEstimate(flops=flops, transcendentals=transcendentals,
                           bytes_accessed=bytes_accessed)


def bottle2neck_forward(x, kp, *, nums, width, kmax, dilation):
    """x: [B, C, T] float32 (native PyTorch layout). Returns [B, C, T]."""
    B, C, T = x.shape
    in_arrays = (
        x,
        kp["w1"], kp["b1"], kp["sc1"], kp["sh1"],
        kp["wg"], kp["bg"], kp["scg"], kp["shg"],
        kp["wfc"], kp["bfc"], kp["wfcs"], kp["bfcs"],
        kp["w3"], kp["b3"], kp["sc3"], kp["sh3"],
        kp["wse1"], kp["bse1"], kp["scse"], kp["shse"],
        kp["wse2"], kp["bse2"],
    )
    in_specs = [pl.BlockSpec((1, C, T), lambda b: (b, 0, 0))]
    in_specs += [_full_spec(a.shape) for a in in_arrays[1:]]

    kernel = functools.partial(_bottle2neck_kernel, nums=nums, width=width,
                               kmax=kmax, dilation=dilation)
    return pl.pallas_call(
        kernel,
        out_shape=jax.ShapeDtypeStruct((B, C, T), x.dtype),
        grid=(B,),
        in_specs=in_specs,
        out_specs=pl.BlockSpec((1, C, T), lambda b: (b, 0, 0)),
        scratch_shapes=[pltpu.VMEM((C, T), F32)],
        compiler_params=pltpu.CompilerParams(dimension_semantics=("parallel",)),
        cost_estimate=_cost_estimate(B, C, T, kp),
    )(*in_arrays)


# --------------------------------------------------------------------------- #
# Parameters (torch-like) and one-time pre-layout for the kernel
# --------------------------------------------------------------------------- #
class _Keys:
    def __init__(self, key):
        self._key = key

    def __call__(self):
        self._key, sub = jax.random.split(self._key)
        return sub


def make_torch_params(key, *, inplanes, planes, scale, kernel_sizes, bottleneck):
    width = planes // scale
    ws = width * scale
    d_attn = max(16, width // 4)                    # SKAttentionModule: reduction=4, L=16
    kg = _Keys(key)
    nrm = lambda shape, s=0.1: (s * jax.random.normal(kg(), shape)).astype(F32)

    def bn(c):
        return dict(
            gamma=(1.0 + 0.1 * jax.random.normal(kg(), (c,))).astype(F32),
            beta=nrm((c,)), mean=nrm((c,)),
            var=jax.random.uniform(kg(), (c,), minval=0.5, maxval=1.5).astype(F32))

    groups = []
    for _ in range(scale - 1):
        branches = [dict(w=nrm((width, width, k)), b=nrm((width,)), bn=bn(width))
                    for k in kernel_sizes]
        groups.append(dict(
            branches=branches,
            fc_w=nrm((d_attn, width)), fc_b=nrm((d_attn,)),
            fcs_w=[nrm((width, d_attn)) for _ in kernel_sizes],
            fcs_b=[nrm((width,)) for _ in kernel_sizes]))

    return dict(
        conv1_w=nrm((ws, inplanes)), conv1_b=nrm((ws,)), bn1=bn(ws),
        groups=groups,
        conv3_w=nrm((planes, ws)), conv3_b=nrm((planes,)), bn3=bn(planes),
        se_w1=nrm((bottleneck, planes)), se_b1=nrm((bottleneck,)), se_bn=bn(bottleneck),
        se_w2=nrm((planes, bottleneck)), se_b2=nrm((planes,)),
    )


def pack_kernel_params(p, *, kernel_sizes):
    """Pre-lay-out + fuse weights (done once; no per-grid-step work in-kernel)."""
    kmax = max(kernel_sizes)
    width = p["groups"][0]["branches"][0]["w"].shape[0]
    kcols = kmax * width
    kpad = ((kcols + 15) // 16) * 16                # pad K to full bf16 packed tiles
    col = lambda v: jnp.asarray(v, F32).reshape(-1, 1)

    def fold(bn):
        sc = bn["gamma"] / jnp.sqrt(bn["var"] + EPS)
        return sc, bn["beta"] - bn["mean"] * sc

    def branch_mat(wk):                      # [w, w, k] -> [w, kmax*w] (zero-padded taps)
        w_out, w_in, k = wk.shape
        off = (kmax - k) // 2
        wp = jnp.zeros((w_out, w_in, kmax), F32).at[:, :, off:off + k].set(wk)
        return jnp.transpose(wp, (0, 2, 1)).reshape(w_out, kmax * w_in)

    wg, bg, scg, shg, wfc, bfc, wfcs, bfcs = [], [], [], [], [], [], [], []
    for g in p["groups"]:
        wg_i = jnp.concatenate([branch_mat(br["w"]) for br in g["branches"]], axis=0)
        wg_i = jnp.pad(wg_i, ((0, 0), (0, kpad - kcols)))     # zero K-padding columns
        wg.append(wg_i)
        bg.append(jnp.concatenate([br["b"] for br in g["branches"]]))
        folded = [fold(br["bn"]) for br in g["branches"]]
        scg.append(jnp.concatenate([f[0] for f in folded]))
        shg.append(jnp.concatenate([f[1] for f in folded]))
        wfc.append(g["fc_w"])
        bfc.append(g["fc_b"])
        wfcs.append(jnp.concatenate(g["fcs_w"], axis=0))
        bfcs.append(jnp.concatenate(g["fcs_b"]))

    sc1, sh1 = fold(p["bn1"])
    sc3, sh3 = fold(p["bn3"])
    scse, shse = fold(p["se_bn"])
    stack_col = lambda xs: jnp.stack(xs, 0)[..., None].astype(F32)   # [nums, C, 1]

    return dict(
        w1=p["conv1_w"].astype(BF16), b1=col(p["conv1_b"]), sc1=col(sc1), sh1=col(sh1),
        wg=jnp.stack(wg, 0).astype(BF16), bg=stack_col(bg),
        scg=stack_col(scg), shg=stack_col(shg),
        wfc=jnp.stack(wfc, 0).astype(BF16), bfc=stack_col(bfc),
        wfcs=jnp.stack(wfcs, 0).astype(BF16), bfcs=stack_col(bfcs),
        w3=p["conv3_w"].astype(BF16), b3=col(p["conv3_b"]), sc3=col(sc3), sh3=col(sh3),
        wse1=p["se_w1"].astype(BF16), bse1=col(p["se_b1"]),
        scse=col(scse), shse=col(shse),
        wse2=p["se_w2"].astype(BF16), bse2=col(p["se_b2"]),
    )


# --------------------------------------------------------------------------- #
# Pure-JAX reference of the PyTorch forward (BN in eval mode, bf16 matmul inputs
# with f32 accumulation, matching the kernel's numerics).
# --------------------------------------------------------------------------- #
def reference(x, p, *, scale, kernel_sizes, dilation):
    def fold(bn):
        sc = bn["gamma"] / jnp.sqrt(bn["var"] + EPS)
        return sc, bn["beta"] - bn["mean"] * sc

    def bn3d(y, bn):
        sc, sh = fold(bn)
        return y * sc[None, :, None] + sh[None, :, None]

    def pconv(y, w, b):                      # 1x1 conv: w [Co, Ci]
        o = jnp.einsum("oi,bit->bot", w.astype(BF16), y.astype(BF16),
                       preferred_element_type=F32)
        return o + b[None, :, None]

    def kconv(y, w, b):                      # w [Co, Ci, k]
        k = w.shape[-1]
        pad = (k // 2) * dilation
        o = jax.lax.conv_general_dilated(
            y.astype(BF16), w.astype(BF16), window_strides=(1,),
            padding=[(pad, pad)], rhs_dilation=(dilation,),
            dimension_numbers=("NCH", "OIH", "NCH"),
            preferred_element_type=F32)
        return o + b[None, :, None]

    def lin(s, w, b):                        # s [B, in], w [out, in]
        return jnp.einsum("bi,oi->bo", s.astype(BF16), w.astype(BF16),
                          preferred_element_type=F32) + b[None, :]

    width = p["conv3_w"].shape[1] // scale
    h = bn3d(jnp.maximum(pconv(x, p["conv1_w"], p["conv1_b"]), 0.0), p["bn1"])
    spx = [h[:, i * width:(i + 1) * width, :] for i in range(scale)]

    outs = []
    sp = None
    for i, g in enumerate(p["groups"]):
        sp = spx[i] if i == 0 else sp + spx[i]
        feats = [bn3d(jnp.maximum(kconv(sp, br["w"], br["b"]), 0.0), br["bn"])
                 for br in g["branches"]]
        u = sum(feats[1:], feats[0])
        s = jnp.mean(u, axis=2)                                       # [B, w]
        z = jnp.maximum(lin(s, g["fc_w"], g["fc_b"]), 0.0)            # [B, D]
        logits = jnp.stack([lin(z, g["fcs_w"][k], g["fcs_b"][k])
                            for k in range(len(feats))], axis=0)      # [K, B, w]
        a = jax.nn.softmax(logits, axis=0)
        sp = sum(a[k][:, :, None] * feats[k] for k in range(len(feats)))
        outs.append(sp)
    outs.append(spx[scale - 1])
    o = jnp.concatenate(outs, axis=1)
    o = bn3d(jnp.maximum(pconv(o, p["conv3_w"], p["conv3_b"]), 0.0), p["bn3"])

    s = jnp.mean(o, axis=2)                                           # [B, planes]
    h1 = jnp.maximum(lin(s, p["se_w1"], p["se_b1"]), 0.0)
    scb, shb = fold(p["se_bn"])
    h1 = h1 * scb[None, :] + shb[None, :]
    gate = 1.0 / (1.0 + jnp.exp(-lin(h1, p["se_w2"], p["se_b2"])))
    return o * gate[:, :, None] + x


# --------------------------------------------------------------------------- #
if __name__ == "__main__":
    # Small shapes consistent with the module: scale=8 -> width=8, D=16,
    # kernel_sizes=[5,7], SE bottleneck=128 (module default), T=128 (lane-dense).
    B, C, T = 2, 64, 128
    SCALE, KERNEL_SIZES, DILATION = 8, (5, 7), 1
    BOTTLENECK = 128
    WIDTH = C // SCALE
    NUMS = SCALE - 1
    KMAX = max(KERNEL_SIZES)

    key = jax.random.PRNGKey(0)
    kx, kp = jax.random.split(key)
    x = jax.random.normal(kx, (B, C, T), F32)          # [B, C, T] (PyTorch layout)

    tparams = make_torch_params(kp, inplanes=C, planes=C, scale=SCALE,
                                kernel_sizes=KERNEL_SIZES, bottleneck=BOTTLENECK)
    kparams = pack_kernel_params(tparams, kernel_sizes=KERNEL_SIZES)

    out = jax.block_until_ready(
        bottle2neck_forward(x, kparams, nums=NUMS, width=WIDTH, kmax=KMAX,
                            dilation=DILATION))
    ref = jax.block_until_ready(
        reference(x, tparams, scale=SCALE, kernel_sizes=KERNEL_SIZES,
                  dilation=DILATION))

    np.testing.assert_allclose(np.asarray(out), np.asarray(ref), rtol=5e-3, atol=5e-3)
    assert out.shape == (B, C, T)
    print("KERNEL_OK")
</pallas_src>

<mosaic_0001>
module attributes {stable_mosaic.version = 11 : i64} {
  func.func @_bottle2neck_kernel(%arg0: i32, %arg1: memref<1x64x128xf32, #tpu.memory_space<vmem>>, %arg2: memref<64x64xbf16, #tpu.memory_space<vmem>>, %arg3: memref<64x1xf32, #tpu.memory_space<vmem>>, %arg4: memref<64x1xf32, #tpu.memory_space<vmem>>, %arg5: memref<64x1xf32, #tpu.memory_space<vmem>>, %arg6: memref<7x16x64xbf16, #tpu.memory_space<vmem>>, %arg7: memref<7x16x1xf32, #tpu.memory_space<vmem>>, %arg8: memref<7x16x1xf32, #tpu.memory_space<vmem>>, %arg9: memref<7x16x1xf32, #tpu.memory_space<vmem>>, %arg10: memref<7x16x8xbf16, #tpu.memory_space<vmem>>, %arg11: memref<7x16x1xf32, #tpu.memory_space<vmem>>, %arg12: memref<7x16x16xbf16, #tpu.memory_space<vmem>>, %arg13: memref<7x16x1xf32, #tpu.memory_space<vmem>>, %arg14: memref<64x64xbf16, #tpu.memory_space<vmem>>, %arg15: memref<64x1xf32, #tpu.memory_space<vmem>>, %arg16: memref<64x1xf32, #tpu.memory_space<vmem>>, %arg17: memref<64x1xf32, #tpu.memory_space<vmem>>, %arg18: memref<128x64xbf16, #tpu.memory_space<vmem>>, %arg19: memref<128x1xf32, #tpu.memory_space<vmem>>, %arg20: memref<128x1xf32, #tpu.memory_space<vmem>>, %arg21: memref<128x1xf32, #tpu.memory_space<vmem>>, %arg22: memref<64x128xbf16, #tpu.memory_space<vmem>>, %arg23: memref<64x1xf32, #tpu.memory_space<vmem>>, %arg24: memref<1x64x128xf32, #tpu.memory_space<vmem>>, %arg25: memref<64x128xf32, #tpu.memory_space<vmem>>) attributes {dimension_semantics = [#tpu.dimension_semantics<parallel>], iteration_bounds = array<i64: 2>, scalar_prefetch = 0 : i64, scratch_operands = 1 : i64, tpu.core_type = #tpu.core_type<tc>, window_params = [{transform_indices = @transform_0, window_bounds = array<i64: 1, 64, 128>}, {pipeline_mode = #tpu.pipeline_mode<synchronous>, transform_indices = @transform_1, window_bounds = array<i64: 64, 64>}, {pipeline_mode = #tpu.pipeline_mode<synchronous>, transform_indices = @transform_2, window_bounds = array<i64: 64, 1>}, {pipeline_mode = #tpu.pipeline_mode<synchronous>, transform_indices = @transform_3, window_bounds = array<i64: 64, 1>}, {pipeline_mode = #tpu.pipeline_mode<synchronous>, transform_indices = @transform_4, window_bounds = array<i64: 64, 1>}, {pipeline_mode = #tpu.pipeline_mode<synchronous>, transform_indices = @transform_5, window_bounds = array<i64: 7, 16, 64>}, {pipeline_mode = #tpu.pipeline_mode<synchronous>, transform_indices = @transform_6, window_bounds = array<i64: 7, 16, 1>}, {pipeline_mode = #tpu.pipeline_mode<synchronous>, transform_indices = @transform_7, window_bounds = array<i64: 7, 16, 1>}, {pipeline_mode = #tpu.pipeline_mode<synchronous>, transform_indices = @transform_8, window_bounds = array<i64: 7, 16, 1>}, {pipeline_mode = #tpu.pipeline_mode<synchronous>, transform_indices = @transform_9, window_bounds = array<i64: 7, 16, 8>}, {pipeline_mode = #tpu.pipeline_mode<synchronous>, transform_indices = @transform_10, window_bounds = array<i64: 7, 16, 1>}, {pipeline_mode = #tpu.pipeline_mode<synchronous>, transform_indices = @transform_11, window_bounds = array<i64: 7, 16, 16>}, {pipeline_mode = #tpu.pipeline_mode<synchronous>, transform_indices = @transform_12, window_bounds = array<i64: 7, 16, 1>}, {pipeline_mode = #tpu.pipeline_mode<synchronous>, transform_indices = @transform_13, window_bounds = array<i64: 64, 64>}, {pipeline_mode = #tpu.pipeline_mode<synchronous>, transform_indices = @transform_14, window_bounds = array<i64: 64, 1>}, {pipeline_mode = #tpu.pipeline_mode<synchronous>, transform_indices = @transform_15, window_bounds = array<i64: 64, 1>}, {pipeline_mode = #tpu.pipeline_mode<synchronous>, transform_indices = @transform_16, window_bounds = array<i64: 64, 1>}, {pipeline_mode = #tpu.pipeline_mode<synchronous>, transform_indices = @transform_17, window_bounds = array<i64: 128, 64>}, {pipeline_mode = #tpu.pipeline_mode<synchronous>, transform_indices = @transform_18, window_bounds = array<i64: 128, 1>}, {pipeline_mode = #tpu.pipeline_mode<synchronous>, transform_indices = @transform_19, window_bounds = array<i64: 128, 1>}, {pipeline_mode = #tpu.pipeline_mode<synchronous>, transform_indices = @transform_20, window_bounds = array<i64: 128, 1>}, {pipeline_mode = #tpu.pipeline_mode<synchronous>, transform_indices = @transform_21, window_bounds = array<i64: 64, 128>}, {pipeline_mode = #tpu.pipeline_mode<synchronous>, transform_indices = @transform_22, window_bounds = array<i64: 64, 1>}, {transform_indices = @transform_23, window_bounds = array<i64: 1, 64, 128>}]} {
    %c0 = arith.constant 0 : index
    %c0_0 = arith.constant 0 : index
    %c0_1 = arith.constant 0 : index
    %0 = vector.load %arg1[%c0, %c0_0, %c0_1] : memref<1x64x128xf32, #tpu.memory_space<vmem>>, vector<1x64x128xf32>
    %1 = vector.shape_cast %0 : vector<1x64x128xf32> to vector<64x128xf32>
    %c0_2 = arith.constant 0 : index
    %c0_3 = arith.constant 0 : index
    %2 = vector.load %arg2[%c0_2, %c0_3] : memref<64x64xbf16, #tpu.memory_space<vmem>>, vector<64x64xbf16>
    %3 = arith.truncf %1 : vector<64x128xf32> to vector<64x128xbf16>
    %cst = arith.constant dense<0.000000e+00> : vector<64x128xf32>
    %4 = tpu.matmul %2, %3, %cst {dimension_numbers = #tpu.dot_dimension_numbers<[1], [0], [0], [1], [0, 0, 1, 1], [], []>} : vector<64x64xbf16>, vector<64x128xbf16>, vector<64x128xf32> -> vector<64x128xf32>
    %c0_4 = arith.constant 0 : index
    %c0_5 = arith.constant 0 : index
    %5 = vector.load %arg3[%c0_4, %c0_5] : memref<64x1xf32, #tpu.memory_space<vmem>>, vector<64x1xf32>
    %6 = vector.broadcast %5 : vector<64x1xf32> to vector<64x128xf32>
    %7 = arith.addf %4, %6 : vector<64x128xf32>
    %cst_6 = arith.constant 0.000000e+00 : f32
    %8 = vector.broadcast %cst_6 : f32 to vector<64x128xf32>
    %9 = arith.maximumf %7, %8 : vector<64x128xf32>
    %c0_7 = arith.constant 0 : index
    %c0_8 = arith.constant 0 : index
    %10 = vector.load %arg4[%c0_7, %c0_8] : memref<64x1xf32, #tpu.memory_space<vmem>>, vector<64x1xf32>
    %11 = vector.broadcast %10 : vector<64x1xf32> to vector<64x128xf32>
    %12 = arith.mulf %9, %11 : vector<64x128xf32>
    %c0_9 = arith.constant 0 : index
    %c0_10 = arith.constant 0 : index
    %13 = vector.load %arg5[%c0_9, %c0_10] : memref<64x1xf32, #tpu.memory_space<vmem>>, vector<64x1xf32>
    %14 = vector.broadcast %13 : vector<64x1xf32> to vector<64x128xf32>
    %15 = arith.addf %12, %14 : vector<64x128xf32>
    %16 = tpu.iota {dimensions = array<i32: 1>} : vector<8x128xi32>
    %cst_11 = arith.constant 0.000000e+00 : f32
    %17 = vector.broadcast %cst_11 : f32 to vector<8x128xf32>
    %18 = vector.extract_strided_slice %15 {offsets = [0, 0], sizes = [8, 128], strides = [1, 1]} : vector<64x128xf32> to vector<8x128xf32>
    %c3_i32 = arith.constant 3 : i32
    %19 = tpu.dynamic_rotate %18 by %c3_i32 dim 1 : vector<8x128xf32>, i32 -> vector<8x128xf32>
    %c3_i32_12 = arith.constant 3 : i32
    %20 = vector.broadcast %c3_i32_12 : i32 to vector<8x128xi32>
    %21 = arith.cmpi sge, %16, %20 : vector<8x128xi32>
    %cst_13 = arith.constant 0.000000e+00 : f32
    %22 = vector.broadcast %cst_13 : f32 to vector<8x128xf32>
    %23 = arith.select %21, %19, %22 : vector<8x128xi1>, vector<8x128xf32>
    %c2_i32 = arith.constant 2 : i32
    %24 = tpu.dynamic_rotate %18 by %c2_i32 dim 1 : vector<8x128xf32>, i32 -> vector<8x128xf32>
    %c2_i32_14 = arith.constant 2 : i32
    %25 = vector.broadcast %c2_i32_14 : i32 to vector<8x128xi32>
    %26 = arith.cmpi sge, %16, %25 : vector<8x128xi32>
    %cst_15 = arith.constant 0.000000e+00 : f32
    %27 = vector.broadcast %cst_15 : f32 to vector<8x128xf32>
    %28 = arith.select %26, %24, %27 : vector<8x128xi1>, vector<8x128xf32>
    %c1_i32 = arith.constant 1 : i32
    %29 = tpu.dynamic_rotate %18 by %c1_i32 dim 1 : vector<8x128xf32>, i32 -> vector<8x128xf32>
    %c1_i32_16 = arith.constant 1 : i32
    %30 = vector.broadcast %c1_i32_16 : i32 to vector<8x128xi32>
    %31 = arith.cmpi sge, %16, %30 : vector<8x128xi32>
    %cst_17 = arith.constant 0.000000e+00 : f32
    %32 = vector.broadcast %cst_17 : f32 to vector<8x128xf32>
    %33 = arith.select %31, %29, %32 : vector<8x128xi1>, vector<8x128xf32>
    %c127_i32 = arith.constant 127 : i32
    %34 = tpu.dynamic_rotate %18 by %c127_i32 dim 1 : vector<8x128xf32>, i32 -> vector<8x128xf32>
    %c127_i32_18 = arith.constant 127 : i32
    %35 = vector.broadcast %c127_i32_18 : i32 to vector<8x128xi32>
    %36 = arith.cmpi slt, %16, %35 : vector<8x128xi32>
    %cst_19 = arith.constant 0.000000e+00 : f32
    %37 = vector.broadcast %cst_19 : f32 to vector<8x128xf32>
    %38 = arith.select %36, %34, %37 : vector<8x128xi1>, vector<8x128xf32>
    %c126_i32 = arith.constant 126 : i32
    %39 = tpu.dynamic_rotate %18 by %c126_i32 dim 1 : vector<8x128xf32>, i32 -> vector<8x128xf32>
    %c126_i32_20 = arith.constant 126 : i32
    %40 = vector.broadcast %c126_i32_20 : i32 to vector<8x128xi32>
    %41 = arith.cmpi slt, %16, %40 : vector<8x128xi32>
    %cst_21 = arith.constant 0.000000e+00 : f32
    %42 = vector.broadcast %cst_21 : f32 to vector<8x128xf32>
    %43 = arith.select %41, %39, %42 : vector<8x128xi1>, vector<8x128xf32>
    %c125_i32 = arith.constant 125 : i32
    %44 = tpu.dynamic_rotate %18 by %c125_i32 dim 1 : vector<8x128xf32>, i32 -> vector<8x128xf32>
    %c125_i32_22 = arith.constant 125 : i32
    %45 = vector.broadcast %c125_i32_22 : i32 to vector<8x128xi32>
    %46 = arith.cmpi slt, %16, %45 : vector<8x128xi32>
    %cst_23 = arith.constant 0.000000e+00 : f32
    %47 = vector.broadcast %cst_23 : f32 to vector<8x128xf32>
    %48 = arith.select %46, %44, %47 : vector<8x128xi1>, vector<8x128xf32>
    %49 = tpu.concatenate %23, %28, %33, %18, %38, %43, %48, %17 in 0 : vector<8x128xf32>, vector<8x128xf32>, vector<8x128xf32>, vector<8x128xf32>, vector<8x128xf32>, vector<8x128xf32>, vector<8x128xf32>, vector<8x128xf32> -> vector<64x128xf32>
    %c0_24 = arith.constant 0 : index
    %c0_25 = arith.constant 0 : index
    %c0_26 = arith.constant 0 : index
    %50 = vector.load %arg6[%c0_24, %c0_25, %c0_26] : memref<7x16x64xbf16, #tpu.memory_space<vmem>>, vector<1x16x64xbf16>
    %51 = vector.shape_cast %50 : vector<1x16x64xbf16> to vector<16x64xbf16>
    %52 = arith.truncf %49 : vector<64x128xf32> to vector<64x128xbf16>
    %cst_27 = arith.constant dense<0.000000e+00> : vector<16x128xf32>
    %53 = tpu.matmul %51, %52, %cst_27 {dimension_numbers = #tpu.dot_dimension_numbers<[1], [0], [0], [1], [0, 0, 1, 1], [], []>} : vector<16x64xbf16>, vector<64x128xbf16>, vector<16x128xf32> -> vector<16x128xf32>
    %c0_28 = arith.constant 0 : index
    %c0_29 = arith.constant 0 : index
    %c0_30 = arith.constant 0 : index
    %54 = vector.load %arg7[%c0_28, %c0_29, %c0_30] : memref<7x16x1xf32, #tpu.memory_space<vmem>>, vector<1x16x1xf32>
    %55 = vector.shape_cast %54 : vector<1x16x1xf32> to vector<16x1xf32>
    %56 = vector.broadcast %55 : vector<16x1xf32> to vector<16x128xf32>
    %57 = arith.addf %53, %56 : vector<16x128xf32>
    %cst_31 = arith.constant 0.000000e+00 : f32
    %58 = vector.broadcast %cst_31 : f32 to vector<16x128xf32>
    %59 = arith.maximumf %57, %58 : vector<16x128xf32>
    %c0_32 = arith.constant 0 : index
    %c0_33 = arith.constant 0 : index
    %c0_34 = arith.constant 0 : index
    %60 = vector.load %arg8[%c0_32, %c0_33, %c0_34] : memref<7x16x1xf32, #tpu.memory_space<vmem>>, vector<1x16x1xf32>
    %61 = vector.shape_cast %60 : vector<1x16x1xf32> to vector<16x1xf32>
    %62 = vector.broadcast %61 : vector<16x1xf32> to vector<16x128xf32>
    %63 = arith.mulf %59, %62 : vector<16x128xf32>
    %c0_35 = arith.constant 0 : index
    %c0_36 = arith.constant 0 : index
    %c0_37 = arith.constant 0 : index
    %64 = vector.load %arg9[%c0_35, %c0_36, %c0_37] : memref<7x16x1xf32, #tpu.memory_space<vmem>>, vector<1x16x1xf32>
    %65 = vector.shape_cast %64 : vector<1x16x1xf32> to vector<16x1xf32>
    %66 = vector.broadcast %65 : vector<16x1xf32> to vector<16x128xf32>
    %67 = arith.addf %63, %66 : vector<16x128xf32>
    %68 = vector.extract_strided_slice %67 {offsets = [0, 0], sizes = [8, 128], strides = [1, 1]} : vector<16x128xf32> to vector<8x128xf32>
    %69 = vector.extract_strided_slice %67 {offsets = [8, 0], sizes = [8, 128], strides = [1, 1]} : vector<16x128xf32> to vector<8x128xf32>
    %70 = arith.addf %68, %69 : vector<8x128xf32>
    %cst_38 = arith.constant dense<0.000000e+00> : vector<8xf32>
    %71 = vector.multi_reduction <add>, %70, %cst_38 [1] : vector<8x128xf32> to vector<8xf32>
    %72 = vector.shape_cast %71 : vector<8xf32> to vector<8x1xf32>
    %cst_39 = arith.constant 1.280000e+02 : f32
    %73 = vector.broadcast %cst_39 : f32 to vector<8x1xf32>
    %74 = arith.divf %72, %73 : vector<8x1xf32>
    %75 = vector.shape_cast %74 : vector<8x1xf32> to vector<8x1xf32>
    %76 = vector.broadcast %75 : vector<8x1xf32> to vector<8x128xf32>
    %c0_40 = arith.constant 0 : index
    %c0_41 = arith.constant 0 : index
    %c0_42 = arith.constant 0 : index
    %77 = vector.load %arg10[%c0_40, %c0_41, %c0_42] : memref<7x16x8xbf16, #tpu.memory_space<vmem>>, vector<1x16x8xbf16>
    %78 = vector.shape_cast %77 : vector<1x16x8xbf16> to vector<16x8xbf16>
    %79 = arith.truncf %76 : vector<8x128xf32> to vector<8x128xbf16>
    %cst_43 = arith.constant dense<0.000000e+00> : vector<16x128xf32>
    %80 = tpu.matmul %78, %79, %cst_43 {dimension_numbers = #tpu.dot_dimension_numbers<[1], [0], [0], [1], [0, 0, 1, 1], [], []>} : vector<16x8xbf16>, vector<8x128xbf16>, vector<16x128xf32> -> vector<16x128xf32>
    %c0_44 = arith.constant 0 : index
    %c0_45 = arith.constant 0 : index
    %c0_46 = arith.constant 0 : index
    %81 = vector.load %arg11[%c0_44, %c0_45, %c0_46] : memref<7x16x1xf32, #tpu.memory_space<vmem>>, vector<1x16x1xf32>
    %82 = vector.shape_cast %81 : vector<1x16x1xf32> to vector<16x1xf32>
    %83 = vector.broadcast %82 : vector<16x1xf32> to vector<16x128xf32>
    %84 = arith.addf %80, %83 : vector<16x128xf32>
    %cst_47 = arith.constant 0.000000e+00 : f32
    %85 = vector.broadcast %cst_47 : f32 to vector<16x128xf32>
    %86 = arith.maximumf %84, %85 : vector<16x128xf32>
    %c0_48 = arith.constant 0 : index
    %c0_49 = arith.constant 0 : index
    %c0_50 = arith.constant 0 : index
    %87 = vector.load %arg12[%c0_48, %c0_49, %c0_50] : memref<7x16x16xbf16, #tpu.memory_space<vmem>>, vector<1x16x16xbf16>
    %88 = vector.shape_cast %87 : vector<1x16x16xbf16> to vector<16x16xbf16>
    %89 = arith.truncf %86 : vector<16x128xf32> to vector<16x128xbf16>
    %cst_51 = arith.constant dense<0.000000e+00> : vector<16x128xf32>
    %90 = tpu.matmul %88, %89, %cst_51 {dimension_numbers = #tpu.dot_dimension_numbers<[1], [0], [0], [1], [0, 0, 1, 1], [], []>} : vector<16x16xbf16>, vector<16x128xbf16>, vector<16x128xf32> -> vector<16x128xf32>
    %c0_52 = arith.constant 0 : index
    %c0_53 = arith.constant 0 : index
    %c0_54 = arith.constant 0 : index
    %91 = vector.load %arg13[%c0_52, %c0_53, %c0_54] : memref<7x16x1xf32, #tpu.memory_space<vmem>>, vector<1x16x1xf32>
    %92 = vector.shape_cast %91 : vector<1x16x1xf32> to vector<16x1xf32>
    %93 = vector.broadcast %92 : vector<16x1xf32> to vector<16x128xf32>
    %94 = arith.addf %90, %93 : vector<16x128xf32>
    %95 = vector.extract_strided_slice %94 {offsets = [0, 0], sizes = [8, 128], strides = [1, 1]} : vector<16x128xf32> to vector<8x128xf32>
    %96 = vector.extract_strided_slice %94 {offsets = [8, 0], sizes = [8, 128], strides = [1, 1]} : vector<16x128xf32> to vector<8x128xf32>
    %97 = arith.maximumf %95, %96 : vector<8x128xf32>
    %98 = arith.subf %95, %97 : vector<8x128xf32>
    %99 = math.exp %98 : vector<8x128xf32>
    %100 = arith.subf %96, %97 : vector<8x128xf32>
    %101 = math.exp %100 : vector<8x128xf32>
    %102 = arith.addf %99, %101 : vector<8x128xf32>
    %103 = tpu.reciprocal %102 {approx = true} : vector<8x128xf32> -> vector<8x128xf32>
    %104 = arith.mulf %99, %103 : vector<8x128xf32>
    %105 = arith.mulf %104, %68 : vector<8x128xf32>
    %106 = arith.mulf %101, %103 : vector<8x128xf32>
    %107 = arith.mulf %106, %69 : vector<8x128xf32>
    %108 = arith.addf %105, %107 : vector<8x128xf32>
    %c0_55 = arith.constant 0 : index
    %c0_56 = arith.constant 0 : index
    %109 = vector.load %arg25[%c0_55, %c0_56] : memref<64x128xf32, #tpu.memory_space<vmem>>, vector<8x128xf32>
    tpu.vector_store %arg25[%c0_55, %c0_56], %108 {strides = array<i32>} : memref<64x128xf32, #tpu.memory_space<vmem>>, vector<8x128xf32>,
    %110 = vector.extract_strided_slice %15 {offsets = [8, 0], sizes = [8, 128], strides = [1, 1]} : vector<64x128xf32> to vector<8x128xf32>
    %111 = arith.addf %108, %110 : vector<8x128xf32>
    %c3_i32_57 = arith.constant 3 : i32
    %112 = tpu.dynamic_rotate %111 by %c3_i32_57 dim 1 : vector<8x128xf32>, i32 -> vector<8x128xf32>
    %c3_i32_58 = arith.constant 3 : i32
    %113 = vector.broadcast %c3_i32_58 : i32 to vector<8x128xi32>
    %114 = arith.cmpi sge, %16, %113 : vector<8x128xi32>
    %cst_59 = arith.constant 0.000000e+00 : f32
    %115 = vector.broadcast %cst_59 : f32 to vector<8x128xf32>
    %116 = arith.select %114, %112, %115 : vector<8x128xi1>, vector<8x128xf32>
    %c2_i32_60 = arith.constant 2 : i32
    %117 = tpu.dynamic_rotate %111 by %c2_i32_60 dim 1 : vector<8x128xf32>, i32 -> vector<8x128xf32>
    %c2_i32_61 = arith.constant 2 : i32
    %118 = vector.broadcast %c2_i32_61 : i32 to vector<8x128xi32>
    %119 = arith.cmpi sge, %16, %118 : vector<8x128xi32>
    %cst_62 = arith.constant 0.000000e+00 : f32
    %120 = vector.broadcast %cst_62 : f32 to vector<8x128xf32>
    %121 = arith.select %119, %117, %120 : vector<8x128xi1>, vector<8x128xf32>
    %c1_i32_63 = arith.constant 1 : i32
    %122 = tpu.dynamic_rotate %111 by %c1_i32_63 dim 1 : vector<8x128xf32>, i32 -> vector<8x128xf32>
    %c1_i32_64 = arith.constant 1 : i32
    %123 = vector.broadcast %c1_i32_64 : i32 to vector<8x128xi32>
    %124 = arith.cmpi sge, %16, %123 : vector<8x128xi32>
    %cst_65 = arith.constant 0.000000e+00 : f32
    %125 = vector.broadcast %cst_65 : f32 to vector<8x128xf32>
    %126 = arith.select %124, %122, %125 : vector<8x128xi1>, vector<8x128xf32>
    %c127_i32_66 = arith.constant 127 : i32
    %127 = tpu.dynamic_rotate %111 by %c127_i32_66 dim 1 : vector<8x128xf32>, i32 -> vector<8x128xf32>
    %c127_i32_67 = arith.constant 127 : i32
    %128 = vector.broadcast %c127_i32_67 : i32 to vector<8x128xi32>
    %129 = arith.cmpi slt, %16, %128 : vector<8x128xi32>
    %cst_68 = arith.constant 0.000000e+00 : f32
    %130 = vector.broadcast %cst_68 : f32 to vector<8x128xf32>
    %131 = arith.select %129, %127, %130 : vector<8x128xi1>, vector<8x128xf32>
    %c126_i32_69 = arith.constant 126 : i32
    %132 = tpu.dynamic_rotate %111 by %c126_i32_69 dim 1 : vector<8x128xf32>, i32 -> vector<8x128xf32>
    %c126_i32_70 = arith.constant 126 : i32
    %133 = vector.broadcast %c126_i32_70 : i32 to vector<8x128xi32>
    %134 = arith.cmpi slt, %16, %133 : vector<8x128xi32>
    %cst_71 = arith.constant 0.000000e+00 : f32
    %135 = vector.broadcast %cst_71 : f32 to vector<8x128xf32>
    %136 = arith.select %134, %132, %135 : vector<8x128xi1>, vector<8x128xf32>
    %c125_i32_72 = arith.constant 125 : i32
    %137 = tpu.dynamic_rotate %111 by %c125_i32_72 dim 1 : vector<8x128xf32>, i32 -> vector<8x128xf32>
    %c125_i32_73 = arith.constant 125 : i32
    %138 = vector.broadcast %c125_i32_73 : i32 to vector<8x128xi32>
    %139 = arith.cmpi slt, %16, %138 : vector<8x128xi32>
    %cst_74 = arith.constant 0.000000e+00 : f32
    %140 = vector.broadcast %cst_74 : f32 to vector<8x128xf32>
    %141 = arith.select %139, %137, %140 : vector<8x128xi1>, vector<8x128xf32>
    %142 = tpu.concatenate %116, %121, %126, %111, %131, %136, %141, %17 in 0 : vector<8x128xf32>, vector<8x128xf32>, vector<8x128xf32>, vector<8x128xf32>, vector<8x128xf32>, vector<8x128xf32>, vector<8x128xf32>, vector<8x128xf32> -> vector<64x128xf32>
    %c1 = arith.constant 1 : index
    %c0_75 = arith.constant 0 : index
    %c0_76 = arith.constant 0 : index
    %143 = vector.load %arg6[%c1, %c0_75, %c0_76] : memref<7x16x64xbf16, #tpu.memory_space<vmem>>, vector<1x16x64xbf16>
    %144 = vector.shape_cast %143 : vector<1x16x64xbf16> to vector<16x64xbf16>
    %145 = arith.truncf %142 : vector<64x128xf32> to vector<64x128xbf16>
    %cst_77 = arith.constant dense<0.000000e+00> : vector<16x128xf32>
    %146 = tpu.matmul %144, %145, %cst_77 {dimension_numbers = #tpu.dot_dimension_numbers<[1], [0], [0], [1], [0, 0, 1, 1], [], []>} : vector<16x64xbf16>, vector<64x128xbf16>, vector<16x128xf32> -> vector<16x128xf32>
    %c1_78 = arith.constant 1 : index
    %c0_79 = arith.constant 0 : index
    %c0_80 = arith.constant 0 : index
    %147 = vector.load %arg7[%c1_78, %c0_79, %c0_80] : memref<7x16x1xf32, #tpu.memory_space<vmem>>, vector<1x16x1xf32>
    %148 = vector.shape_cast %147 : vector<1x16x1xf32> to vector<16x1xf32>
    %149 = vector.broadcast %148 : vector<16x1xf32> to vector<16x128xf32>
    %150 = arith.addf %146, %149 : vector<16x128xf32>
    %cst_81 = arith.constant 0.000000e+00 : f32
    %151 = vector.broadcast %cst_81 : f32 to vector<16x128xf32>
    %152 = arith.maximumf %150, %151 : vector<16x128xf32>
    %c1_82 = arith.constant 1 : index
    %c0_83 = arith.constant 0 : index
    %c0_84 = arith.constant 0 : index
    %153 = vector.load %arg8[%c1_82, %c0_83, %c0_84] : memref<7x16x1xf32, #tpu.memory_space<vmem>>, vector<1x16x1xf32>
    %154 = vector.shape_cast %153 : vector<1x16x1xf32> to vector<16x1xf32>
    %155 = vector.broadcast %154 : vector<16x1xf32> to vector<16x128xf32>
    %156 = arith.mulf %152, %155 : vector<16x128xf32>
    %c1_85 = arith.constant 1 : index
    %c0_86 = arith.constant 0 : index
    %c0_87 = arith.constant 0 : index
    %157 = vector.load %arg9[%c1_85, %c0_86, %c0_87] : memref<7x16x1xf32, #tpu.memory_space<vmem>>, vector<1x16x1xf32>
    %158 = vector.shape_cast %157 : vector<1x16x1xf32> to vector<16x1xf32>
    %159 = vector.broadcast %158 : vector<16x1xf32> to vector<16x128xf32>
    %160 = arith.addf %156, %159 : vector<16x128xf32>
    %161 = vector.extract_strided_slice %160 {offsets = [0, 0], sizes = [8, 128], strides = [1, 1]} : vector<16x128xf32> to vector<8x128xf32>
    %162 = vector.extract_strided_slice %160 {offsets = [8, 0], sizes = [8, 128], strides = [1, 1]} : vector<16x128xf32> to vector<8x128xf32>
    %163 = arith.addf %161, %162 : vector<8x128xf32>
    %cst_88 = arith.constant dense<0.000000e+00> : vector<8xf32>
    %164 = vector.multi_reduction <add>, %163, %cst_88 [1] : vector<8x128xf32> to vector<8xf32>
    %165 = vector.shape_cast %164 : vector<8xf32> to vector<8x1xf32>
    %cst_89 = arith.constant 1.280000e+02 : f32
    %166 = vector.broadcast %cst_89 : f32 to vector<8x1xf32>
    %167 = arith.divf %165, %166 : vector<8x1xf32>
    %168 = vector.shape_cast %167 : vector<8x1xf32> to vector<8x1xf32>
    %169 = vector.broadcast %168 : vector<8x1xf32> to vector<8x128xf32>
    %c1_90 = arith.constant 1 : index
    %c0_91 = arith.constant 0 : index
    %c0_92 = arith.constant 0 : index
    %170 = vector.load %arg10[%c1_90, %c0_91, %c0_92] : memref<7x16x8xbf16, #tpu.memory_space<vmem>>, vector<1x16x8xbf16>
    %171 = vector.shape_cast %170 : vector<1x16x8xbf16> to vector<16x8xbf16>
    %172 = arith.truncf %169 : vector<8x128xf32> to vector<8x128xbf16>
    %cst_93 = arith.constant dense<0.000000e+00> : vector<16x128xf32>
    %173 = tpu.matmul %171, %172, %cst_93 {dimension_numbers = #tpu.dot_dimension_numbers<[1], [0], [0], [1], [0, 0, 1, 1], [], []>} : vector<16x8xbf16>, vector<8x128xbf16>, vector<16x128xf32> -> vector<16x128xf32>
    %c1_94 = arith.constant 1 : index
    %c0_95 = arith.constant 0 : index
    %c0_96 = arith.constant 0 : index
    %174 = vector.load %arg11[%c1_94, %c0_95, %c0_96] : memref<7x16x1xf32, #tpu.memory_space<vmem>>, vector<1x16x1xf32>
    %175 = vector.shape_cast %174 : vector<1x16x1xf32> to vector<16x1xf32>
    %176 = vector.broadcast %175 : vector<16x1xf32> to vector<16x128xf32>
    %177 = arith.addf %173, %176 : vector<16x128xf32>
    %cst_97 = arith.constant 0.000000e+00 : f32
    %178 = vector.broadcast %cst_97 : f32 to vector<16x128xf32>
    %179 = arith.maximumf %177, %178 : vector<16x128xf32>
    %c1_98 = arith.constant 1 : index
    %c0_99 = arith.constant 0 : index
    %c0_100 = arith.constant 0 : index
    %180 = vector.load %arg12[%c1_98, %c0_99, %c0_100] : memref<7x16x16xbf16, #tpu.memory_space<vmem>>, vector<1x16x16xbf16>
    %181 = vector.shape_cast %180 : vector<1x16x16xbf16> to vector<16x16xbf16>
    %182 = arith.truncf %179 : vector<16x128xf32> to vector<16x128xbf16>
    %cst_101 = arith.constant dense<0.000000e+00> : vector<16x128xf32>
    %183 = tpu.matmul %181, %182, %cst_101 {dimension_numbers = #tpu.dot_dimension_numbers<[1], [0], [0], [1], [0, 0, 1, 1], [], []>} : vector<16x16xbf16>, vector<16x128xbf16>, vector<16x128xf32> -> vector<16x128xf32>
    %c1_102 = arith.constant 1 : index
    %c0_103 = arith.constant 0 : index
    %c0_104 = arith.constant 0 : index
    %184 = vector.load %arg13[%c1_102, %c0_103, %c0_104] : memref<7x16x1xf32, #tpu.memory_space<vmem>>, vector<1x16x1xf32>
    %185 = vector.shape_cast %184 : vector<1x16x1xf32> to vector<16x1xf32>
    %186 = vector.broadcast %185 : vector<16x1xf32> to vector<16x128xf32>
    %187 = arith.addf %183, %186 : vector<16x128xf32>
    %188 = vector.extract_strided_slice %187 {offsets = [0, 0], sizes = [8, 128], strides = [1, 1]} : vector<16x128xf32> to vector<8x128xf32>
    %189 = vector.extract_strided_slice %187 {offsets = [8, 0], sizes = [8, 128], strides = [1, 1]} : vector<16x128xf32> to vector<8x128xf32>
    %190 = arith.maximumf %188, %189 : vector<8x128xf32>
    %191 = arith.subf %188, %190 : vector<8x128xf32>
    %192 = math.exp %191 : vector<8x128xf32>
    %193 = arith.subf %189, %190 : vector<8x128xf32>
    %194 = math.exp %193 : vector<8x128xf32>
    %195 = arith.addf %192, %194 : vector<8x128xf32>
    %196 = tpu.reciprocal %195 {approx = true} : vector<8x128xf32> -> vector<8x128xf32>
    %197 = arith.mulf %192, %196 : vector<8x128xf32>
    %198 = arith.mulf %197, %161 : vector<8x128xf32>
    %199 = arith.mulf %194, %196 : vector<8x128xf32>
    %200 = arith.mulf %199, %162 : vector<8x128xf32>
    %201 = arith.addf %198, %200 : vector<8x128xf32>
    %c8 = arith.constant 8 : index
    %c0_105 = arith.constant 0 : index
    %202 = vector.load %arg25[%c8, %c0_105] : memref<64x128xf32, #tpu.memory_space<vmem>>, vector<8x128xf32>
    tpu.vector_store %arg25[%c8, %c0_105], %201 {strides = array<i32>} : memref<64x128xf32, #tpu.memory_space<vmem>>, vector<8x128xf32>,
    %203 = vector.extract_strided_slice %15 {offsets = [16, 0], sizes = [8, 128], strides = [1, 1]} : vector<64x128xf32> to vector<8x128xf32>
    %204 = arith.addf %201, %203 : vector<8x128xf32>
    %c3_i32_106 = arith.constant 3 : i32
    %205 = tpu.dynamic_rotate %204 by %c3_i32_106 dim 1 : vector<8x128xf32>, i32 -> vector<8x128xf32>
    %c3_i32_107 = arith.constant 3 : i32
    %206 = vector.broadcast %c3_i32_107 : i32 to vector<8x128xi32>
    %207 = arith.cmpi sge, %16, %206 : vector<8x128xi32>
    %cst_108 = arith.constant 0.000000e+00 : f32
    %208 = vector.broadcast %cst_108 : f32 to vector<8x128xf32>
    %209 = arith.select %207, %205, %208 : vector<8x128xi1>, vector<8x128xf32>
    %c2_i32_109 = arith.constant 2 : i32
    %210 = tpu.dynamic_rotate %204 by %c2_i32_109 dim 1 : vector<8x128xf32>, i32 -> vector<8x128xf32>
    %c2_i32_110 = arith.constant 2 : i32
    %211 = vector.broadcast %c2_i32_110 : i32 to vector<8x128xi32>
    %212 = arith.cmpi sge, %16, %211 : vector<8x128xi32>
    %cst_111 = arith.constant 0.000000e+00 : f32
    %213 = vector.broadcast %cst_111 : f32 to vector<8x128xf32>
    %214 = arith.select %212, %210, %213 : vector<8x128xi1>, vector<8x128xf32>
    %c1_i32_112 = arith.constant 1 : i32
    %215 = tpu.dynamic_rotate %204 by %c1_i32_112 dim 1 : vector<8x128xf32>, i32 -> vector<8x128xf32>
    %c1_i32_113 = arith.constant 1 : i32
    %216 = vector.broadcast %c1_i32_113 : i32 to vector<8x128xi32>
    %217 = arith.cmpi sge, %16, %216 : vector<8x128xi32>
    %cst_114 = arith.constant 0.000000e+00 : f32
    %218 = vector.broadcast %cst_114 : f32 to vector<8x128xf32>
    %219 = arith.select %217, %215, %218 : vector<8x128xi1>, vector<8x128xf32>
    %c127_i32_115 = arith.constant 127 : i32
    %220 = tpu.dynamic_rotate %204 by %c127_i32_115 dim 1 : vector<8x128xf32>, i32 -> vector<8x128xf32>
    %c127_i32_116 = arith.constant 127 : i32
    %221 = vector.broadcast %c127_i32_116 : i32 to vector<8x128xi32>
    %222 = arith.cmpi slt, %16, %221 : vector<8x128xi32>
    %cst_117 = arith.constant 0.000000e+00 : f32
    %223 = vector.broadcast %cst_117 : f32 to vector<8x128xf32>
    %224 = arith.select %222, %220, %223 : vector<8x128xi1>, vector<8x128xf32>
    %c126_i32_118 = arith.constant 126 : i32
    %225 = tpu.dynamic_rotate %204 by %c126_i32_118 dim 1 : vector<8x128xf32>, i32 -> vector<8x128xf32>
    %c126_i32_119 = arith.constant 126 : i32
    %226 = vector.broadcast %c126_i32_119 : i32 to vector<8x128xi32>
    %227 = arith.cmpi slt, %16, %226 : vector<8x128xi32>
    %cst_120 = arith.constant 0.000000e+00 : f32
    %228 = vector.broadcast %cst_120 : f32 to vector<8x128xf32>
    %229 = arith.select %227, %225, %228 : vector<8x128xi1>, vector<8x128xf32>
    %c125_i32_121 = arith.constant 125 : i32
    %230 = tpu.dynamic_rotate %204 by %c125_i32_121 dim 1 : vector<8x128xf32>, i32 -> vector<8x128xf32>
    %c125_i32_122 = arith.constant 125 : i32
    %231 = vector.broadcast %c125_i32_122 : i32 to vector<8x128xi32>
    %232 = arith.cmpi slt, %16, %231 : vector<8x128xi32>
    %cst_123 = arith.constant 0.000000e+00 : f32
    %233 = vector.broadcast %cst_123 : f32 to vector<8x128xf32>
    %234 = arith.select %232, %230, %233 : vector<8x128xi1>, vector<8x128xf32>
    %235 = tpu.concatenate %209, %214, %219, %204, %224, %229, %234, %17 in 0 : vector<8x128xf32>, vector<8x128xf32>, vector<8x128xf32>, vector<8x128xf32>, vector<8x128xf32>, vector<8x128xf32>, vector<8x128xf32>, vector<8x128xf32> -> vector<64x128xf32>
    %c2 = arith.constant 2 : index
    %c0_124 = arith.constant 0 : index
    %c0_125 = arith.constant 0 : index
    %236 = vector.load %arg6[%c2, %c0_124, %c0_125] : memref<7x16x64xbf16, #tpu.memory_space<vmem>>, vector<1x16x64xbf16>
    %237 = vector.shape_cast %236 : vector<1x16x64xbf16> to vector<16x64xbf16>
    %238 = arith.truncf %235 : vector<64x128xf32> to vector<64x128xbf16>
    %cst_126 = arith.constant dense<0.000000e+00> : vector<16x128xf32>
    %239 = tpu.matmul %237, %238, %cst_126 {dimension_numbers = #tpu.dot_dimension_numbers<[1], [0], [0], [1], [0, 0, 1, 1], [], []>} : vector<16x64xbf16>, vector<64x128xbf16>, vector<16x128xf32> -> vector<16x128xf32>
    %c2_127 = arith.constant 2 : index
    %c0_128 = arith.constant 0 : index
    %c0_129 = arith.constant 0 : index
    %240 = vector.load %arg7[%c2_127, %c0_128, %c0_129] : memref<7x16x1xf32, #tpu.memory_space<vmem>>, vector<1x16x1xf32>
    %241 = vector.shape_cast %240 : vector<1x16x1xf32> to vector<16x1xf32>
    %242 = vector.broadcast %241 : vector<16x1xf32> to vector<16x128xf32>
    %243 = arith.addf %239, %242 : vector<16x128xf32>
    %cst_130 = arith.constant 0.000000e+00 : f32
    %244 = vector.broadcast %cst_130 : f32 to vector<16x128xf32>
    %245 = arith.maximumf %243, %244 : vector<16x128xf32>
    %c2_131 = arith.constant 2 : index
    %c0_132 = arith.constant 0 : index
    %c0_133 = arith.constant 0 : index
    %246 = vector.load %arg8[%c2_131, %c0_132, %c0_133] : memref<7x16x1xf32, #tpu.memory_space<vmem>>, vector<1x16x1xf32>
    %247 = vector.shape_cast %246 : vector<1x16x1xf32> to vector<16x1xf32>
    %248 = vector.broadcast %247 : vector<16x1xf32> to vector<16x128xf32>
    %249 = arith.mulf %245, %248 : vector<16x128xf32>
    %c2_134 = arith.constant 2 : index
    %c0_135 = arith.constant 0 : index
    %c0_136 = arith.constant 0 : index
    %250 = vector.load %arg9[%c2_134, %c0_135, %c0_136] : memref<7x16x1xf32, #tpu.memory_space<vmem>>, vector<1x16x1xf32>
    %251 = vector.shape_cast %250 : vector<1x16x1xf32> to vector<16x1xf32>
    %252 = vector.broadcast %251 : vector<16x1xf32> to vector<16x128xf32>
    %253 = arith.addf %249, %252 : vector<16x128xf32>
    %254 = vector.extract_strided_slice %253 {offsets = [0, 0], sizes = [8, 128], strides = [1, 1]} : vector<16x128xf32> to vector<8x128xf32>
    %255 = vector.extract_strided_slice %253 {offsets = [8, 0], sizes = [8, 128], strides = [1, 1]} : vector<16x128xf32> to vector<8x128xf32>
    %256 = arith.addf %254, %255 : vector<8x128xf32>
    %cst_137 = arith.constant dense<0.000000e+00> : vector<8xf32>
    %257 = vector.multi_reduction <add>, %256, %cst_137 [1] : vector<8x128xf32> to vector<8xf32>
    %258 = vector.shape_cast %257 : vector<8xf32> to vector<8x1xf32>
    %cst_138 = arith.constant 1.280000e+02 : f32
    %259 = vector.broadcast %cst_138 : f32 to vector<8x1xf32>
    %260 = arith.divf %258, %259 : vector<8x1xf32>
    %261 = vector.shape_cast %260 : vector<8x1xf32> to vector<8x1xf32>
    %262 = vector.broadcast %261 : vector<8x1xf32> to vector<8x128xf32>
    %c2_139 = arith.constant 2 : index
    %c0_140 = arith.constant 0 : index
    %c0_141 = arith.constant 0 : index
    %263 = vector.load %arg10[%c2_139, %c0_140, %c0_141] : memref<7x16x8xbf16, #tpu.memory_space<vmem>>, vector<1x16x8xbf16>
    %264 = vector.shape_cast %263 : vector<1x16x8xbf16> to vector<16x8xbf16>
    %265 = arith.truncf %262 : vector<8x128xf32> to vector<8x128xbf16>
    %cst_142 = arith.constant dense<0.000000e+00> : vector<16x128xf32>
    %266 = tpu.matmul %264, %265, %cst_142 {dimension_numbers = #tpu.dot_dimension_numbers<[1], [0], [0], [1], [0, 0, 1, 1], [], []>} : vector<16x8xbf16>, vector<8x128xbf16>, vector<16x128xf32> -> vector<16x128xf32>
    %c2_143 = arith.constant 2 : index
    %c0_144 = arith.constant 0 : index
    %c0_145 = arith.constant 0 : index
    %267 = vector.load %arg11[%c2_143, %c0_144, %c0_145] : memref<7x16x1xf32, #tpu.memory_space<vmem>>, vector<1x16x1xf32>
    %268 = vector.shape_cast %267 : vector<1x16x1xf32> to vector<16x1xf32>
    %269 = vector.broadcast %268 : vector<16x1xf32> to vector<16x128xf32>
    %270 = arith.addf %266, %269 : vector<16x128xf32>
    %cst_146 = arith.constant 0.000000e+00 : f32
    %271 = vector.broadcast %cst_146 : f32 to vector<16x128xf32>
    %272 = arith.maximumf %270, %271 : vector<16x128xf32>
    %c2_147 = arith.constant 2 : index
    %c0_148 = arith.constant 0 : index
    %c0_149 = arith.constant 0 : index
    %273 = vector.load %arg12[%c2_147, %c0_148, %c0_149] : memref<7x16x16xbf16, #tpu.memory_space<vmem>>, vector<1x16x16xbf16>
    %274 = vector.shape_cast %273 : vector<1x16x16xbf16> to vector<16x16xbf16>
    %275 = arith.truncf %272 : vector<16x128xf32> to vector<16x128xbf16>
    %cst_150 = arith.constant dense<0.000000e+00> : vector<16x128xf32>
    %276 = tpu.matmul %274, %275, %cst_150 {dimension_numbers = #tpu.dot_dimension_numbers<[1], [0], [0], [1], [0, 0, 1, 1], [], []>} : vector<16x16xbf16>, vector<16x128xbf16>, vector<16x128xf32> -> vector<16x128xf32>
    %c2_151 = arith.constant 2 : index
    %c0_152 = arith.constant 0 : index
    %c0_153 = arith.constant 0 : index
    %277 = vector.load %arg13[%c2_151, %c0_152, %c0_153] : memref<7x16x1xf32, #tpu.memory_space<vmem>>, vector<1x16x1xf32>
    %278 = vector.shape_cast %277 : vector<1x16x1xf32> to vector<16x1xf32>
    %279 = vector.broadcast %278 : vector<16x1xf32> to vector<16x128xf32>
    %280 = arith.addf %276, %279 : vector<16x128xf32>
    %281 = vector.extract_strided_slice %280 {offsets = [0, 0], sizes = [8, 128], strides = [1, 1]} : vector<16x128xf32> to vector<8x128xf32>
    %282 = vector.extract_strided_slice %280 {offsets = [8, 0], sizes = [8, 128], strides = [1, 1]} : vector<16x128xf32> to vector<8x128xf32>
    %283 = arith.maximumf %281, %282 : vector<8x128xf32>
    %284 = arith.subf %281, %283 : vector<8x128xf32>
    %285 = math.exp %284 : vector<8x128xf32>
    %286 = arith.subf %282, %283 : vector<8x128xf32>
    %287 = math.exp %286 : vector<8x128xf32>
    %288 = arith.addf %285, %287 : vector<8x128xf32>
    %289 = tpu.reciprocal %288 {approx = true} : vector<8x128xf32> -> vector<8x128xf32>
    %290 = arith.mulf %285, %289 : vector<8x128xf32>
    %291 = arith.mulf %290, %254 : vector<8x128xf32>
    %292 = arith.mulf %287, %289 : vector<8x128xf32>
    %293 = arith.mulf %292, %255 : vector<8x128xf32>
    %294 = arith.addf %291, %293 : vector<8x128xf32>
    %c16 = arith.constant 16 : index
    %c0_154 = arith.constant 0 : index
    %295 = vector.load %arg25[%c16, %c0_154] : memref<64x128xf32, #tpu.memory_space<vmem>>, vector<8x128xf32>
    tpu.vector_store %arg25[%c16, %c0_154], %294 {strides = array<i32>} : memref<64x128xf32, #tpu.memory_space<vmem>>, vector<8x128xf32>,
    %296 = vector.extract_strided_slice %15 {offsets = [24, 0], sizes = [8, 128], strides = [1, 1]} : vector<64x128xf32> to vector<8x128xf32>
    %297 = arith.addf %294, %296 : vector<8x128xf32>
    %c3_i32_155 = arith.constant 3 : i32
    %298 = tpu.dynamic_rotate %297 by %c3_i32_155 dim 1 : vector<8x128xf32>, i32 -> vector<8x128xf32>
    %c3_i32_156 = arith.constant 3 : i32
    %299 = vector.broadcast %c3_i32_156 : i32 to vector<8x128xi32>
    %300 = arith.cmpi sge, %16, %299 : vector<8x128xi32>
    %cst_157 = arith.constant 0.000000e+00 : f32
    %301 = vector.broadcast %cst_157 : f32 to vector<8x128xf32>
    %302 = arith.select %300, %298, %301 : vector<8x128xi1>, vector<8x128xf32>
    %c2_i32_158 = arith.constant 2 : i32
    %303 = tpu.dynamic_rotate %297 by %c2_i32_158 dim 1 : vector<8x128xf32>, i32 -> vector<8x128xf32>
    %c2_i32_159 = arith.constant 2 : i32
    %304 = vector.broadcast %c2_i32_159 : i32 to vector<8x128xi32>
    %305 = arith.cmpi sge, %16, %304 : vector<8x128xi32>
    %cst_160 = arith.constant 0.000000e+00 : f32
    %306 = vector.broadcast %cst_160 : f32 to vector<8x128xf32>
    %307 = arith.select %305, %303, %306 : vector<8x128xi1>, vector<8x128xf32>
    %c1_i32_161 = arith.constant 1 : i32
    %308 = tpu.dynamic_rotate %297 by %c1_i32_161 dim 1 : vector<8x128xf32>, i32 -> vector<8x128xf32>
    %c1_i32_162 = arith.constant 1 : i32
    %309 = vector.broadcast %c1_i32_162 : i32 to vector<8x128xi32>
    %310 = arith.cmpi sge, %16, %309 : vector<8x128xi32>
    %cst_163 = arith.constant 0.000000e+00 : f32
    %311 = vector.broadcast %cst_163 : f32 to vector<8x128xf32>
    %312 = arith.select %310, %308, %311 : vector<8x128xi1>, vector<8x128xf32>
    %c127_i32_164 = arith.constant 127 : i32
    %313 = tpu.dynamic_rotate %297 by %c127_i32_164 dim 1 : vector<8x128xf32>, i32 -> vector<8x128xf32>
    %c127_i32_165 = arith.constant 127 : i32
    %314 = vector.broadcast %c127_i32_165 : i32 to vector<8x128xi32>
    %315 = arith.cmpi slt, %16, %314 : vector<8x128xi32>
    %cst_166 = arith.constant 0.000000e+00 : f32
    %316 = vector.broadcast %cst_166 : f32 to vector<8x128xf32>
    %317 = arith.select %315, %313, %316 : vector<8x128xi1>, vector<8x128xf32>
    %c126_i32_167 = arith.constant 126 : i32
    %318 = tpu.dynamic_rotate %297 by %c126_i32_167 dim 1 : vector<8x128xf32>, i32 -> vector<8x128xf32>
    %c126_i32_168 = arith.constant 126 : i32
    %319 = vector.broadcast %c126_i32_168 : i32 to vector<8x128xi32>
    %320 = arith.cmpi slt, %16, %319 : vector<8x128xi32>
    %cst_169 = arith.constant 0.000000e+00 : f32
    %321 = vector.broadcast %cst_169 : f32 to vector<8x128xf32>
    %322 = arith.select %320, %318, %321 : vector<8x128xi1>, vector<8x128xf32>
    %c125_i32_170 = arith.constant 125 : i32
    %323 = tpu.dynamic_rotate %297 by %c125_i32_170 dim 1 : vector<8x128xf32>, i32 -> vector<8x128xf32>
    %c125_i32_171 = arith.constant 125 : i32
    %324 = vector.broadcast %c125_i32_171 : i32 to vector<8x128xi32>
    %325 = arith.cmpi slt, %16, %324 : vector<8x128xi32>
    %cst_172 = arith.constant 0.000000e+00 : f32
    %326 = vector.broadcast %cst_172 : f32 to vector<8x128xf32>
    %327 = arith.select %325, %323, %326 : vector<8x128xi1>, vector<8x128xf32>
    %328 = tpu.concatenate %302, %307, %312, %297, %317, %322, %327, %17 in 0 : vector<8x128xf32>, vector<8x128xf32>, vector<8x128xf32>, vector<8x128xf32>, vector<8x128xf32>, vector<8x128xf32>, vector<8x128xf32>, vector<8x128xf32> -> vector<64x128xf32>
    %c3 = arith.constant 3 : index
    %c0_173 = arith.constant 0 : index
    %c0_174 = arith.constant 0 : index
    %329 = vector.load %arg6[%c3, %c0_173, %c0_174] : memref<7x16x64xbf16, #tpu.memory_space<vmem>>, vector<1x16x64xbf16>
    %330 = vector.shape_cast %329 : vector<1x16x64xbf16> to vector<16x64xbf16>
    %331 = arith.truncf %328 : vector<64x128xf32> to vector<64x128xbf16>
    %cst_175 = arith.constant dense<0.000000e+00> : vector<16x128xf32>
    %332 = tpu.matmul %330, %331, %cst_175 {dimension_numbers = #tpu.dot_dimension_numbers<[1], [0], [0], [1], [0, 0, 1, 1], [], []>} : vector<16x64xbf16>, vector<64x128xbf16>, vector<16x128xf32> -> vector<16x128xf32>
    %c3_176 = arith.constant 3 : index
    %c0_177 = arith.constant 0 : index
    %c0_178 = arith.constant 0 : index
    %333 = vector.load %arg7[%c3_176, %c0_177, %c0_178] : memref<7x16x1xf32, #tpu.memory_space<vmem>>, vector<1x16x1xf32>
    %334 = vector.shape_cast %333 : vector<1x16x1xf32> to vector<16x1xf32>
    %335 = vector.broadcast %334 : vector<16x1xf32> to vector<16x128xf32>
    %336 = arith.addf %332, %335 : vector<16x128xf32>
    %cst_179 = arith.constant 0.000000e+00 : f32
    %337 = vector.broadcast %cst_179 : f32 to vector<16x128xf32>
    %338 = arith.maximumf %336, %337 : vector<16x128xf32>
    %c3_180 = arith.constant 3 : index
    %c0_181 = arith.constant 0 : index
    %c0_182 = arith.constant 0 : index
    %339 = vector.load %arg8[%c3_180, %c0_181, %c0_182] : memref<7x16x1xf32, #tpu.memory_space<vmem>>, vector<1x16x1xf32>
    %340 = vector.shape_cast %339 : vector<1x16x1xf32> to vector<16x1xf32>
    %341 = vector.broadcast %340 : vector<16x1xf32> to vector<16x128xf32>
    %342 = arith.mulf %338, %341 : vector<16x128xf32>
    %c3_183 = arith.constant 3 : index
    %c0_184 = arith.constant 0 : index
    %c0_185 = arith.constant 0 : index
    %343 = vector.load %arg9[%c3_183, %c0_184, %c0_185] : memref<7x16x1xf32, #tpu.memory_space<vmem>>, vector<1x16x1xf32>
    %344 = vector.shape_cast %343 : vector<1x16x1xf32> to vector<16x1xf32>
    %345 = vector.broadcast %344 : vector<16x1xf32> to vector<16x128xf32>
    %346 = arith.addf %342, %345 : vector<16x128xf32>
    %347 = vector.extract_strided_slice %346 {offsets = [0, 0], sizes = [8, 128], strides = [1, 1]} : vector<16x128xf32> to vector<8x128xf32>
    %348 = vector.extract_strided_slice %346 {offsets = [8, 0], sizes = [8, 128], strides = [1, 1]} : vector<16x128xf32> to vector<8x128xf32>
    %349 = arith.addf %347, %348 : vector<8x128xf32>
    %cst_186 = arith.constant dense<0.000000e+00> : vector<8xf32>
    %350 = vector.multi_reduction <add>, %349, %cst_186 [1] : vector<8x128xf32> to vector<8xf32>
    %351 = vector.shape_cast %350 : vector<8xf32> to vector<8x1xf32>
    %cst_187 = arith.constant 1.280000e+02 : f32
    %352 = vector.broadcast %cst_187 : f32 to vector<8x1xf32>
    %353 = arith.divf %351, %352 : vector<8x1xf32>
    %354 = vector.shape_cast %353 : vector<8x1xf32> to vector<8x1xf32>
    %355 = vector.broadcast %354 : vector<8x1xf32> to vector<8x128xf32>
    %c3_188 = arith.constant 3 : index
    %c0_189 = arith.constant 0 : index
    %c0_190 = arith.constant 0 : index
    %356 = vector.load %arg10[%c3_188, %c0_189, %c0_190] : memref<7x16x8xbf16, #tpu.memory_space<vmem>>, vector<1x16x8xbf16>
    %357 = vector.shape_cast %356 : vector<1x16x8xbf16> to vector<16x8xbf16>
    %358 = arith.truncf %355 : vector<8x128xf32> to vector<8x128xbf16>
    %cst_191 = arith.constant dense<0.000000e+00> : vector<16x128xf32>
    %359 = tpu.matmul %357, %358, %cst_191 {dimension_numbers = #tpu.dot_dimension_numbers<[1], [0], [0], [1], [0, 0, 1, 1], [], []>} : vector<16x8xbf16>, vector<8x128xbf16>, vector<16x128xf32> -> vector<16x128xf32>
    %c3_192 = arith.constant 3 : index
    %c0_193 = arith.constant 0 : index
    %c0_194 = arith.constant 0 : index
    %360 = vector.load %arg11[%c3_192, %c0_193, %c0_194] : memref<7x16x1xf32, #tpu.memory_space<vmem>>, vector<1x16x1xf32>
    %361 = vector.shape_cast %360 : vector<1x16x1xf32> to vector<16x1xf32>
    %362 = vector.broadcast %361 : vector<16x1xf32> to vector<16x128xf32>
    %363 = arith.addf %359, %362 : vector<16x128xf32>
    %cst_195 = arith.constant 0.000000e+00 : f32
    %364 = vector.broadcast %cst_195 : f32 to vector<16x128xf32>
    %365 = arith.maximumf %363, %364 : vector<16x128xf32>
    %c3_196 = arith.constant 3 : index
    %c0_197 = arith.constant 0 : index
    %c0_198 = arith.constant 0 : index
    %366 = vector.load %arg12[%c3_196, %c0_197, %c0_198] : memref<7x16x16xbf16, #tpu.memory_space<vmem>>, vector<1x16x16xbf16>
    %367 = vector.shape_cast %366 : vector<1x16x16xbf16> to vector<16x16xbf16>
    %368 = arith.truncf %365 : vector<16x128xf32> to vector<16x128xbf16>
    %cst_199 = arith.constant dense<0.000000e+00> : vector<16x128xf32>
    %369 = tpu.matmul %367, %368, %cst_199 {dimension_numbers = #tpu.dot_dimension_numbers<[1], [0], [0], [1], [0, 0, 1, 1], [], []>} : vector<16x16xbf16>, vector<16x128xbf16>, vector<16x128xf32> -> vector<16x128xf32>
    %c3_200 = arith.constant 3 : index
    %c0_201 = arith.constant 0 : index
    %c0_202 = arith.constant 0 : index
    %370 = vector.load %arg13[%c3_200, %c0_201, %c0_202] : memref<7x16x1xf32, #tpu.memory_space<vmem>>, vector<1x16x1xf32>
    %371 = vector.shape_cast %370 : vector<1x16x1xf32> to vector<16x1xf32>
    %372 = vector.broadcast %371 : vector<16x1xf32> to vector<16x128xf32>
    %373 = arith.addf %369, %372 : vector<16x128xf32>
    %374 = vector.extract_strided_slice %373 {offsets = [0, 0], sizes = [8, 128], strides = [1, 1]} : vector<16x128xf32> to vector<8x128xf32>
    %375 = vector.extract_strided_slice %373 {offsets = [8, 0], sizes = [8, 128], strides = [1, 1]} : vector<16x128xf32> to vector<8x128xf32>
    %376 = arith.maximumf %374, %375 : vector<8x128xf32>
    %377 = arith.subf %374, %376 : vector<8x128xf32>
    %378 = math.exp %377 : vector<8x128xf32>
    %379 = arith.subf %375, %376 : vector<8x128xf32>
    %380 = math.exp %379 : vector<8x128xf32>
    %381 = arith.addf %378, %380 : vector<8x128xf32>
    %382 = tpu.reciprocal %381 {approx = true} : vector<8x128xf32> -> vector<8x128xf32>
    %383 = arith.mulf %378, %382 : vector<8x128xf32>
    %384 = arith.mulf %383, %347 : vector<8x128xf32>
    %385 = arith.mulf %380, %382 : vector<8x128xf32>
    %386 = arith.mulf %385, %348 : vector<8x128xf32>
    %387 = arith.addf %384, %386 : vector<8x128xf32>
    %c24 = arith.constant 24 : index
    %c0_203 = arith.constant 0 : index
    %388 = vector.load %arg25[%c24, %c0_203] : memref<64x128xf32, #tpu.memory_space<vmem>>, vector<8x128xf32>
    tpu.vector_store %arg25[%c24, %c0_203], %387 {strides = array<i32>} : memref<64x128xf32, #tpu.memory_space<vmem>>, vector<8x128xf32>,
    %389 = vector.extract_strided_slice %15 {offsets = [32, 0], sizes = [8, 128], strides = [1, 1]} : vector<64x128xf32> to vector<8x128xf32>
    %390 = arith.addf %387, %389 : vector<8x128xf32>
    %c3_i32_204 = arith.constant 3 : i32
    %391 = tpu.dynamic_rotate %390 by %c3_i32_204 dim 1 : vector<8x128xf32>, i32 -> vector<8x128xf32>
    %c3_i32_205 = arith.constant 3 : i32
    %392 = vector.broadcast %c3_i32_205 : i32 to vector<8x128xi32>
    %393 = arith.cmpi sge, %16, %392 : vector<8x128xi32>
    %cst_206 = arith.constant 0.000000e+00 : f32
    %394 = vector.broadcast %cst_206 : f32 to vector<8x128xf32>
    %395 = arith.select %393, %391, %394 : vector<8x128xi1>, vector<8x128xf32>
    %c2_i32_207 = arith.constant 2 : i32
    %396 = tpu.dynamic_rotate %390 by %c2_i32_207 dim 1 : vector<8x128xf32>, i32 -> vector<8x128xf32>
    %c2_i32_208 = arith.constant 2 : i32
    %397 = vector.broadcast %c2_i32_208 : i32 to vector<8x128xi32>
    %398 = arith.cmpi sge, %16, %397 : vector<8x128xi32>
    %cst_209 = arith.constant 0.000000e+00 : f32
    %399 = vector.broadcast %cst_209 : f32 to vector<8x128xf32>
    %400 = arith.select %398, %396, %399 : vector<8x128xi1>, vector<8x128xf32>
    %c1_i32_210 = arith.constant 1 : i32
    %401 = tpu.dynamic_rotate %390 by %c1_i32_210 dim 1 : vector<8x128xf32>, i32 -> vector<8x128xf32>
    %c1_i32_211 = arith.constant 1 : i32
    %402 = vector.broadcast %c1_i32_211 : i32 to vector<8x128xi32>
    %403 = arith.cmpi sge, %16, %402 : vector<8x128xi32>
    %cst_212 = arith.constant 0.000000e+00 : f32
    %404 = vector.broadcast %cst_212 : f32 to vector<8x128xf32>
    %405 = arith.select %403, %401, %404 : vector<8x128xi1>, vector<8x128xf32>
    %c127_i32_213 = arith.constant 127 : i32
    %406 = tpu.dynamic_rotate %390 by %c127_i32_213 dim 1 : vector<8x128xf32>, i32 -> vector<8x128xf32>
    %c127_i32_214 = arith.constant 127 : i32
    %407 = vector.broadcast %c127_i32_214 : i32 to vector<8x128xi32>
    %408 = arith.cmpi slt, %16, %407 : vector<8x128xi32>
    %cst_215 = arith.constant 0.000000e+00 : f32
    %409 = vector.broadcast %cst_215 : f32 to vector<8x128xf32>
    %410 = arith.select %408, %406, %409 : vector<8x128xi1>, vector<8x128xf32>
    %c126_i32_216 = arith.constant 126 : i32
    %411 = tpu.dynamic_rotate %390 by %c126_i32_216 dim 1 : vector<8x128xf32>, i32 -> vector<8x128xf32>
    %c126_i32_217 = arith.constant 126 : i32
    %412 = vector.broadcast %c126_i32_217 : i32 to vector<8x128xi32>
    %413 = arith.cmpi slt, %16, %412 : vector<8x128xi32>
    %cst_218 = arith.constant 0.000000e+00 : f32
    %414 = vector.broadcast %cst_218 : f32 to vector<8x128xf32>
    %415 = arith.select %413, %411, %414 : vector<8x128xi1>, vector<8x128xf32>
    %c125_i32_219 = arith.constant 125 : i32
    %416 = tpu.dynamic_rotate %390 by %c125_i32_219 dim 1 : vector<8x128xf32>, i32 -> vector<8x128xf32>
    %c125_i32_220 = arith.constant 125 : i32
    %417 = vector.broadcast %c125_i32_220 : i32 to vector<8x128xi32>
    %418 = arith.cmpi slt, %16, %417 : vector<8x128xi32>
    %cst_221 = arith.constant 0.000000e+00 : f32
    %419 = vector.broadcast %cst_221 : f32 to vector<8x128xf32>
    %420 = arith.select %418, %416, %419 : vector<8x128xi1>, vector<8x128xf32>
    %421 = tpu.concatenate %395, %400, %405, %390, %410, %415, %420, %17 in 0 : vector<8x128xf32>, vector<8x128xf32>, vector<8x128xf32>, vector<8x128xf32>, vector<8x128xf32>, vector<8x128xf32>, vector<8x128xf32>, vector<8x128xf32> -> vector<64x128xf32>
    %c4 = arith.constant 4 : index
    %c0_222 = arith.constant 0 : index
    %c0_223 = arith.constant 0 : index
    %422 = vector.load %arg6[%c4, %c0_222, %c0_223] : memref<7x16x64xbf16, #tpu.memory_space<vmem>>, vector<1x16x64xbf16>
    %423 = vector.shape_cast %422 : vector<1x16x64xbf16> to vector<16x64xbf16>
    %424 = arith.truncf %421 : vector<64x128xf32> to vector<64x128xbf16>
    %cst_224 = arith.constant dense<0.000000e+00> : vector<16x128xf32>
    %425 = tpu.matmul %423, %424, %cst_224 {dimension_numbers = #tpu.dot_dimension_numbers<[1], [0], [0], [1], [0, 0, 1, 1], [], []>} : vector<16x64xbf16>, vector<64x128xbf16>, vector<16x128xf32> -> vector<16x128xf32>
    %c4_225 = arith.constant 4 : index
    %c0_226 = arith.constant 0 : index
    %c0_227 = arith.constant 0 : index
    %426 = vector.load %arg7[%c4_225, %c0_226, %c0_227] : memref<7x16x1xf32, #tpu.memory_space<vmem>>, vector<1x16x1xf32>
    %427 = vector.shape_cast %426 : vector<1x16x1xf32> to vector<16x1xf32>
    %428 = vector.broadcast %427 : vector<16x1xf32> to vector<16x128xf32>
    %429 = arith.addf %425, %428 : vector<16x128xf32>
    %cst_228 = arith.constant 0.000000e+00 : f32
    %430 = vector.broadcast %cst_228 : f32 to vector<16x128xf32>
    %431 = arith.maximumf %429, %430 : vector<16x128xf32>
    %c4_229 = arith.constant 4 : index
    %c0_230 = arith.constant 0 : index
    %c0_231 = arith.constant 0 : index
    %432 = vector.load %arg8[%c4_229, %c0_230, %c0_231] : memref<7x16x1xf32, #tpu.memory_space<vmem>>, vector<1x16x1xf32>
    %433 = vector.shape_cast %432 : vector<1x16x1xf32> to vector<16x1xf32>
    %434 = vector.broadcast %433 : vector<16x1xf32> to vector<16x128xf32>
    %435 = arith.mulf %431, %434 : vector<16x128xf32>
    %c4_232 = arith.constant 4 : index
    %c0_233 = arith.constant 0 : index
    %c0_234 = arith.constant 0 : index
    %436 = vector.load %arg9[%c4_232, %c0_233, %c0_234] : memref<7x16x1xf32, #tpu.memory_space<vmem>>, vector<1x16x1xf32>
    %437 = vector.shape_cast %436 : vector<1x16x1xf32> to vector<16x1xf32>
    %438 = vector.broadcast %437 : vector<16x1xf32> to vector<16x128xf32>
    %439 = arith.addf %435, %438 : vector<16x128xf32>
    %440 = vector.extract_strided_slice %439 {offsets = [0, 0], sizes = [8, 128], strides = [1, 1]} : vector<16x128xf32> to vector<8x128xf32>
    %441 = vector.extract_strided_slice %439 {offsets = [8, 0], sizes = [8, 128], strides = [1, 1]} : vector<16x128xf32> to vector<8x128xf32>
    %442 = arith.addf %440, %441 : vector<8x128xf32>
    %cst_235 = arith.constant dense<0.000000e+00> : vector<8xf32>
    %443 = vector.multi_reduction <add>, %442, %cst_235 [1] : vector<8x128xf32> to vector<8xf32>
    %444 = vector.shape_cast %443 : vector<8xf32> to vector<8x1xf32>
    %cst_236 = arith.constant 1.280000e+02 : f32
    %445 = vector.broadcast %cst_236 : f32 to vector<8x1xf32>
    %446 = arith.divf %444, %445 : vector<8x1xf32>
    %447 = vector.shape_cast %446 : vector<8x1xf32> to vector<8x1xf32>
    %448 = vector.broadcast %447 : vector<8x1xf32> to vector<8x128xf32>
    %c4_237 = arith.constant 4 : index
    %c0_238 = arith.constant 0 : index
    %c0_239 = arith.constant 0 : index
    %449 = vector.load %arg10[%c4_237, %c0_238, %c0_239] : memref<7x16x8xbf16, #tpu.memory_space<vmem>>, vector<1x16x8xbf16>
    %450 = vector.shape_cast %449 : vector<1x16x8xbf16> to vector<16x8xbf16>
    %451 = arith.truncf %448 : vector<8x128xf32> to vector<8x128xbf16>
    %cst_240 = arith.constant dense<0.000000e+00> : vector<16x128xf32>
    %452 = tpu.matmul %450, %451, %cst_240 {dimension_numbers = #tpu.dot_dimension_numbers<[1], [0], [0], [1], [0, 0, 1, 1], [], []>} : vector<16x8xbf16>, vector<8x128xbf16>, vector<16x128xf32> -> vector<16x128xf32>
    %c4_241 = arith.constant 4 : index
    %c0_242 = arith.constant 0 : index
    %c0_243 = arith.constant 0 : index
    %453 = vector.load %arg11[%c4_241, %c0_242, %c0_243] : memref<7x16x1xf32, #tpu.memory_space<vmem>>, vector<1x16x1xf32>
    %454 = vector.shape_cast %453 : vector<1x16x1xf32> to vector<16x1xf32>
    %455 = vector.broadcast %454 : vector<16x1xf32> to vector<16x128xf32>
    %456 = arith.addf %452, %455 : vector<16x128xf32>
    %cst_244 = arith.constant 0.000000e+00 : f32
    %457 = vector.broadcast %cst_244 : f32 to vector<16x128xf32>
    %458 = arith.maximumf %456, %457 : vector<16x128xf32>
    %c4_245 = arith.constant 4 : index
    %c0_246 = arith.constant 0 : index
    %c0_247 = arith.constant 0 : index
    %459 = vector.load %arg12[%c4_245, %c0_246, %c0_247] : memref<7x16x16xbf16, #tpu.memory_space<vmem>>, vector<1x16x16xbf16>
    %460 = vector.shape_cast %459 : vector<1x16x16xbf16> to vector<16x16xbf16>
    %461 = arith.truncf %458 : vector<16x128xf32> to vector<16x128xbf16>
    %cst_248 = arith.constant dense<0.000000e+00> : vector<16x128xf32>
    %462 = tpu.matmul %460, %461, %cst_248 {dimension_numbers = #tpu.dot_dimension_numbers<[1], [0], [0], [1], [0, 0, 1, 1], [], []>} : vector<16x16xbf16>, vector<16x128xbf16>, vector<16x128xf32> -> vector<16x128xf32>
    %c4_249 = arith.constant 4 : index
    %c0_250 = arith.constant 0 : index
    %c0_251 = arith.constant 0 : index
    %463 = vector.load %arg13[%c4_249, %c0_250, %c0_251] : memref<7x16x1xf32, #tpu.memory_space<vmem>>, vector<1x16x1xf32>
    %464 = vector.shape_cast %463 : vector<1x16x1xf32> to vector<16x1xf32>
    %465 = vector.broadcast %464 : vector<16x1xf32> to vector<16x128xf32>
    %466 = arith.addf %462, %465 : vector<16x128xf32>
    %467 = vector.extract_strided_slice %466 {offsets = [0, 0], sizes = [8, 128], strides = [1, 1]} : vector<16x128xf32> to vector<8x128xf32>
    %468 = vector.extract_strided_slice %466 {offsets = [8, 0], sizes = [8, 128], strides = [1, 1]} : vector<16x128xf32> to vector<8x128xf32>
    %469 = arith.maximumf %467, %468 : vector<8x128xf32>
    %470 = arith.subf %467, %469 : vector<8x128xf32>
    %471 = math.exp %470 : vector<8x128xf32>
    %472 = arith.subf %468, %469 : vector<8x128xf32>
    %473 = math.exp %472 : vector<8x128xf32>
    %474 = arith.addf %471, %473 : vector<8x128xf32>
    %475 = tpu.reciprocal %474 {approx = true} : vector<8x128xf32> -> vector<8x128xf32>
    %476 = arith.mulf %471, %475 : vector<8x128xf32>
    %477 = arith.mulf %476, %440 : vector<8x128xf32>
    %478 = arith.mulf %473, %475 : vector<8x128xf32>
    %479 = arith.mulf %478, %441 : vector<8x128xf32>
    %480 = arith.addf %477, %479 : vector<8x128xf32>
    %c32 = arith.constant 32 : index
    %c0_252 = arith.constant 0 : index
    %481 = vector.load %arg25[%c32, %c0_252] : memref<64x128xf32, #tpu.memory_space<vmem>>, vector<8x128xf32>
    tpu.vector_store %arg25[%c32, %c0_252], %480 {strides = array<i32>} : memref<64x128xf32, #tpu.memory_space<vmem>>, vector<8x128xf32>,
    %482 = vector.extract_strided_slice %15 {offsets = [40, 0], sizes = [8, 128], strides = [1, 1]} : vector<64x128xf32> to vector<8x128xf32>
    %483 = arith.addf %480, %482 : vector<8x128xf32>
    %c3_i32_253 = arith.constant 3 : i32
    %484 = tpu.dynamic_rotate %483 by %c3_i32_253 dim 1 : vector<8x128xf32>, i32 -> vector<8x128xf32>
    %c3_i32_254 = arith.constant 3 : i32
    %485 = vector.broadcast %c3_i32_254 : i32 to vector<8x128xi32>
    %486 = arith.cmpi sge, %16, %485 : vector<8x128xi32>
    %cst_255 = arith.constant 0.000000e+00 : f32
    %487 = vector.broadcast %cst_255 : f32 to vector<8x128xf32>
    %488 = arith.select %486, %484, %487 : vector<8x128xi1>, vector<8x128xf32>
    %c2_i32_256 = arith.constant 2 : i32
    %489 = tpu.dynamic_rotate %483 by %c2_i32_256 dim 1 : vector<8x128xf32>, i32 -> vector<8x128xf32>
    %c2_i32_257 = arith.constant 2 : i32
    %490 = vector.broadcast %c2_i32_257 : i32 to vector<8x128xi32>
    %491 = arith.cmpi sge, %16, %490 : vector<8x128xi32>
    %cst_258 = arith.constant 0.000000e+00 : f32
    %492 = vector.broadcast %cst_258 : f32 to vector<8x128xf32>
    %493 = arith.select %491, %489, %492 : vector<8x128xi1>, vector<8x128xf32>
    %c1_i32_259 = arith.constant 1 : i32
    %494 = tpu.dynamic_rotate %483 by %c1_i32_259 dim 1 : vector<8x128xf32>, i32 -> vector<8x128xf32>
    %c1_i32_260 = arith.constant 1 : i32
    %495 = vector.broadcast %c1_i32_260 : i32 to vector<8x128xi32>
    %496 = arith.cmpi sge, %16, %495 : vector<8x128xi32>
    %cst_261 = arith.constant 0.000000e+00 : f32
    %497 = vector.broadcast %cst_261 : f32 to vector<8x128xf32>
    %498 = arith.select %496, %494, %497 : vector<8x128xi1>, vector<8x128xf32>
    %c127_i32_262 = arith.constant 127 : i32
    %499 = tpu.dynamic_rotate %483 by %c127_i32_262 dim 1 : vector<8x128xf32>, i32 -> vector<8x128xf32>
    %c127_i32_263 = arith.constant 127 : i32
    %500 = vector.broadcast %c127_i32_263 : i32 to vector<8x128xi32>
    %501 = arith.cmpi slt, %16, %500 : vector<8x128xi32>
    %cst_264 = arith.constant 0.000000e+00 : f32
    %502 = vector.broadcast %cst_264 : f32 to vector<8x128xf32>
    %503 = arith.select %501, %499, %502 : vector<8x128xi1>, vector<8x128xf32>
    %c126_i32_265 = arith.constant 126 : i32
    %504 = tpu.dynamic_rotate %483 by %c126_i32_265 dim 1 : vector<8x128xf32>, i32 -> vector<8x128xf32>
    %c126_i32_266 = arith.constant 126 : i32
    %505 = vector.broadcast %c126_i32_266 : i32 to vector<8x128xi32>
    %506 = arith.cmpi slt, %16, %505 : vector<8x128xi32>
    %cst_267 = arith.constant 0.000000e+00 : f32
    %507 = vector.broadcast %cst_267 : f32 to vector<8x128xf32>
    %508 = arith.select %506, %504, %507 : vector<8x128xi1>, vector<8x128xf32>
    %c125_i32_268 = arith.constant 125 : i32
    %509 = tpu.dynamic_rotate %483 by %c125_i32_268 dim 1 : vector<8x128xf32>, i32 -> vector<8x128xf32>
    %c125_i32_269 = arith.constant 125 : i32
    %510 = vector.broadcast %c125_i32_269 : i32 to vector<8x128xi32>
    %511 = arith.cmpi slt, %16, %510 : vector<8x128xi32>
    %cst_270 = arith.constant 0.000000e+00 : f32
    %512 = vector.broadcast %cst_270 : f32 to vector<8x128xf32>
    %513 = arith.select %511, %509, %512 : vector<8x128xi1>, vector<8x128xf32>
    %514 = tpu.concatenate %488, %493, %498, %483, %503, %508, %513, %17 in 0 : vector<8x128xf32>, vector<8x128xf32>, vector<8x128xf32>, vector<8x128xf32>, vector<8x128xf32>, vector<8x128xf32>, vector<8x128xf32>, vector<8x128xf32> -> vector<64x128xf32>
    %c5 = arith.constant 5 : index
    %c0_271 = arith.constant 0 : index
    %c0_272 = arith.constant 0 : index
    %515 = vector.load %arg6[%c5, %c0_271, %c0_272] : memref<7x16x64xbf16, #tpu.memory_space<vmem>>, vector<1x16x64xbf16>
    %516 = vector.shape_cast %515 : vector<1x16x64xbf16> to vector<16x64xbf16>
    %517 = arith.truncf %514 : vector<64x128xf32> to vector<64x128xbf16>
    %cst_273 = arith.constant dense<0.000000e+00> : vector<16x128xf32>
    %518 = tpu.matmul %516, %517, %cst_273 {dimension_numbers = #tpu.dot_dimension_numbers<[1], [0], [0], [1], [0, 0, 1, 1], [], []>} : vector<16x64xbf16>, vector<64x128xbf16>, vector<16x128xf32> -> vector<16x128xf32>
    %c5_274 = arith.constant 5 : index
    %c0_275 = arith.constant 0 : index
    %c0_276 = arith.constant 0 : index
    %519 = vector.load %arg7[%c5_274, %c0_275, %c0_276] : memref<7x16x1xf32, #tpu.memory_space<vmem>>, vector<1x16x1xf32>
    %520 = vector.shape_cast %519 : vector<1x16x1xf32> to vector<16x1xf32>
    %521 = vector.broadcast %520 : vector<16x1xf32> to vector<16x128xf32>
    %522 = arith.addf %518, %521 : vector<16x128xf32>
    %cst_277 = arith.constant 0.000000e+00 : f32
    %523 = vector.broadcast %cst_277 : f32 to vector<16x128xf32>
    %524 = arith.maximumf %522, %523 : vector<16x128xf32>
    %c5_278 = arith.constant 5 : index
    %c0_279 = arith.constant 0 : index
    %c0_280 = arith.constant 0 : index
    %525 = vector.load %arg8[%c5_278, %c0_279, %c0_280] : memref<7x16x1xf32, #tpu.memory_space<vmem>>, vector<1x16x1xf32>
    %526 = vector.shape_cast %525 : vector<1x16x1xf32> to vector<16x1xf32>
    %527 = vector.broadcast %526 : vector<16x1xf32> to vector<16x128xf32>
    %528 = arith.mulf %524, %527 : vector<16x128xf32>
    %c5_281 = arith.constant 5 : index
    %c0_282 = arith.constant 0 : index
    %c0_283 = arith.constant 0 : index
    %529 = vector.load %arg9[%c5_281, %c0_282, %c0_283] : memref<7x16x1xf32, #tpu.memory_space<vmem>>, vector<1x16x1xf32>
    %530 = vector.shape_cast %529 : vector<1x16x1xf32> to vector<16x1xf32>
    %531 = vector.broadcast %530 : vector<16x1xf32> to vector<16x128xf32>
    %532 = arith.addf %528, %531 : vector<16x128xf32>
    %533 = vector.extract_strided_slice %532 {offsets = [0, 0], sizes = [8, 128], strides = [1, 1]} : vector<16x128xf32> to vector<8x128xf32>
    %534 = vector.extract_strided_slice %532 {offsets = [8, 0], sizes = [8, 128], strides = [1, 1]} : vector<16x128xf32> to vector<8x128xf32>
    %535 = arith.addf %533, %534 : vector<8x128xf32>
    %cst_284 = arith.constant dense<0.000000e+00> : vector<8xf32>
    %536 = vector.multi_reduction <add>, %535, %cst_284 [1] : vector<8x128xf32> to vector<8xf32>
    %537 = vector.shape_cast %536 : vector<8xf32> to vector<8x1xf32>
    %cst_285 = arith.constant 1.280000e+02 : f32
    %538 = vector.broadcast %cst_285 : f32 to vector<8x1xf32>
    %539 = arith.divf %537, %538 : vector<8x1xf32>
    %540 = vector.shape_cast %539 : vector<8x1xf32> to vector<8x1xf32>
    %541 = vector.broadcast %540 : vector<8x1xf32> to vector<8x128xf32>
    %c5_286 = arith.constant 5 : index
    %c0_287 = arith.constant 0 : index
    %c0_288 = arith.constant 0 : index
    %542 = vector.load %arg10[%c5_286, %c0_287, %c0_288] : memref<7x16x8xbf16, #tpu.memory_space<vmem>>, vector<1x16x8xbf16>
    %543 = vector.shape_cast %542 : vector<1x16x8xbf16> to vector<16x8xbf16>
    %544 = arith.truncf %541 : vector<8x128xf32> to vector<8x128xbf16>
    %cst_289 = arith.constant dense<0.000000e+00> : vector<16x128xf32>
    %545 = tpu.matmul %543, %544, %cst_289 {dimension_numbers = #tpu.dot_dimension_numbers<[1], [0], [0], [1], [0, 0, 1, 1], [], []>} : vector<16x8xbf16>, vector<8x128xbf16>, vector<16x128xf32> -> vector<16x128xf32>
    %c5_290 = arith.constant 5 : index
    %c0_291 = arith.constant 0 : index
    %c0_292 = arith.constant 0 : index
    %546 = vector.load %arg11[%c5_290, %c0_291, %c0_292] : memref<7x16x1xf32, #tpu.memory_space<vmem>>, vector<1x16x1xf32>
    %547 = vector.shape_cast %546 : vector<1x16x1xf32> to vector<16x1xf32>
    %548 = vector.broadcast %547 : vector<16x1xf32> to vector<16x128xf32>
    %549 = arith.addf %545, %548 : vector<16x128xf32>
    %cst_293 = arith.constant 0.000000e+00 : f32
    %550 = vector.broadcast %cst_293 : f32 to vector<16x128xf32>
    %551 = arith.maximumf %549, %550 : vector<16x128xf32>
    %c5_294 = arith.constant 5 : index
    %c0_295 = arith.constant 0 : index
    %c0_296 = arith.constant 0 : index
    %552 = vector.load %arg12[%c5_294, %c0_295, %c0_296] : memref<7x16x16xbf16, #tpu.memory_space<vmem>>, vector<1x16x16xbf16>
    %553 = vector.shape_cast %552 : vector<1x16x16xbf16> to vector<16x16xbf16>
    %554 = arith.truncf %551 : vector<16x128xf32> to vector<16x128xbf16>
    %cst_297 = arith.constant dense<0.000000e+00> : vector<16x128xf32>
    %555 = tpu.matmul %553, %554, %cst_297 {dimension_numbers = #tpu.dot_dimension_numbers<[1], [0], [0], [1], [0, 0, 1, 1], [], []>} : vector<16x16xbf16>, vector<16x128xbf16>, vector<16x128xf32> -> vector<16x128xf32>
    %c5_298 = arith.constant 5 : index
    %c0_299 = arith.constant 0 : index
    %c0_300 = arith.constant 0 : index
    %556 = vector.load %arg13[%c5_298, %c0_299, %c0_300] : memref<7x16x1xf32, #tpu.memory_space<vmem>>, vector<1x16x1xf32>
    %557 = vector.shape_cast %556 : vector<1x16x1xf32> to vector<16x1xf32>
    %558 = vector.broadcast %557 : vector<16x1xf32> to vector<16x128xf32>
    %559 = arith.addf %555, %558 : vector<16x128xf32>
    %560 = vector.extract_strided_slice %559 {offsets = [0, 0], sizes = [8, 128], strides = [1, 1]} : vector<16x128xf32> to vector<8x128xf32>
    %561 = vector.extract_strided_slice %559 {offsets = [8, 0], sizes = [8, 128], strides = [1, 1]} : vector<16x128xf32> to vector<8x128xf32>
    %562 = arith.maximumf %560, %561 : vector<8x128xf32>
    %563 = arith.subf %560, %562 : vector<8x128xf32>
    %564 = math.exp %563 : vector<8x128xf32>
    %565 = arith.subf %561, %562 : vector<8x128xf32>
    %566 = math.exp %565 : vector<8x128xf32>
    %567 = arith.addf %564, %566 : vector<8x128xf32>
    %568 = tpu.reciprocal %567 {approx = true} : vector<8x128xf32> -> vector<8x128xf32>
    %569 = arith.mulf %564, %568 : vector<8x128xf32>
    %570 = arith.mulf %569, %533 : vector<8x128xf32>
    %571 = arith.mulf %566, %568 : vector<8x128xf32>
    %572 = arith.mulf %571, %534 : vector<8x128xf32>
    %573 = arith.addf %570, %572 : vector<8x128xf32>
    %c40 = arith.constant 40 : index
    %c0_301 = arith.constant 0 : index
    %574 = vector.load %arg25[%c40, %c0_301] : memref<64x128xf32, #tpu.memory_space<vmem>>, vector<8x128xf32>
    tpu.vector_store %arg25[%c40, %c0_301], %573 {strides = array<i32>} : memref<64x128xf32, #tpu.memory_space<vmem>>, vector<8x128xf32>,
    %575 = vector.extract_strided_slice %15 {offsets = [48, 0], sizes = [8, 128], strides = [1, 1]} : vector<64x128xf32> to vector<8x128xf32>
    %576 = arith.addf %573, %575 : vector<8x128xf32>
    %c3_i32_302 = arith.constant 3 : i32
    %577 = tpu.dynamic_rotate %576 by %c3_i32_302 dim 1 : vector<8x128xf32>, i32 -> vector<8x128xf32>
    %c3_i32_303 = arith.constant 3 : i32
    %578 = vector.broadcast %c3_i32_303 : i32 to vector<8x128xi32>
    %579 = arith.cmpi sge, %16, %578 : vector<8x128xi32>
    %cst_304 = arith.constant 0.000000e+00 : f32
    %580 = vector.broadcast %cst_304 : f32 to vector<8x128xf32>
    %581 = arith.select %579, %577, %580 : vector<8x128xi1>, vector<8x128xf32>
    %c2_i32_305 = arith.constant 2 : i32
    %582 = tpu.dynamic_rotate %576 by %c2_i32_305 dim 1 : vector<8x128xf32>, i32 -> vector<8x128xf32>
    %c2_i32_306 = arith.constant 2 : i32
    %583 = vector.broadcast %c2_i32_306 : i32 to vector<8x128xi32>
    %584 = arith.cmpi sge, %16, %583 : vector<8x128xi32>
    %cst_307 = arith.constant 0.000000e+00 : f32
    %585 = vector.broadcast %cst_307 : f32 to vector<8x128xf32>
    %586 = arith.select %584, %582, %585 : vector<8x128xi1>, vector<8x128xf32>
    %c1_i32_308 = arith.constant 1 : i32
    %587 = tpu.dynamic_rotate %576 by %c1_i32_308 dim 1 : vector<8x128xf32>, i32 -> vector<8x128xf32>
    %c1_i32_309 = arith.constant 1 : i32
    %588 = vector.broadcast %c1_i32_309 : i32 to vector<8x128xi32>
    %589 = arith.cmpi sge, %16, %588 : vector<8x128xi32>
    %cst_310 = arith.constant 0.000000e+00 : f32
    %590 = vector.broadcast %cst_310 : f32 to vector<8x128xf32>
    %591 = arith.select %589, %587, %590 : vector<8x128xi1>, vector<8x128xf32>
    %c127_i32_311 = arith.constant 127 : i32
    %592 = tpu.dynamic_rotate %576 by %c127_i32_311 dim 1 : vector<8x128xf32>, i32 -> vector<8x128xf32>
    %c127_i32_312 = arith.constant 127 : i32
    %593 = vector.broadcast %c127_i32_312 : i32 to vector<8x128xi32>
    %594 = arith.cmpi slt, %16, %593 : vector<8x128xi32>
    %cst_313 = arith.constant 0.000000e+00 : f32
    %595 = vector.broadcast %cst_313 : f32 to vector<8x128xf32>
    %596 = arith.select %594, %592, %595 : vector<8x128xi1>, vector<8x128xf32>
    %c126_i32_314 = arith.constant 126 : i32
    %597 = tpu.dynamic_rotate %576 by %c126_i32_314 dim 1 : vector<8x128xf32>, i32 -> vector<8x128xf32>
    %c126_i32_315 = arith.constant 126 : i32
    %598 = vector.broadcast %c126_i32_315 : i32 to vector<8x128xi32>
    %599 = arith.cmpi slt, %16, %598 : vector<8x128xi32>
    %cst_316 = arith.constant 0.000000e+00 : f32
    %600 = vector.broadcast %cst_316 : f32 to vector<8x128xf32>
    %601 = arith.select %599, %597, %600 : vector<8x128xi1>, vector<8x128xf32>
    %c125_i32_317 = arith.constant 125 : i32
    %602 = tpu.dynamic_rotate %576 by %c125_i32_317 dim 1 : vector<8x128xf32>, i32 -> vector<8x128xf32>
    %c125_i32_318 = arith.constant 125 : i32
    %603 = vector.broadcast %c125_i32_318 : i32 to vector<8x128xi32>
    %604 = arith.cmpi slt, %16, %603 : vector<8x128xi32>
    %cst_319 = arith.constant 0.000000e+00 : f32
    %605 = vector.broadcast %cst_319 : f32 to vector<8x128xf32>
    %606 = arith.select %604, %602, %605 : vector<8x128xi1>, vector<8x128xf32>
    %607 = tpu.concatenate %581, %586, %591, %576, %596, %601, %606, %17 in 0 : vector<8x128xf32>, vector<8x128xf32>, vector<8x128xf32>, vector<8x128xf32>, vector<8x128xf32>, vector<8x128xf32>, vector<8x128xf32>, vector<8x128xf32> -> vector<64x128xf32>
    %c6 = arith.constant 6 : index
    %c0_320 = arith.constant 0 : index
    %c0_321 = arith.constant 0 : index
    %608 = vector.load %arg6[%c6, %c0_320, %c0_321] : memref<7x16x64xbf16, #tpu.memory_space<vmem>>, vector<1x16x64xbf16>
    %609 = vector.shape_cast %608 : vector<1x16x64xbf16> to vector<16x64xbf16>
    %610 = arith.truncf %607 : vector<64x128xf32> to vector<64x128xbf16>
    %cst_322 = arith.constant dense<0.000000e+00> : vector<16x128xf32>
    %611 = tpu.matmul %609, %610, %cst_322 {dimension_numbers = #tpu.dot_dimension_numbers<[1], [0], [0], [1], [0, 0, 1, 1], [], []>} : vector<16x64xbf16>, vector<64x128xbf16>, vector<16x128xf32> -> vector<16x128xf32>
    %c6_323 = arith.constant 6 : index
    %c0_324 = arith.constant 0 : index
    %c0_325 = arith.constant 0 : index
    %612 = vector.load %arg7[%c6_323, %c0_324, %c0_325] : memref<7x16x1xf32, #tpu.memory_space<vmem>>, vector<1x16x1xf32>
    %613 = vector.shape_cast %612 : vector<1x16x1xf32> to vector<16x1xf32>
    %614 = vector.broadcast %613 : vector<16x1xf32> to vector<16x128xf32>
    %615 = arith.addf %611, %614 : vector<16x128xf32>
    %cst_326 = arith.constant 0.000000e+00 : f32
    %616 = vector.broadcast %cst_326 : f32 to vector<16x128xf32>
    %617 = arith.maximumf %615, %616 : vector<16x128xf32>
    %c6_327 = arith.constant 6 : index
    %c0_328 = arith.constant 0 : index
    %c0_329 = arith.constant 0 : index
    %618 = vector.load %arg8[%c6_327, %c0_328, %c0_329] : memref<7x16x1xf32, #tpu.memory_space<vmem>>, vector<1x16x1xf32>
    %619 = vector.shape_cast %618 : vector<1x16x1xf32> to vector<16x1xf32>
    %620 = vector.broadcast %619 : vector<16x1xf32> to vector<16x128xf32>
    %621 = arith.mulf %617, %620 : vector<16x128xf32>
    %c6_330 = arith.constant 6 : index
    %c0_331 = arith.constant 0 : index
    %c0_332 = arith.constant 0 : index
    %622 = vector.load %arg9[%c6_330, %c0_331, %c0_332] : memref<7x16x1xf32, #tpu.memory_space<vmem>>, vector<1x16x1xf32>
    %623 = vector.shape_cast %622 : vector<1x16x1xf32> to vector<16x1xf32>
    %624 = vector.broadcast %623 : vector<16x1xf32> to vector<16x128xf32>
    %625 = arith.addf %621, %624 : vector<16x128xf32>
    %626 = vector.extract_strided_slice %625 {offsets = [0, 0], sizes = [8, 128], strides = [1, 1]} : vector<16x128xf32> to vector<8x128xf32>
    %627 = vector.extract_strided_slice %625 {offsets = [8, 0], sizes = [8, 128], strides = [1, 1]} : vector<16x128xf32> to vector<8x128xf32>
    %628 = arith.addf %626, %627 : vector<8x128xf32>
    %cst_333 = arith.constant dense<0.000000e+00> : vector<8xf32>
    %629 = vector.multi_reduction <add>, %628, %cst_333 [1] : vector<8x128xf32> to vector<8xf32>
    %630 = vector.shape_cast %629 : vector<8xf32> to vector<8x1xf32>
    %cst_334 = arith.constant 1.280000e+02 : f32
    %631 = vector.broadcast %cst_334 : f32 to vector<8x1xf32>
    %632 = arith.divf %630, %631 : vector<8x1xf32>
    %633 = vector.shape_cast %632 : vector<8x1xf32> to vector<8x1xf32>
    %634 = vector.broadcast %633 : vector<8x1xf32> to vector<8x128xf32>
    %c6_335 = arith.constant 6 : index
    %c0_336 = arith.constant 0 : index
    %c0_337 = arith.constant 0 : index
    %635 = vector.load %arg10[%c6_335, %c0_336, %c0_337] : memref<7x16x8xbf16, #tpu.memory_space<vmem>>, vector<1x16x8xbf16>
    %636 = vector.shape_cast %635 : vector<1x16x8xbf16> to vector<16x8xbf16>
    %637 = arith.truncf %634 : vector<8x128xf32> to vector<8x128xbf16>
    %cst_338 = arith.constant dense<0.000000e+00> : vector<16x128xf32>
    %638 = tpu.matmul %636, %637, %cst_338 {dimension_numbers = #tpu.dot_dimension_numbers<[1], [0], [0], [1], [0, 0, 1, 1], [], []>} : vector<16x8xbf16>, vector<8x128xbf16>, vector<16x128xf32> -> vector<16x128xf32>
    %c6_339 = arith.constant 6 : index
    %c0_340 = arith.constant 0 : index
    %c0_341 = arith.constant 0 : index
    %639 = vector.load %arg11[%c6_339, %c0_340, %c0_341] : memref<7x16x1xf32, #tpu.memory_space<vmem>>, vector<1x16x1xf32>
    %640 = vector.shape_cast %639 : vector<1x16x1xf32> to vector<16x1xf32>
    %641 = vector.broadcast %640 : vector<16x1xf32> to vector<16x128xf32>
    %642 = arith.addf %638, %641 : vector<16x128xf32>
    %cst_342 = arith.constant 0.000000e+00 : f32
    %643 = vector.broadcast %cst_342 : f32 to vector<16x128xf32>
    %644 = arith.maximumf %642, %643 : vector<16x128xf32>
    %c6_343 = arith.constant 6 : index
    %c0_344 = arith.constant 0 : index
    %c0_345 = arith.constant 0 : index
    %645 = vector.load %arg12[%c6_343, %c0_344, %c0_345] : memref<7x16x16xbf16, #tpu.memory_space<vmem>>, vector<1x16x16xbf16>
    %646 = vector.shape_cast %645 : vector<1x16x16xbf16> to vector<16x16xbf16>
    %647 = arith.truncf %644 : vector<16x128xf32> to vector<16x128xbf16>
    %cst_346 = arith.constant dense<0.000000e+00> : vector<16x128xf32>
    %648 = tpu.matmul %646, %647, %cst_346 {dimension_numbers = #tpu.dot_dimension_numbers<[1], [0], [0], [1], [0, 0, 1, 1], [], []>} : vector<16x16xbf16>, vector<16x128xbf16>, vector<16x128xf32> -> vector<16x128xf32>
    %c6_347 = arith.constant 6 : index
    %c0_348 = arith.constant 0 : index
    %c0_349 = arith.constant 0 : index
    %649 = vector.load %arg13[%c6_347, %c0_348, %c0_349] : memref<7x16x1xf32, #tpu.memory_space<vmem>>, vector<1x16x1xf32>
    %650 = vector.shape_cast %649 : vector<1x16x1xf32> to vector<16x1xf32>
    %651 = vector.broadcast %650 : vector<16x1xf32> to vector<16x128xf32>
    %652 = arith.addf %648, %651 : vector<16x128xf32>
    %653 = vector.extract_strided_slice %652 {offsets = [0, 0], sizes = [8, 128], strides = [1, 1]} : vector<16x128xf32> to vector<8x128xf32>
    %654 = vector.extract_strided_slice %652 {offsets = [8, 0], sizes = [8, 128], strides = [1, 1]} : vector<16x128xf32> to vector<8x128xf32>
    %655 = arith.maximumf %653, %654 : vector<8x128xf32>
    %656 = arith.subf %653, %655 : vector<8x128xf32>
    %657 = math.exp %656 : vector<8x128xf32>
    %658 = arith.subf %654, %655 : vector<8x128xf32>
    %659 = math.exp %658 : vector<8x128xf32>
    %660 = arith.addf %657, %659 : vector<8x128xf32>
    %661 = tpu.reciprocal %660 {approx = true} : vector<8x128xf32> -> vector<8x128xf32>
    %662 = arith.mulf %657, %661 : vector<8x128xf32>
    %663 = arith.mulf %662, %626 : vector<8x128xf32>
    %664 = arith.mulf %659, %661 : vector<8x128xf32>
    %665 = arith.mulf %664, %627 : vector<8x128xf32>
    %666 = arith.addf %663, %665 : vector<8x128xf32>
    %c48 = arith.constant 48 : index
    %c0_350 = arith.constant 0 : index
    %667 = vector.load %arg25[%c48, %c0_350] : memref<64x128xf32, #tpu.memory_space<vmem>>, vector<8x128xf32>
    tpu.vector_store %arg25[%c48, %c0_350], %666 {strides = array<i32>} : memref<64x128xf32, #tpu.memory_space<vmem>>, vector<8x128xf32>,
    %668 = vector.extract_strided_slice %15 {offsets = [56, 0], sizes = [8, 128], strides = [1, 1]} : vector<64x128xf32> to vector<8x128xf32>
    %c56 = arith.constant 56 : index
    %c0_351 = arith.constant 0 : index
    %669 = vector.load %arg25[%c56, %c0_351] : memref<64x128xf32, #tpu.memory_space<vmem>>, vector<8x128xf32>
    tpu.vector_store %arg25[%c56, %c0_351], %668 {strides = array<i32>} : memref<64x128xf32, #tpu.memory_space<vmem>>, vector<8x128xf32>,
    %c0_352 = arith.constant 0 : index
    %c0_353 = arith.constant 0 : index
    %670 = vector.load %arg14[%c0_352, %c0_353] : memref<64x64xbf16, #tpu.memory_space<vmem>>, vector<64x64xbf16>
    %c0_354 = arith.constant 0 : index
    %c0_355 = arith.constant 0 : index
    %671 = vector.load %arg25[%c0_354, %c0_355] : memref<64x128xf32, #tpu.memory_space<vmem>>, vector<64x128xf32>
    %672 = arith.truncf %671 : vector<64x128xf32> to vector<64x128xbf16>
    %cst_356 = arith.constant dense<0.000000e+00> : vector<64x128xf32>
    %673 = tpu.matmul %670, %672, %cst_356 {dimension_numbers = #tpu.dot_dimension_numbers<[1], [0], [0], [1], [0, 0, 1, 1], [], []>} : vector<64x64xbf16>, vector<64x128xbf16>, vector<64x128xf32> -> vector<64x128xf32>
    %c0_357 = arith.constant 0 : index
    %c0_358 = arith.constant 0 : index
    %674 = vector.load %arg15[%c0_357, %c0_358] : memref<64x1xf32, #tpu.memory_space<vmem>>, vector<64x1xf32>
    %675 = vector.broadcast %674 : vector<64x1xf32> to vector<64x128xf32>
    %676 = arith.addf %673, %675 : vector<64x128xf32>
    %cst_359 = arith.constant 0.000000e+00 : f32
    %677 = vector.broadcast %cst_359 : f32 to vector<64x128xf32>
    %678 = arith.maximumf %676, %677 : vector<64x128xf32>
    %c0_360 = arith.constant 0 : index
    %c0_361 = arith.constant 0 : index
    %679 = vector.load %arg16[%c0_360, %c0_361] : memref<64x1xf32, #tpu.memory_space<vmem>>, vector<64x1xf32>
    %680 = vector.broadcast %679 : vector<64x1xf32> to vector<64x128xf32>
    %681 = arith.mulf %678, %680 : vector<64x128xf32>
    %c0_362 = arith.constant 0 : index
    %c0_363 = arith.constant 0 : index
    %682 = vector.load %arg17[%c0_362, %c0_363] : memref<64x1xf32, #tpu.memory_space<vmem>>, vector<64x1xf32>
    %683 = vector.broadcast %682 : vector<64x1xf32> to vector<64x128xf32>
    %684 = arith.addf %681, %683 : vector<64x128xf32>
    %cst_364 = arith.constant dense<0.000000e+00> : vector<64xf32>
    %685 = vector.multi_reduction <add>, %684, %cst_364 [1] : vector<64x128xf32> to vector<64xf32>
    %686 = vector.shape_cast %685 : vector<64xf32> to vector<64x1xf32>
    %cst_365 = arith.constant 1.280000e+02 : f32
    %687 = vector.broadcast %cst_365 : f32 to vector<64x1xf32>
    %688 = arith.divf %686, %687 : vector<64x1xf32>
    %689 = vector.shape_cast %688 : vector<64x1xf32> to vector<64x1xf32>
    %690 = vector.broadcast %689 : vector<64x1xf32> to vector<64x128xf32>
    %c0_366 = arith.constant 0 : index
    %c0_367 = arith.constant 0 : index
    %691 = vector.load %arg18[%c0_366, %c0_367] : memref<128x64xbf16, #tpu.memory_space<vmem>>, vector<128x64xbf16>
    %692 = arith.truncf %690 : vector<64x128xf32> to vector<64x128xbf16>
    %cst_368 = arith.constant dense<0.000000e+00> : vector<128x128xf32>
    %693 = tpu.matmul %691, %692, %cst_368 {dimension_numbers = #tpu.dot_dimension_numbers<[1], [0], [0], [1], [0, 0, 1, 1], [], []>} : vector<128x64xbf16>, vector<64x128xbf16>, vector<128x128xf32> -> vector<128x128xf32>
    %c0_369 = arith.constant 0 : index
    %c0_370 = arith.constant 0 : index
    %694 = vector.load %arg19[%c0_369, %c0_370] : memref<128x1xf32, #tpu.memory_space<vmem>>, vector<128x1xf32>
    %695 = vector.broadcast %694 : vector<128x1xf32> to vector<128x128xf32>
    %696 = arith.addf %693, %695 : vector<128x128xf32>
    %cst_371 = arith.constant 0.000000e+00 : f32
    %697 = vector.broadcast %cst_371 : f32 to vector<128x128xf32>
    %698 = arith.maximumf %696, %697 : vector<128x128xf32>
    %c0_372 = arith.constant 0 : index
    %c0_373 = arith.constant 0 : index
    %699 = vector.load %arg20[%c0_372, %c0_373] : memref<128x1xf32, #tpu.memory_space<vmem>>, vector<128x1xf32>
    %700 = vector.broadcast %699 : vector<128x1xf32> to vector<128x128xf32>
    %701 = arith.mulf %698, %700 : vector<128x128xf32>
    %c0_374 = arith.constant 0 : index
    %c0_375 = arith.constant 0 : index
    %702 = vector.load %arg21[%c0_374, %c0_375] : memref<128x1xf32, #tpu.memory_space<vmem>>, vector<128x1xf32>
    %703 = vector.broadcast %702 : vector<128x1xf32> to vector<128x128xf32>
    %704 = arith.addf %701, %703 : vector<128x128xf32>
    %c0_376 = arith.constant 0 : index
    %c0_377 = arith.constant 0 : index
    %705 = vector.load %arg22[%c0_376, %c0_377] : memref<64x128xbf16, #tpu.memory_space<vmem>>, vector<64x128xbf16>
    %706 = arith.truncf %704 : vector<128x128xf32> to vector<128x128xbf16>
    %cst_378 = arith.constant dense<0.000000e+00> : vector<64x128xf32>
    %707 = tpu.matmul %705, %706, %cst_378 {dimension_numbers = #tpu.dot_dimension_numbers<[1], [0], [0], [1], [0, 0, 1, 1], [], []>} : vector<64x128xbf16>, vector<128x128xbf16>, vector<64x128xf32> -> vector<64x128xf32>
    %c0_379 = arith.constant 0 : index
    %c0_380 = arith.constant 0 : index
    %708 = vector.load %arg23[%c0_379, %c0_380] : memref<64x1xf32, #tpu.memory_space<vmem>>, vector<64x1xf32>
    %709 = vector.broadcast %708 : vector<64x1xf32> to vector<64x128xf32>
    %710 = arith.addf %707, %709 : vector<64x128xf32>
    %cst_381 = arith.constant 0.000000e+00 : f32
    %711 = vector.broadcast %cst_381 : f32 to vector<64x128xf32>
    %712 = arith.subf %711, %710 : vector<64x128xf32>
    %713 = math.exp %712 : vector<64x128xf32>
    %cst_382 = arith.constant 1.000000e+00 : f32
    %714 = vector.broadcast %cst_382 : f32 to vector<64x128xf32>
    %715 = arith.addf %714, %713 : vector<64x128xf32>
    %716 = tpu.reciprocal %715 {approx = true} : vector<64x128xf32> -> vector<64x128xf32>
    %717 = arith.mulf %684, %716 : vector<64x128xf32>
    %718 = arith.addf %717, %1 : vector<64x128xf32>
    %c0_383 = arith.constant 0 : index
    %c0_384 = arith.constant 0 : index
    %c0_385 = arith.constant 0 : index
    %719 = vector.load %arg24[%c0_383, %c0_384, %c0_385] : memref<1x64x128xf32, #tpu.memory_space<vmem>>, vector<1x64x128xf32>
    %720 = vector.shape_cast %719 : vector<1x64x128xf32> to vector<64x128xf32>
    %721 = vector.shape_cast %718 : vector<64x128xf32> to vector<1x64x128xf32>
    tpu.vector_store %arg24[%c0_383, %c0_384, %c0_385], %721 {strides = array<i32>} : memref<1x64x128xf32, #tpu.memory_space<vmem>>, vector<1x64x128xf32>,
    return
  }
  func.func @transform_0(%arg0: i32) -> (i32, i32, i32) {
    %c0_i32 = arith.constant 0 : i32
    %c0_i32_0 = arith.constant 0 : i32
    %c0_i32_1 = arith.constant 0 : i32
    return %arg0, %c0_i32, %c0_i32_0 : i32, i32, i32
  }
  func.func @transform_1(%arg0: i32) -> (i32, i32) {
    %c0_i32 = arith.constant 0 : i32
    %c0_i32_0 = arith.constant 0 : i32
    %c0_i32_1 = arith.constant 0 : i32
    return %c0_i32, %c0_i32_0 : i32, i32
  }
  func.func @transform_2(%arg0: i32) -> (i32, i32) {
    %c0_i32 = arith.constant 0 : i32
    %c0_i32_0 = arith.constant 0 : i32
    %c0_i32_1 = arith.constant 0 : i32
    return %c0_i32, %c0_i32_0 : i32, i32
  }
  func.func @transform_3(%arg0: i32) -> (i32, i32) {
    %c0_i32 = arith.constant 0 : i32
    %c0_i32_0 = arith.constant 0 : i32
    %c0_i32_1 = arith.constant 0 : i32
    return %c0_i32, %c0_i32_0 : i32, i32
  }
  func.func @transform_4(%arg0: i32) -> (i32, i32) {
    %c0_i32 = arith.constant 0 : i32
    %c0_i32_0 = arith.constant 0 : i32
    %c0_i32_1 = arith.constant 0 : i32
    return %c0_i32, %c0_i32_0 : i32, i32
  }
  func.func @transform_5(%arg0: i32) -> (i32, i32, i32) {
    %c0_i32 = arith.constant 0 : i32
    %c0_i32_0 = arith.constant 0 : i32
    %c0_i32_1 = arith.constant 0 : i32
    %c0_i32_2 = arith.constant 0 : i32
    return %c0_i32, %c0_i32_0, %c0_i32_1 : i32, i32, i32
  }
  func.func @transform_6(%arg0: i32) -> (i32, i32, i32) {
    %c0_i32 = arith.constant 0 : i32
    %c0_i32_0 = arith.constant 0 : i32
    %c0_i32_1 = arith.constant 0 : i32
    %c0_i32_2 = arith.constant 0 : i32
    return %c0_i32, %c0_i32_0, %c0_i32_1 : i32, i32, i32
  }
  func.func @transform_7(%arg0: i32) -> (i32, i32, i32) {
    %c0_i32 = arith.constant 0 : i32
    %c0_i32_0 = arith.constant 0 : i32
    %c0_i32_1 = arith.constant 0 : i32
    %c0_i32_2 = arith.constant 0 : i32
    return %c0_i32, %c0_i32_0, %c0_i32_1 : i32, i32, i32
  }
  func.func @transform_8(%arg0: i32) -> (i32, i32, i32) {
    %c0_i32 = arith.constant 0 : i32
    %c0_i32_0 = arith.constant 0 : i32
    %c0_i32_1 = arith.constant 0 : i32
    %c0_i32_2 = arith.constant 0 : i32
    return %c0_i32, %c0_i32_0, %c0_i32_1 : i32, i32, i32
  }
  func.func @transform_9(%arg0: i32) -> (i32, i32, i32) {
    %c0_i32 = arith.constant 0 : i32
    %c0_i32_0 = arith.constant 0 : i32
    %c0_i32_1 = arith.constant 0 : i32
    %c0_i32_2 = arith.constant 0 : i32
    return %c0_i32, %c0_i32_0, %c0_i32_1 : i32, i32, i32
  }
  func.func @transform_10(%arg0: i32) -> (i32, i32, i32) {
    %c0_i32 = arith.constant 0 : i32
    %c0_i32_0 = arith.constant 0 : i32
    %c0_i32_1 = arith.constant 0 : i32
    %c0_i32_2 = arith.constant 0 : i32
    return %c0_i32, %c0_i32_0, %c0_i32_1 : i32, i32, i32
  }
  func.func @transform_11(%arg0: i32) -> (i32, i32, i32) {
    %c0_i32 = arith.constant 0 : i32
    %c0_i32_0 = arith.constant 0 : i32
    %c0_i32_1 = arith.constant 0 : i32
    %c0_i32_2 = arith.constant 0 : i32
    return %c0_i32, %c0_i32_0, %c0_i32_1 : i32, i32, i32
  }
  func.func @transform_12(%arg0: i32) -> (i32, i32, i32) {
    %c0_i32 = arith.constant 0 : i32
    %c0_i32_0 = arith.constant 0 : i32
    %c0_i32_1 = arith.constant 0 : i32
    %c0_i32_2 = arith.constant 0 : i32
    return %c0_i32, %c0_i32_0, %c0_i32_1 : i32, i32, i32
  }
  func.func @transform_13(%arg0: i32) -> (i32, i32) {
    %c0_i32 = arith.constant 0 : i32
    %c0_i32_0 = arith.constant 0 : i32
    %c0_i32_1 = arith.constant 0 : i32
    return %c0_i32, %c0_i32_0 : i32, i32
  }
  func.func @transform_14(%arg0: i32) -> (i32, i32) {
    %c0_i32 = arith.constant 0 : i32
    %c0_i32_0 = arith.constant 0 : i32
    %c0_i32_1 = arith.constant 0 : i32
    return %c0_i32, %c0_i32_0 : i32, i32
  }
  func.func @transform_15(%arg0: i32) -> (i32, i32) {
    %c0_i32 = arith.constant 0 : i32
    %c0_i32_0 = arith.constant 0 : i32
    %c0_i32_1 = arith.constant 0 : i32
    return %c0_i32, %c0_i32_0 : i32, i32
  }
  func.func @transform_16(%arg0: i32) -> (i32, i32) {
    %c0_i32 = arith.constant 0 : i32
    %c0_i32_0 = arith.constant 0 : i32
    %c0_i32_1 = arith.constant 0 : i32
    return %c0_i32, %c0_i32_0 : i32, i32
  }
  func.func @transform_17(%arg0: i32) -> (i32, i32) {
    %c0_i32 = arith.constant 0 : i32
    %c0_i32_0 = arith.constant 0 : i32
    %c0_i32_1 = arith.constant 0 : i32
    return %c0_i32, %c0_i32_0 : i32, i32
  }
  func.func @transform_18(%arg0: i32) -> (i32, i32) {
    %c0_i32 = arith.constant 0 : i32
    %c0_i32_0 = arith.constant 0 : i32
    %c0_i32_1 = arith.constant 0 : i32
    return %c0_i32, %c0_i32_0 : i32, i32
  }
  func.func @transform_19(%arg0: i32) -> (i32, i32) {
    %c0_i32 = arith.constant 0 : i32
    %c0_i32_0 = arith.constant 0 : i32
    %c0_i32_1 = arith.constant 0 : i32
    return %c0_i32, %c0_i32_0 : i32, i32
  }
  func.func @transform_20(%arg0: i32) -> (i32, i32) {
    %c0_i32 = arith.constant 0 : i32
    %c0_i32_0 = arith.constant 0 : i32
    %c0_i32_1 = arith.constant 0 : i32
    return %c0_i32, %c0_i32_0 : i32, i32
  }
  func.func @transform_21(%arg0: i32) -> (i32, i32) {
    %c0_i32 = arith.constant 0 : i32
    %c0_i32_0 = arith.constant 0 : i32
    %c0_i32_1 = arith.constant 0 : i32
    return %c0_i32, %c0_i32_0 : i32, i32
  }
  func.func @transform_22(%arg0: i32) -> (i32, i32) {
    %c0_i32 = arith.constant 0 : i32
    %c0_i32_0 = arith.constant 0 : i32
    %c0_i32_1 = arith.constant 0 : i32
    return %c0_i32, %c0_i32_0 : i32, i32
  }
  func.func @transform_23(%arg0: i32) -> (i32, i32, i32) {
    %c0_i32 = arith.constant 0 : i32
    %c0_i32_0 = arith.constant 0 : i32
    %c0_i32_1 = arith.constant 0 : i32
    return %arg0, %c0_i32, %c0_i32_0 : i32, i32, i32
  }
}

</mosaic_0001>

<llo_original>
// kernel: tpu_custom_call.1
$region0: #{tpu_custom_call.1}
  #allocation0 [shape = 'u32[]', space=smem, size = 0x4, offset = 0x4, fixed_abs, tag = 'smem constant byte address 0x4 - core index']
  #allocation1 [shape = 'u32[144,128]{1,0:T(1,128)}', space=vmem, size = 0x12000, scoped, tag = 'internal scratch']
  #allocation2 [shape = 'f32[64,128]{1,0:T(8,128)}', space=vmem, size = 0x8000, scoped, tag = 'scratch operand']
  %s0 = inlined_call_operand.vmem [shape: f32[2,64,128], index: 0, kind: input, shape index: {}]
  %s1 = inlined_call_operand.vmem [shape: bf16[64,64], index: 1, kind: input, shape index: {}]
  %s2 = inlined_call_operand.vmem [shape: f32[64,1], index: 2, kind: input, shape index: {}]
  %s3 = inlined_call_operand.vmem [shape: f32[64,1], index: 3, kind: input, shape index: {}]
  %s4 = inlined_call_operand.vmem [shape: f32[64,1], index: 4, kind: input, shape index: {}]
  %s5 = inlined_call_operand.vmem [shape: bf16[7,16,64], index: 5, kind: input, shape index: {}]
  %s6 = inlined_call_operand.vmem [shape: f32[7,16,1], index: 6, kind: input, shape index: {}]
  %s7 = inlined_call_operand.vmem [shape: f32[7,16,1], index: 7, kind: input, shape index: {}]
  %s8 = inlined_call_operand.vmem [shape: f32[7,16,1], index: 8, kind: input, shape index: {}]
  %s9 = inlined_call_operand.vmem [shape: bf16[7,16,8], index: 9, kind: input, shape index: {}]
  %s10 = inlined_call_operand.vmem [shape: f32[7,16,1], index: 10, kind: input, shape index: {}]
  %s11 = inlined_call_operand.vmem [shape: bf16[7,16,16], index: 11, kind: input, shape index: {}]
  %s12 = inlined_call_operand.vmem [shape: f32[7,16,1], index: 12, kind: input, shape index: {}]
  %s13 = inlined_call_operand.vmem [shape: bf16[64,64], index: 13, kind: input, shape index: {}]
  %s14 = inlined_call_operand.vmem [shape: f32[64,1], index: 14, kind: input, shape index: {}]
  %s15 = inlined_call_operand.vmem [shape: f32[64,1], index: 15, kind: input, shape index: {}]
  %s16 = inlined_call_operand.vmem [shape: f32[64,1], index: 16, kind: input, shape index: {}]
  %s17 = inlined_call_operand.vmem [shape: bf16[128,64], index: 17, kind: input, shape index: {}]
  %s18 = inlined_call_operand.vmem [shape: f32[128,1], index: 18, kind: input, shape index: {}]
  %s19 = inlined_call_operand.vmem [shape: f32[128,1], index: 19, kind: input, shape index: {}]
  %s20 = inlined_call_operand.vmem [shape: f32[128,1], index: 20, kind: input, shape index: {}]
  %s21 = inlined_call_operand.vmem [shape: bf16[64,128], index: 21, kind: input, shape index: {}]
  %s22 = inlined_call_operand.vmem [shape: f32[64,1], index: 22, kind: input, shape index: {}]
  %s23 = inlined_call_operand.hbm [shape: f32[2,64,128], index: 23, kind: output, shape index: {}]
  %s24 = sld [smem:[#allocation0]]
  $region125: #{tpu_custom_call.1} parent=0
    _
  %s26 = ssub.s32 1, %s24
  %s27 = scalar_select 0, %s26, %s24
  $region1: #{tpu_custom_call.1} parent=0
    #allocation3 [shape = 'u8[65536]{0}', space=vmem, size = 0x10000, scoped, tag = 'output window, operand 0']
    #allocation4 [shape = 's32[2]{0}', space=sflag, size = 0x8, scoped, tag = 'scoped memory for tpu_custom_call.1']
    %28 = vsyncpa [#allocation4], 0
    %s29 = scalar_lea.sflag [#allocation4], 1
    %30 = vsyncpa %s29, 0
    loop: start=0, step=1, limit=4
    $region2: #{tpu_custom_call.1} parent=1 // loop_pre_header
      _
    $region3: #{tpu_custom_call.1} parent=1 // loop_header
      %s32 = sphi 0, %s36
      %p33 = scmp.ge.s32.totalorder %s32, 4
      %s42 = sphi 0, %s44
      %s45 = sphi 0, %s42
      %s46 = sphi 0, %s45
      %s62 = sphi 0, %s46
      %s66 = sphi 0, %s66
      %s68 = sphi 0, %s66
      %s69 = sphi 0, %s68
      %s83 = sphi 0, %s69
      %s87 = sphi 0, %s87
      %s89 = sphi 0, %s87
      %s90 = sphi 0, %s89
      %s104 = sphi 0, %s90
      %s108 = sphi 0, %s108
      %s110 = sphi 0, %s108
      %s111 = sphi 0, %s110
      %s125 = sphi 0, %s111
      %s129 = sphi 0, %s129
      %s131 = sphi 0, %s129
      %s132 = sphi 0, %s131
      %s146 = sphi 0, %s132
      %s150 = sphi 0, %s150
      %s152 = sphi 0, %s150
      %s153 = sphi 0, %s152
      %s167 = sphi 0, %s153
      %s171 = sphi 0, %s171
      %s173 = sphi 0, %s171
      %s174 = sphi 0, %s173
      %s188 = sphi 0, %s174
      %s192 = sphi 0, %s192
      %s194 = sphi 0, %s192
      %s195 = sphi 0, %s194
      %s209 = sphi 0, %s195
      %s213 = sphi 0, %s213
      %s215 = sphi 0, %s213
      %s216 = sphi 0, %s215
      %s230 = sphi 0, %s216
      %s234 = sphi 0, %s234
      %s236 = sphi 0, %s234
      %s237 = sphi 0, %s236
      %s251 = sphi 0, %s237
      %s255 = sphi 0, %s255
      %s257 = sphi 0, %s255
      %s258 = sphi 0, %s257
      %s272 = sphi 0, %s258
      %s276 = sphi 0, %s276
      %s278 = sphi 0, %s276
      %s279 = sphi 0, %s278
      %s293 = sphi 0, %s279
      %s297 = sphi 0, %s297
      %s299 = sphi 0, %s297
      %s300 = sphi 0, %s299
      %s314 = sphi 0, %s300
      %s318 = sphi 0, %s318
      %s320 = sphi 0, %s318
      %s321 = sphi 0, %s320
      %s335 = sphi 0, %s321
      %s339 = sphi 0, %s339
      %s341 = sphi 0, %s339
      %s342 = sphi 0, %s341
      %s356 = sphi 0, %s342
      %s360 = sphi 0, %s360
      %s362 = sphi 0, %s360
      %s363 = sphi 0, %s362
      %s377 = sphi 0, %s363
      %s381 = sphi 0, %s381
      %s383 = sphi 0, %s381
      %s384 = sphi 0, %s383
      %s398 = sphi 0, %s384
      %s402 = sphi 0, %s402
      %s404 = sphi 0, %s402
      %s405 = sphi 0, %s404
      %s419 = sphi 0, %s405
      %s423 = sphi 0, %s423
      %s425 = sphi 0, %s423
      %s426 = sphi 0, %s425
      %s440 = sphi 0, %s426
      %s444 = sphi 0, %s444
      %s446 = sphi 0, %s444
      %s447 = sphi 0, %s446
      %s461 = sphi 0, %s447
      %s465 = sphi 0, %s465
      %s467 = sphi 0, %s465
      %s468 = sphi 0, %s467
      %s482 = sphi 0, %s468
      %s486 = sphi 0, %s486
      %s488 = sphi 0, %s486
      %s489 = sphi 0, %s488
      %s503 = sphi 0, %s489
      %s507 = sphi 0, %s507
      %s509 = sphi 0, %s507
      %s510 = sphi 0, %s509
      %s524 = sphi 0, %s510
      %s530 = sphi 0, %s532
      %s533 = sphi 0, %s530
      %s534 = sphi 0, %s533
      %s550 = sphi 0, %s534
    $region4: #{tpu_custom_call.1} parent=1 // loop_header_branch
      %35 = sbr.rel (%p33) target = $region8
    $region5: #{tpu_custom_call.1} parent=1 // loop_body
      %s37 = ssub.s32 %s32, 1
      %s38 = ssub.s32 %s32, 2
      %s39 = sadd.s32 %s32, 1
      %s40 = ssub.s32 %s32, %s39
      %p41 = scmp.eq.s32.totalorder %s40, 0
      %s43 = sadd.s32 %s42, 1
      %s44 = scalar_select %p41, %s42, %s43
      %p47 = pneg %p41
      %p48 = scmp.eq.s32.totalorder %s32, 1
      %p49 = por %p47, %p48
      %p50 = scmp.ne.s32.totalorder %s42, %s45
      %p51 = scmp.eq.s32.totalorder %s32, 0
      %p52 = por %p50, %p51
      %p53 = scmp.ne.s32.totalorder %s42, %s45
      %p54 = scmp.eq.s32.totalorder %s37, 1
      %p55 = por %p53, %p54
      %p56 = scmp.ne.s32.totalorder %s45, %s46
      %p57 = scmp.eq.s32.totalorder %s37, 0
      %p58 = por %p56, %p57
      %p59 = scmp.ne.s32.totalorder %s45, %s46
      %p60 = scmp.eq.s32.totalorder %s38, 1
      %p61 = por %p59, %p60
      %p63 = scmp.ne.s32.totalorder %s46, %s62
      %p64 = scmp.eq.s32.totalorder %s38, 0
      %p65 = por %p63, %p64
      %s67 = sadd.s32 %s66, 1
      %p70 = scmp.eq.s32.totalorder %s32, 1
      %p71 = scmp.ne.s32.totalorder %s66, %s68
      %p72 = scmp.eq.s32.totalorder %s32, 0
      %p73 = por %p71, %p72
      %p74 = scmp.ne.s32.totalorder %s66, %s68
      %p75 = scmp.eq.s32.totalorder %s37, 1
      %p76 = por %p74, %p75
      %p77 = scmp.ne.s32.totalorder %s68, %s69
      %p78 = scmp.eq.s32.totalorder %s37, 0
      %p79 = por %p77, %p78
      %p80 = scmp.ne.s32.totalorder %s68, %s69
      %p81 = scmp.eq.s32.totalorder %s38, 1
      %p82 = por %p80, %p81
      %p84 = scmp.ne.s32.totalorder %s69, %s83
      %p85 = scmp.eq.s32.totalorder %s38, 0
      %p86 = por %p84, %p85
      %s88 = sadd.s32 %s87, 1
      %p91 = scmp.eq.s32.totalorder %s32, 1
      %p92 = scmp.ne.s32.totalorder %s87, %s89
      %p93 = scmp.eq.s32.totalorder %s32, 0
      %p94 = por %p92, %p93
      %p95 = scmp.ne.s32.totalorder %s87, %s89
      %p96 = scmp.eq.s32.totalorder %s37, 1
      %p97 = por %p95, %p96
      %p98 = scmp.ne.s32.totalorder %s89, %s90
      %p99 = scmp.eq.s32.totalorder %s37, 0
      %p100 = por %p98, %p99
      %p101 = scmp.ne.s32.totalorder %s89, %s90
      %p102 = scmp.eq.s32.totalorder %s38, 1
      %p103 = por %p101, %p102
      %p105 = scmp.ne.s32.totalorder %s90, %s104
      %p106 = scmp.eq.s32.totalorder %s38, 0
      %p107 = por %p105, %p106
      %s109 = sadd.s32 %s108, 1
      %p112 = scmp.eq.s32.totalorder %s32, 1
      %p113 = scmp.ne.s32.totalorder %s108, %s110
      %p114 = scmp.eq.s32.totalorder %s32, 0
      %p115 = por %p113, %p114
      %p116 = scmp.ne.s32.totalorder %s108, %s110
      %p117 = scmp.eq.s32.totalorder %s37, 1
      %p118 = por %p116, %p117
      %p119 = scmp.ne.s32.totalorder %s110, %s111
      %p120 = scmp.eq.s32.totalorder %s37, 0
      %p121 = por %p119, %p120
      %p122 = scmp.ne.s32.totalorder %s110, %s111
      %p123 = scmp.eq.s32.totalorder %s38, 1
      %p124 = por %p122, %p123
      %p126 = scmp.ne.s32.totalorder %s111, %s125
      %p127 = scmp.eq.s32.totalorder %s38, 0
      %p128 = por %p126, %p127
      %s130 = sadd.s32 %s129, 1
      %p133 = scmp.eq.s32.totalorder %s32, 1
      %p134 = scmp.ne.s32.totalorder %s129, %s131
      %p135 = scmp.eq.s32.totalorder %s32, 0
      %p136 = por %p134, %p135
      %p137 = scmp.ne.s32.totalorder %s129, %s131
      %p138 = scmp.eq.s32.totalorder %s37, 1
      %p139 = por %p137, %p138
      %p140 = scmp.ne.s32.totalorder %s131, %s132
      %p141 = scmp.eq.s32.totalorder %s37, 0
      %p142 = por %p140, %p141
      %p143 = scmp.ne.s32.totalorder %s131, %s132
      %p144 = scmp.eq.s32.totalorder %s38, 1
      %p145 = por %p143, %p144
      %p147 = scmp.ne.s32.totalorder %s132, %s146
      %p148 = scmp.eq.s32.totalorder %s38, 0
      %p149 = por %p147, %p148
      %s151 = sadd.s32 %s150, 1
      %p154 = scmp.eq.s32.totalorder %s32, 1
      %p155 = scmp.ne.s32.totalorder %s150, %s152
      %p156 = scmp.eq.s32.totalorder %s32, 0
      %p157 = por %p155, %p156
      %p158 = scmp.ne.s32.totalorder %s150, %s152
      %p159 = scmp.eq.s32.totalorder %s37, 1
      %p160 = por %p158, %p159
      %p161 = scmp.ne.s32.totalorder %s152, %s153
      %p162 = scmp.eq.s32.totalorder %s37, 0
      %p163 = por %p161, %p162
      %p164 = scmp.ne.s32.totalorder %s152, %s153
      %p165 = scmp.eq.s32.totalorder %s38, 1
      %p166 = por %p164, %p165
      %p168 = scmp.ne.s32.totalorder %s153, %s167
      %p169 = scmp.eq.s32.totalorder %s38, 0
      %p170 = por %p168, %p169
      %s172 = sadd.s32 %s171, 1
      %p175 = scmp.eq.s32.totalorder %s32, 1
      %p176 = scmp.ne.s32.totalorder %s171, %s173
      %p177 = scmp.eq.s32.totalorder %s32, 0
      %p178 = por %p176, %p177
      %p179 = scmp.ne.s32.totalorder %s171, %s173
      %p180 = scmp.eq.s32.totalorder %s37, 1
      %p181 = por %p179, %p180
      %p182 = scmp.ne.s32.totalorder %s173, %s174
      %p183 = scmp.eq.s32.totalorder %s37, 0
      %p184 = por %p182, %p183
      %p185 = scmp.ne.s32.totalorder %s173, %s174
      %p186 = scmp.eq.s32.totalorder %s38, 1
      %p187 = por %p185, %p186
      %p189 = scmp.ne.s32.totalorder %s174, %s188
      %p190 = scmp.eq.s32.totalorder %s38, 0
      %p191 = por %p189, %p190
      %s193 = sadd.s32 %s192, 1
      %p196 = scmp.eq.s32.totalorder %s32, 1
      %p197 = scmp.ne.s32.totalorder %s192, %s194
      %p198 = scmp.eq.s32.totalorder %s32, 0
      %p199 = por %p197, %p198
      %p200 = scmp.ne.s32.totalorder %s192, %s194
      %p201 = scmp.eq.s32.totalorder %s37, 1
      %p202 = por %p200, %p201
      %p203 = scmp.ne.s32.totalorder %s194, %s195
      %p204 = scmp.eq.s32.totalorder %s37, 0
      %p205 = por %p203, %p204
      %p206 = scmp.ne.s32.totalorder %s194, %s195
      %p207 = scmp.eq.s32.totalorder %s38, 1
      %p208 = por %p206, %p207
      %p210 = scmp.ne.s32.totalorder %s195, %s209
      %p211 = scmp.eq.s32.totalorder %s38, 0
      %p212 = por %p210, %p211
      %s214 = sadd.s32 %s213, 1
      %p217 = scmp.eq.s32.totalorder %s32, 1
      %p218 = scmp.ne.s32.totalorder %s213, %s215
      %p219 = scmp.eq.s32.totalorder %s32, 0
      %p220 = por %p218, %p219
      %p221 = scmp.ne.s32.totalorder %s213, %s215
      %p222 = scmp.eq.s32.totalorder %s37, 1
      %p223 = por %p221, %p222
      %p224 = scmp.ne.s32.totalorder %s215, %s216
      %p225 = scmp.eq.s32.totalorder %s37, 0
      %p226 = por %p224, %p225
      %p227 = scmp.ne.s32.totalorder %s215, %s216
      %p228 = scmp.eq.s32.totalorder %s38, 1
      %p229 = por %p227, %p228
      %p231 = scmp.ne.s32.totalorder %s216, %s230
      %p232 = scmp.eq.s32.totalorder %s38, 0
      %p233 = por %p231, %p232
      %s235 = sadd.s32 %s234, 1
      %p238 = scmp.eq.s32.totalorder %s32, 1
      %p239 = scmp.ne.s32.totalorder %s234, %s236
      %p240 = scmp.eq.s32.totalorder %s32, 0
      %p241 = por %p239, %p240
      %p242 = scmp.ne.s32.totalorder %s234, %s236
      %p243 = scmp.eq.s32.totalorder %s37, 1
      %p244 = por %p242, %p243
      %p245 = scmp.ne.s32.totalorder %s236, %s237
      %p246 = scmp.eq.s32.totalorder %s37, 0
      %p247 = por %p245, %p246
      %p248 = scmp.ne.s32.totalorder %s236, %s237
      %p249 = scmp.eq.s32.totalorder %s38, 1
      %p250 = por %p248, %p249
      %p252 = scmp.ne.s32.totalorder %s237, %s251
      %p253 = scmp.eq.s32.totalorder %s38, 0
      %p254 = por %p252, %p253
      %s256 = sadd.s32 %s255, 1
      %p259 = scmp.eq.s32.totalorder %s32, 1
      %p260 = scmp.ne.s32.totalorder %s255, %s257
      %p261 = scmp.eq.s32.totalorder %s32, 0
      %p262 = por %p260, %p261
      %p263 = scmp.ne.s32.totalorder %s255, %s257
      %p264 = scmp.eq.s32.totalorder %s37, 1
      %p265 = por %p263, %p264
      %p266 = scmp.ne.s32.totalorder %s257, %s258
      %p267 = scmp.eq.s32.totalorder %s37, 0
      %p268 = por %p266, %p267
      %p269 = scmp.ne.s32.totalorder %s257, %s258
      %p270 = scmp.eq.s32.totalorder %s38, 1
      %p271 = por %p269, %p270
      %p273 = scmp.ne.s32.totalorder %s258, %s272
      %p274 = scmp.eq.s32.totalorder %s38, 0
      %p275 = por %p273, %p274
      %s277 = sadd.s32 %s276, 1
      %p280 = scmp.eq.s32.totalorder %s32, 1
      %p281 = scmp.ne.s32.totalorder %s276, %s278
      %p282 = scmp.eq.s32.totalorder %s32, 0
      %p283 = por %p281, %p282
      %p284 = scmp.ne.s32.totalorder %s276, %s278
      %p285 = scmp.eq.s32.totalorder %s37, 1
      %p286 = por %p284, %p285
      %p287 = scmp.ne.s32.totalorder %s278, %s279
      %p288 = scmp.eq.s32.totalorder %s37, 0
      %p289 = por %p287, %p288
      %p290 = scmp.ne.s32.totalorder %s278, %s279
      %p291 = scmp.eq.s32.totalorder %s38, 1
      %p292 = por %p290, %p291
      %p294 = scmp.ne.s32.totalorder %s279, %s293
      %p295 = scmp.eq.s32.totalorder %s38, 0
      %p296 = por %p294, %p295
      %s298 = sadd.s32 %s297, 1
      %p301 = scmp.eq.s32.totalorder %s32, 1
      %p302 = scmp.ne.s32.totalorder %s297, %s299
      %p303 = scmp.eq.s32.totalorder %s32, 0
      %p304 = por %p302, %p303
      %p305 = scmp.ne.s32.totalorder %s297, %s299
      %p306 = scmp.eq.s32.totalorder %s37, 1
      %p307 = por %p305, %p306
      %p308 = scmp.ne.s32.totalorder %s299, %s300
      %p309 = scmp.eq.s32.totalorder %s37, 0
      %p310 = por %p308, %p309
      %p311 = scmp.ne.s32.totalorder %s299, %s300
      %p312 = scmp.eq.s32.totalorder %s38, 1
      %p313 = por %p311, %p312
      %p315 = scmp.ne.s32.totalorder %s300, %s314
      %p316 = scmp.eq.s32.totalorder %s38, 0
      %p317 = por %p315, %p316
      %s319 = sadd.s32 %s318, 1
      %p322 = scmp.eq.s32.totalorder %s32, 1
      %p323 = scmp.ne.s32.totalorder %s318, %s320
      %p324 = scmp.eq.s32.totalorder %s32, 0
      %p325 = por %p323, %p324
      %p326 = scmp.ne.s32.totalorder %s318, %s320
      %p327 = scmp.eq.s32.totalorder %s37, 1
      %p328 = por %p326, %p327
      %p329 = scmp.ne.s32.totalorder %s320, %s321
      %p330 = scmp.eq.s32.totalorder %s37, 0
      %p331 = por %p329, %p330
      %p332 = scmp.ne.s32.totalorder %s320, %s321
      %p333 = scmp.eq.s32.totalorder %s38, 1
      %p334 = por %p332, %p333
      %p336 = scmp.ne.s32.totalorder %s321, %s335
      %p337 = scmp.eq.s32.totalorder %s38, 0
      %p338 = por %p336, %p337
      %s340 = sadd.s32 %s339, 1
      %p343 = scmp.eq.s32.totalorder %s32, 1
      %p344 = scmp.ne.s32.totalorder %s339, %s341
      %p345 = scmp.eq.s32.totalorder %s32, 0
      %p346 = por %p344, %p345
      %p347 = scmp.ne.s32.totalorder %s339, %s341
      %p348 = scmp.eq.s32.totalorder %s37, 1
      %p349 = por %p347, %p348
      %p350 = scmp.ne.s32.totalorder %s341, %s342
      %p351 = scmp.eq.s32.totalorder %s37, 0
      %p352 = por %p350, %p351
      %p353 = scmp.ne.s32.totalorder %s341, %s342
      %p354 = scmp.eq.s32.totalorder %s38, 1
      %p355 = por %p353, %p354
      %p357 = scmp.ne.s32.totalorder %s342, %s356
      %p358 = scmp.eq.s32.totalorder %s38, 0
      %p359 = por %p357, %p358
      %s361 = sadd.s32 %s360, 1
      %p364 = scmp.eq.s32.totalorder %s32, 1
      %p365 = scmp.ne.s32.totalorder %s360, %s362
      %p366 = scmp.eq.s32.totalorder %s32, 0
      %p367 = por %p365, %p366
      %p368 = scmp.ne.s32.totalorder %s360, %s362
      %p369 = scmp.eq.s32.totalorder %s37, 1
      %p370 = por %p368, %p369
      %p371 = scmp.ne.s32.totalorder %s362, %s363
      %p372 = scmp.eq.s32.totalorder %s37, 0
      %p373 = por %p371, %p372
      %p374 = scmp.ne.s32.totalorder %s362, %s363
      %p375 = scmp.eq.s32.totalorder %s38, 1
      %p376 = por %p374, %p375
      %p378 = scmp.ne.s32.totalorder %s363, %s377
      %p379 = scmp.eq.s32.totalorder %s38, 0
      %p380 = por %p378, %p379
      %s382 = sadd.s32 %s381, 1
      %p385 = scmp.eq.s32.totalorder %s32, 1
      %p386 = scmp.ne.s32.totalorder %s381, %s383
      %p387 = scmp.eq.s32.totalorder %s32, 0
      %p388 = por %p386, %p387
      %p389 = scmp.ne.s32.totalorder %s381, %s383
      %p390 = scmp.eq.s32.totalorder %s37, 1
      %p391 = por %p389, %p390
      %p392 = scmp.ne.s32.totalorder %s383, %s384
      %p393 = scmp.eq.s32.totalorder %s37, 0
      %p394 = por %p392, %p393
      %p395 = scmp.ne.s32.totalorder %s383, %s384
      %p396 = scmp.eq.s32.totalorder %s38, 1
      %p397 = por %p395, %p396
      %p399 = scmp.ne.s32.totalorder %s384, %s398
      %p400 = scmp.eq.s32.totalorder %s38, 0
      %p401 = por %p399, %p400
      %s403 = sadd.s32 %s402, 1
      %p406 = scmp.eq.s32.totalorder %s32, 1
      %p407 = scmp.ne.s32.totalorder %s402, %s404
      %p408 = scmp.eq.s32.totalorder %s32, 0
      %p409 = por %p407, %p408
      %p410 = scmp.ne.s32.totalorder %s402, %s404
      %p411 = scmp.eq.s32.totalorder %s37, 1
      %p412 = por %p410, %p411
      %p413 = scmp.ne.s32.totalorder %s404, %s405
      %p414 = scmp.eq.s32.totalorder %s37, 0
      %p415 = por %p413, %p414
      %p416 = scmp.ne.s32.totalorder %s404, %s405
      %p417 = scmp.eq.s32.totalorder %s38, 1
      %p418 = por %p416, %p417
      %p420 = scmp.ne.s32.totalorder %s405, %s419
      %p421 = scmp.eq.s32.totalorder %s38, 0
      %p422 = por %p420, %p421
      %s424 = sadd.s32 %s423, 1
      %p427 = scmp.eq.s32.totalorder %s32, 1
      %p428 = scmp.ne.s32.totalorder %s423, %s425
      %p429 = scmp.eq.s32.totalorder %s32, 0
      %p430 = por %p428, %p429
      %p431 = scmp.ne.s32.totalorder %s423, %s425
      %p432 = scmp.eq.s32.totalorder %s37, 1
      %p433 = por %p431, %p432
      %p434 = scmp.ne.s32.totalorder %s425, %s426
      %p435 = scmp.eq.s32.totalorder %s37, 0
      %p436 = por %p434, %p435
      %p437 = scmp.ne.s32.totalorder %s425, %s426
      %p438 = scmp.eq.s32.totalorder %s38, 1
      %p439 = por %p437, %p438
      %p441 = scmp.ne.s32.totalorder %s426, %s440
      %p442 = scmp.eq.s32.totalorder %s38, 0
      %p443 = por %p441, %p442
      %s445 = sadd.s32 %s444, 1
      %p448 = scmp.eq.s32.totalorder %s32, 1
      %p449 = scmp.ne.s32.totalorder %s444, %s446
      %p450 = scmp.eq.s32.totalorder %s32, 0
      %p451 = por %p449, %p450
      %p452 = scmp.ne.s32.totalorder %s444, %s446
      %p453 = scmp.eq.s32.totalorder %s37, 1
      %p454 = por %p452, %p453
      %p455 = scmp.ne.s32.totalorder %s446, %s447
      %p456 = scmp.eq.s32.totalorder %s37, 0
      %p457 = por %p455, %p456
      %p458 = scmp.ne.s32.totalorder %s446, %s447
      %p459 = scmp.eq.s32.totalorder %s38, 1
      %p460 = por %p458, %p459
      %p462 = scmp.ne.s32.totalorder %s447, %s461
      %p463 = scmp.eq.s32.totalorder %s38, 0
      %p464 = por %p462, %p463
      %s466 = sadd.s32 %s465, 1
      %p469 = scmp.eq.s32.totalorder %s32, 1
      %p470 = scmp.ne.s32.totalorder %s465, %s467
      %p471 = scmp.eq.s32.totalorder %s32, 0
      %p472 = por %p470, %p471
      %p473 = scmp.ne.s32.totalorder %s465, %s467
      %p474 = scmp.eq.s32.totalorder %s37, 1
      %p475 = por %p473, %p474
      %p476 = scmp.ne.s32.totalorder %s467, %s468
      %p477 = scmp.eq.s32.totalorder %s37, 0
      %p478 = por %p476, %p477
      %p479 = scmp.ne.s32.totalorder %s467, %s468
      %p480 = scmp.eq.s32.totalorder %s38, 1
      %p481 = por %p479, %p480
      %p483 = scmp.ne.s32.totalorder %s468, %s482
      %p484 = scmp.eq.s32.totalorder %s38, 0
      %p485 = por %p483, %p484
      %s487 = sadd.s32 %s486, 1
      %p490 = scmp.eq.s32.totalorder %s32, 1
      %p491 = scmp.ne.s32.totalorder %s486, %s488
      %p492 = scmp.eq.s32.totalorder %s32, 0
      %p493 = por %p491, %p492
      %p494 = scmp.ne.s32.totalorder %s486, %s488
      %p495 = scmp.eq.s32.totalorder %s37, 1
      %p496 = por %p494, %p495
      %p497 = scmp.ne.s32.totalorder %s488, %s489
      %p498 = scmp.eq.s32.totalorder %s37, 0
      %p499 = por %p497, %p498
      %p500 = scmp.ne.s32.totalorder %s488, %s489
      %p501 = scmp.eq.s32.totalorder %s38, 1
      %p502 = por %p500, %p501
      %p504 = scmp.ne.s32.totalorder %s489, %s503
      %p505 = scmp.eq.s32.totalorder %s38, 0
      %p506 = por %p504, %p505
      %s508 = sadd.s32 %s507, 1
      %p511 = scmp.eq.s32.totalorder %s32, 1
      %p512 = scmp.ne.s32.totalorder %s507, %s509
      %p513 = scmp.eq.s32.totalorder %s32, 0
      %p514 = por %p512, %p513
      %p515 = scmp.ne.s32.totalorder %s507, %s509
      %p516 = scmp.eq.s32.totalorder %s37, 1
      %p517 = por %p515, %p516
      %p518 = scmp.ne.s32.totalorder %s509, %s510
      %p519 = scmp.eq.s32.totalorder %s37, 0
      %p520 = por %p518, %p519
      %p521 = scmp.ne.s32.totalorder %s509, %s510
      %p522 = scmp.eq.s32.totalorder %s38, 1
      %p523 = por %p521, %p522
      %p525 = scmp.ne.s32.totalorder %s510, %s524
      %p526 = scmp.eq.s32.totalorder %s38, 0
      %p527 = por %p525, %p526
      %s528 = ssub.s32 %s32, %s39
      %p529 = scmp.eq.s32.totalorder %s528, 0
      %s531 = sadd.s32 %s530, 1
      %s532 = scalar_select %p529, %s530, %s531
      %p535 = pneg %p529
      %p536 = scmp.eq.s32.totalorder %s32, 1
      %p537 = por %p535, %p536
      %p538 = scmp.ne.s32.totalorder %s530, %s533
      %p539 = scmp.eq.s32.totalorder %s32, 0
      %p540 = por %p538, %p539
      %p541 = scmp.ne.s32.totalorder %s530, %s533
      %p542 = scmp.eq.s32.totalorder %s37, 1
      %p543 = por %p541, %p542
      %p544 = scmp.ne.s32.totalorder %s533, %s534
      %p545 = scmp.eq.s32.totalorder %s37, 0
      %p546 = por %p544, %p545
      %p547 = scmp.ne.s32.totalorder %s533, %s534
      %p548 = scmp.eq.s32.totalorder %s38, 1
      %p549 = por %p547, %p548
      %p551 = scmp.ne.s32.totalorder %s534, %s550
      %p552 = scmp.eq.s32.totalorder %s38, 0
      %p553 = por %p551, %p552
      %p554 = scmp.le.s32.totalorder 1, %s32
      %p555 = scmp.lt.s32.totalorder %s32, 3
      %p556 = pnand %p554, %p555
      %p557 = pneg %p556
      // Predicated region
      $region9: #{tpu_custom_call.1} parent=5 // pred_check
        _
      $region10: #{tpu_custom_call.1} parent=5 // pred_check_branch
        %559 = sbr.rel (%p556) target = $region12
      $region11: #{tpu_custom_call.1} parent=5 // pred_region
        %s560 = ssub.s32 %s32, 1
        // Predicated region
        $region13: #{tpu_custom_call.1} parent=11 // pred_check
          %p561 = pneg %p79
        $region14: #{tpu_custom_call.1} parent=11 // pred_check_branch
          %563 = sbr.rel (%p561) target = $region16
        $region15: #{tpu_custom_call.1} parent=11 // pred_region
          _
        $region16: #{tpu_custom_call.1} parent=11 // pred_fallthru
          _
        // Predicated region
        $region17: #{tpu_custom_call.1} parent=11 // pred_check
          %p564 = pneg %p100
        $region18: #{tpu_custom_call.1} parent=11 // pred_check_branch
          %566 = sbr.rel (%p564) target = $region20
        $region19: #{tpu_custom_call.1} parent=11 // pred_region
          _
        $region20: #{tpu_custom_call.1} parent=11 // pred_fallthru
          _
        // Predicated region
        $region21: #{tpu_custom_call.1} parent=11 // pred_check
          %p567 = pneg %p121
        $region22: #{tpu_custom_call.1} parent=11 // pred_check_branch
          %569 = sbr.rel (%p567) target = $region24
        $region23: #{tpu_custom_call.1} parent=11 // pred_region
          _
        $region24: #{tpu_custom_call.1} parent=11 // pred_fallthru
          _
        // Predicated region
        $region25: #{tpu_custom_call.1} parent=11 // pred_check
          %p570 = pneg %p142
        $region26: #{tpu_custom_call.1} parent=11 // pred_check_branch
          %572 = sbr.rel (%p570) target = $region28
        $region27: #{tpu_custom_call.1} parent=11 // pred_region
          _
        $region28: #{tpu_custom_call.1} parent=11 // pred_fallthru
          _
        // Predicated region
        $region29: #{tpu_custom_call.1} parent=11 // pred_check
          %p573 = pneg %p163
        $region30: #{tpu_custom_call.1} parent=11 // pred_check_branch
          %575 = sbr.rel (%p573) target = $region32
        $region31: #{tpu_custom_call.1} parent=11 // pred_region
          _
        $region32: #{tpu_custom_call.1} parent=11 // pred_fallthru
          _
        // Predicated region
        $region33: #{tpu_custom_call.1} parent=11 // pred_check
          %p576 = pneg %p184
        $region34: #{tpu_custom_call.1} parent=11 // pred_check_branch
          %578 = sbr.rel (%p576) target = $region36
        $region35: #{tpu_custom_call.1} parent=11 // pred_region
          _
        $region36: #{tpu_custom_call.1} parent=11 // pred_fallthru
          _
        // Predicated region
        $region37: #{tpu_custom_call.1} parent=11 // pred_check
          %p579 = pneg %p205
        $region38: #{tpu_custom_call.1} parent=11 // pred_check_branch
          %581 = sbr.rel (%p579) target = $region40
        $region39: #{tpu_custom_call.1} parent=11 // pred_region
          _
        $region40: #{tpu_custom_call.1} parent=11 // pred_fallthru
          _
        // Predicated region
        $region41: #{tpu_custom_call.1} parent=11 // pred_check
          %p582 = pneg %p226
        $region42: #{tpu_custom_call.1} parent=11 // pred_check_branch
          %584 = sbr.rel (%p582) target = $region44
        $region43: #{tpu_custom_call.1} parent=11 // pred_region
          _
        $region44: #{tpu_custom_call.1} parent=11 // pred_fallthru
          _
        // Predicated region
        $region45: #{tpu_custom_call.1} parent=11 // pred_check
          %p585 = pneg %p247
        $region46: #{tpu_custom_call.1} parent=11 // pred_check_branch
          %587 = sbr.rel (%p585) target = $region48
        $region47: #{tpu_custom_call.1} parent=11 // pred_region
          _
        $region48: #{tpu_custom_call.1} parent=11 // pred_fallthru
          _
        // Predicated region
        $region49: #{tpu_custom_call.1} parent=11 // pred_check
          %p588 = pneg %p268
        $region50: #{tpu_custom_call.1} parent=11 // pred_check_branch
          %590 = sbr.rel (%p588) target = $region52
        $region51: #{tpu_custom_call.1} parent=11 // pred_region
          _
        $region52: #{tpu_custom_call.1} parent=11 // pred_fallthru
          _
        // Predicated region
        $region53: #{tpu_custom_call.1} parent=11 // pred_check
          %p591 = pneg %p289
        $region54: #{tpu_custom_call.1} parent=11 // pred_check_branch
          %593 = sbr.rel (%p591) target = $region56
        $region55: #{tpu_custom_call.1} parent=11 // pred_region
          _
        $region56: #{tpu_custom_call.1} parent=11 // pred_fallthru
          _
        // Predicated region
        $region57: #{tpu_custom_call.1} parent=11 // pred_check
          %p594 = pneg %p310
        $region58: #{tpu_custom_call.1} parent=11 // pred_check_branch
          %596 = sbr.rel (%p594) target = $region60
        $region59: #{tpu_custom_call.1} parent=11 // pred_region
          _
        $region60: #{tpu_custom_call.1} parent=11 // pred_fallthru
          _
        // Predicated region
        $region61: #{tpu_custom_call.1} parent=11 // pred_check
          %p597 = pneg %p331
        $region62: #{tpu_custom_call.1} parent=11 // pred_check_branch
          %599 = sbr.rel (%p597) target = $region64
        $region63: #{tpu_custom_call.1} parent=11 // pred_region
          _
        $region64: #{tpu_custom_call.1} parent=11 // pred_fallthru
          _
        // Predicated region
        $region65: #{tpu_custom_call.1} parent=11 // pred_check
          %p600 = pneg %p352
        $region66: #{tpu_custom_call.1} parent=11 // pred_check_branch
          %602 = sbr.rel (%p600) target = $region68
        $region67: #{tpu_custom_call.1} parent=11 // pred_region
          _
        $region68: #{tpu_custom_call.1} parent=11 // pred_fallthru
          _
        // Predicated region
        $region69: #{tpu_custom_call.1} parent=11 // pred_check
          %p603 = pneg %p373
        $region70: #{tpu_custom_call.1} parent=11 // pred_check_branch
          %605 = sbr.rel (%p603) target = $region72
        $region71: #{tpu_custom_call.1} parent=11 // pred_region
          _
        $region72: #{tpu_custom_call.1} parent=11 // pred_fallthru
          _
        // Predicated region
        $region73: #{tpu_custom_call.1} parent=11 // pred_check
          %p606 = pneg %p394
        $region74: #{tpu_custom_call.1} parent=11 // pred_check_branch
          %608 = sbr.rel (%p606) target = $region76
        $region75: #{tpu_custom_call.1} parent=11 // pred_region
          _
        $region76: #{tpu_custom_call.1} parent=11 // pred_fallthru
          _
        // Predicated region
        $region77: #{tpu_custom_call.1} parent=11 // pred_check
          %p609 = pneg %p415
        $region78: #{tpu_custom_call.1} parent=11 // pred_check_branch
          %611 = sbr.rel (%p609) target = $region80
        $region79: #{tpu_custom_call.1} parent=11 // pred_region
          _
        $region80: #{tpu_custom_call.1} parent=11 // pred_fallthru
          _
        // Predicated region
        $region81: #{tpu_custom_call.1} parent=11 // pred_check
          %p612 = pneg %p436
        $region82: #{tpu_custom_call.1} parent=11 // pred_check_branch
          %614 = sbr.rel (%p612) target = $region84
        $region83: #{tpu_custom_call.1} parent=11 // pred_region
          _
        $region84: #{tpu_custom_call.1} parent=11 // pred_fallthru
          _
        // Predicated region
        $region85: #{tpu_custom_call.1} parent=11 // pred_check
          %p615 = pneg %p457
        $region86: #{tpu_custom_call.1} parent=11 // pred_check_branch
          %617 = sbr.rel (%p615) target = $region88
        $region87: #{tpu_custom_call.1} parent=11 // pred_region
          _
        $region88: #{tpu_custom_call.1} parent=11 // pred_fallthru
          _
        // Predicated region
        $region89: #{tpu_custom_call.1} parent=11 // pred_check
          %p618 = pneg %p478
        $region90: #{tpu_custom_call.1} parent=11 // pred_check_branch
          %620 = sbr.rel (%p618) target = $region92
        $region91: #{tpu_custom_call.1} parent=11 // pred_region
          _
        $region92: #{tpu_custom_call.1} parent=11 // pred_fallthru
          _
        // Predicated region
        $region93: #{tpu_custom_call.1} parent=11 // pred_check
          %p621 = pneg %p499
        $region94: #{tpu_custom_call.1} parent=11 // pred_check_branch
          %623 = sbr.rel (%p621) target = $region96
        $region95: #{tpu_custom_call.1} parent=11 // pred_region
          _
        $region96: #{tpu_custom_call.1} parent=11 // pred_fallthru
          _
        // Predicated region
        $region97: #{tpu_custom_call.1} parent=11 // pred_check
          %p624 = pneg %p520
        $region98: #{tpu_custom_call.1} parent=11 // pred_check_branch
          %626 = sbr.rel (%p624) target = $region100
        $region99: #{tpu_custom_call.1} parent=11 // pred_region
          _
        $region100: #{tpu_custom_call.1} parent=11 // pred_fallthru
          _
      $region12: #{tpu_custom_call.1} parent=5 // pred_fallthru
        _
      %p627 = scmp.lt.s32.totalorder %s32, 2
      // Predicated region
      $region101: #{tpu_custom_call.1} parent=5 // pred_check
        %p628 = pneg %p627
      $region102: #{tpu_custom_call.1} parent=5 // pred_check_branch
        %630 = sbr.rel (%p628) target = $region104
      $region103: #{tpu_custom_call.1} parent=5 // pred_region
        // Predicated region
        $region105: #{tpu_custom_call.1} parent=103 // pred_check
          %p631 = pneg %p52
        $region106: #{tpu_custom_call.1} parent=103 // pred_check_branch
          %633 = sbr.rel (%p631) target = $region108
        $region107: #{tpu_custom_call.1} parent=103 // pred_region
          %p634 = scmp.lt.s32.totalorder %s32, 1
          %s635 = scalar_select %p634, %s32, 1
          %s636 = smul.addr %s635, 8
          %s637 = smul.addr %s636, 8
          %s638 = scalar_lea.vmem %s0, %s637
        $region108: #{tpu_custom_call.1} parent=103 // pred_fallthru
          _
      $region104: #{tpu_custom_call.1} parent=5 // pred_fallthru
        _
      %p639 = scmp.le.s32.totalorder 1, %s32
      %p640 = scmp.lt.s32.totalorder %s32, 3
      %p641 = pnand %p639, %p640
      %p642 = pneg %p641
      // Predicated region
      $region109: #{tpu_custom_call.1} parent=5 // pred_check
        _
      $region110: #{tpu_custom_call.1} parent=5 // pred_check_branch
        %644 = sbr.rel (%p641) target = $region112
      $region111: #{tpu_custom_call.1} parent=5 // pred_region
        %s645 = ssub.s32 %s32, 1
        %p646 = scmp.lt.s32.totalorder %s37, 1
        %s647 = scalar_select %p646, %s37, 1
        %s648 = smul.addr %s647, 8
        %s649 = smul.addr %s648, 8
        %s650 = scalar_lea.vmem %s0, %s649
        %p651 = pneg %p58
        %p652 = pneg %p55
        %p653 = pneg %p79
        %p654 = pneg %p76
        %p655 = pneg %p100
        %p656 = pneg %p97
        %p657 = pneg %p121
        %p658 = pneg %p118
        %p659 = pneg %p142
        %p660 = pneg %p139
        %p661 = pneg %p163
        %p662 = pneg %p160
        %p663 = pneg %p184
        %p664 = pneg %p181
        %p665 = pneg %p205
        %p666 = pneg %p202
        %p667 = pneg %p226
        %p668 = pneg %p223
        %p669 = pneg %p247
        %p670 = pneg %p244
        %p671 = pneg %p268
        %p672 = pneg %p265
        %p673 = pneg %p289
        %p674 = pneg %p286
        %p675 = pneg %p310
        %p676 = pneg %p307
        %p677 = pneg %p331
        %p678 = pneg %p328
        %p679 = pneg %p352
        %p680 = pneg %p349
        %p681 = pneg %p373
        %p682 = pneg %p370
        %p683 = pneg %p394
        %p684 = pneg %p391
        %p685 = pneg %p415
        %p686 = pneg %p412
        %p687 = pneg %p436
        %p688 = pneg %p433
        %p689 = pneg %p457
        %p690 = pneg %p454
        %p691 = pneg %p478
        %p692 = pneg %p475
        %p693 = pneg %p499
        %p694 = pneg %p496
        %p695 = pneg %p520
        %p696 = pneg %p517
        %p697 = pneg %p546
        %p698 = pneg %p543
        %s699 = sand.u32 %s533, 1
        %s700 = scalar_lea.sflag [#allocation4], %s699
        %s701 = sand.u32 %s533, 1
        %s702 = smul.addr %s701, 64
        %s703 = scalar_lea.vmem [#allocation3], %s702
        %p704 = scmp.lt.s32.totalorder %s37, 1
        %s705 = scalar_select %p704, %s37, 1
        %s706 = smul.addr %s705, 8
        %s707 = smul.addr %s706, 8
        %s708 = scalar_lea.vmem %s0, %s707
        %v710 = vld [vmem:[%s708] sm:$0xff]
        %v711 = vld [vmem:[%s708 + $0x8] sm:$0xff]
        %v712 = vld [vmem:[%s708 + $0x10] sm:$0xff]
        %v713 = vld [vmem:[%s708 + $0x18] sm:$0xff]
        %v714 = vld [vmem:[%s708 + $0x20] sm:$0xff]
        %v715 = vld [vmem:[%s708 + $0x28] sm:$0xff]
        %v716 = vld [vmem:[%s708 + $0x30] sm:$0xff]
        %v717 = vld [vmem:[%s708 + $0x38] sm:$0xff]
        %v718 = vld [vmem:[%s1] sm:$0xf]
        %v719 = vld [vmem:[%s1 + $0x4] sm:$0xf]
        %v720 = vld [vmem:[%s1 + $0x8] sm:$0xf]
        %v721 = vld [vmem:[%s1 + $0xc] sm:$0xf]
        %v722 = vld [vmem:[%s1 + $0x10] sm:$0xf]
        %v723 = vld [vmem:[%s1 + $0x14] sm:$0xf]
        %v724 = vld [vmem:[%s1 + $0x18] sm:$0xf]
        %v725 = vld [vmem:[%s1 + $0x1c] sm:$0xf]
        %v726 = vpack.c.bf16 %v711, %v710
        %v727 = vpack.c.bf16 %v713, %v712
        %v728 = vpack.c.bf16 %v715, %v714
        %v729 = vpack.c.bf16 %v717, %v716
        %v730 = vld [vmem:[%s2] sm:$0xff]
        %v731 = vld [vmem:[%s2 + $0x8] sm:$0xff]
        %v732 = vld [vmem:[%s2 + $0x10] sm:$0xff]
        %v733 = vld [vmem:[%s2 + $0x18] sm:$0xff]
        %v734 = vld [vmem:[%s2 + $0x20] sm:$0xff]
        %v735 = vld [vmem:[%s2 + $0x28] sm:$0xff]
        %v736 = vld [vmem:[%s2 + $0x30] sm:$0xff]
        %v737 = vld [vmem:[%s2 + $0x38] sm:$0xff]
        %739 = vset.pattern.permute.xlu0 0
        %740 = vperm.xlu0 %739, %v730
        %v741 = vpop.permute.xlu0 %740
        %744 = vset.pattern.permute.xlu0 0
        %745 = vperm.xlu0 %744, %v731
        %v746 = vpop.permute.xlu0 %745
        %749 = vset.pattern.permute.xlu0 0
        %750 = vperm.xlu0 %749, %v732
        %v751 = vpop.permute.xlu0 %750
        %754 = vset.pattern.permute.xlu0 0
        %755 = vperm.xlu0 %754, %v733
        %v756 = vpop.permute.xlu0 %755
        %759 = vset.pattern.permute.xlu0 0
        %760 = vperm.xlu0 %759, %v734
        %v761 = vpop.permute.xlu0 %760
        %764 = vset.pattern.permute.xlu0 0
        %765 = vperm.xlu0 %764, %v735
        %v766 = vpop.permute.xlu0 %765
        %769 = vset.pattern.permute.xlu0 0
        %770 = vperm.xlu0 %769, %v736
        %v771 = vpop.permute.xlu0 %770
        %774 = vset.pattern.permute.xlu0 0
        %775 = vperm.xlu0 %774, %v737
        %v776 = vpop.permute.xlu0 %775
        %v786 = vunpack.c.l.b16 %v718
        %v787 = vunpack.c.l.b16 %v719
        %v788 = vunpack.c.l.b16 %v720
        %v789 = vunpack.c.l.b16 %v721
        %v790 = vunpack.c.l.b16 %v722
        %v791 = vunpack.c.l.b16 %v723
        %v792 = vunpack.c.l.b16 %v724
        %v793 = vunpack.c.l.b16 %v725
        %v794 = vpack.c.b16 %v787, %v786
        %v795 = vpack.c.b16 %v789, %v788
        %v796 = vpack.c.b16 %v791, %v790
        %v797 = vpack.c.b16 %v793, %v792
        %vm798 = vcmask 523264
        %v800 = vsel %vm798, %v794, 0
        %v803 = vsel %vm798, %v795, 0
        %v806 = vsel %vm798, %v796, 0
        %v809 = vsel %vm798, %v797, 0
        %811 = vmatprep.subr.bf16.mxu0 0
        %812 = vmatpush1.bf16.msra.mxu0 %v726
        %813 = vmatprep.subr.bf16.mxu0 0
        %814 = vmatpush1.bf16.msra.mxu0 %v727
        %815 = vmatprep.subr.bf16.mxu0 0
        %816 = vmatpush1.bf16.msra.mxu0 %v728
        %817 = vmatprep.subr.bf16.mxu0 0
        %818 = vmatpush1.bf16.msra.mxu0 %v729
        %819 = vmatprep.subr.bf16.mxu0 0
        %820 = vmatpush1.bf16.msra.mxu0 0
        %821 = vmatprep.subr.bf16.mxu0 0
        %822 = vmatpush1.bf16.msra.mxu0 0
        %823 = vmatprep.subr.bf16.mxu0 0
        %824 = vmatpush1.bf16.msra.mxu0 0
        %825 = vmatprep.subr.bf16.mxu0 0
        %826 = vmatpush1.bf16.msra.mxu0 0
        %827 = vmatprep.subr.bf16.mxu0 0
        %828 = vmatpush1.bf16.msra.mxu0 0
        %829 = vmatprep.subr.bf16.mxu0 0
        %830 = vmatpush1.bf16.msra.mxu0 0
        %831 = vmatprep.subr.bf16.mxu0 0
        %832 = vmatpush1.bf16.msra.mxu0 0
        %833 = vmatprep.subr.bf16.mxu0 0
        %834 = vmatpush1.bf16.msra.mxu0 0
        %835 = vmatprep.subr.bf16.mxu0 0
        %836 = vmatpush1.bf16.msra.mxu0 0
        %837 = vmatprep.subr.bf16.mxu0 0
        %838 = vmatpush1.bf16.msra.mxu0 0
        %839 = vmatprep.subr.bf16.mxu0 0
        %840 = vmatpush1.bf16.msra.mxu0 0
        %841 = vmatprep.subr.bf16.mxu0 0
        %842 = vmatpush1.bf16.msra.mxu0 0
        %843 = vmatprep.mubr.bf16.mxu0 0
        %844 = vmatmul.mubr.bf16.gmra.mrb[0].mxu0 %v800
        %v845 = vpop.f32.mrb[0].mxu0
        %v846 = vadd.f32 %v741, %v845
        %v847 = vpop.f32.mrb[0].mxu0
        %v848 = vpop.f32.mrb[0].mxu0
        %v849 = vadd.f32 %v746, %v848
        %v850 = vpop.f32.mrb[0].mxu0
        %851 = vmatprep.mubr.bf16.mxu0 0
        %852 = vmatmul.mubr.bf16.gmra.mrb[0].mxu0 %v803
        %v853 = vpop.f32.mrb[0].mxu0
        %v854 = vadd.f32 %v751, %v853
        %v855 = vpop.f32.mrb[0].mxu0
        %v856 = vpop.f32.mrb[0].mxu0
        %v857 = vadd.f32 %v756, %v856
        %v858 = vpop.f32.mrb[0].mxu0
        %859 = vmatprep.mubr.bf16.mxu0 0
        %860 = vmatmul.mubr.bf16.gmra.mrb[0].mxu0 %v806
        %v861 = vpop.f32.mrb[0].mxu0
        %v862 = vadd.f32 %v761, %v861
        %v863 = vpop.f32.mrb[0].mxu0
        %v864 = vpop.f32.mrb[0].mxu0
        %v865 = vadd.f32 %v766, %v864
        %v866 = vpop.f32.mrb[0].mxu0
        %867 = vmatprep.mubr.bf16.mxu0 0
        %868 = vmatmul.mubr.bf16.gmra.mrb[0].mxu0 %v809
        %v869 = vpop.f32.mrb[0].mxu0
        %v870 = vadd.f32 %v771, %v869
        %v871 = vpop.f32.mrb[0].mxu0
        %v872 = vpop.f32.mrb[0].mxu0
        %v873 = vadd.f32 %v776, %v872
        %v874 = vpop.f32.mrb[0].mxu0
        %875 = vdwg.mxu0
        %v876 = vmax.f32 %v846, 0.0
        %v877 = vmax.f32 %v849, 0.0
        %v878 = vmax.f32 %v854, 0.0
        %v879 = vmax.f32 %v857, 0.0
        %v880 = vmax.f32 %v862, 0.0
        %v881 = vmax.f32 %v865, 0.0
        %v882 = vmax.f32 %v870, 0.0
        %v883 = vmax.f32 %v873, 0.0
        %v884 = vld [vmem:[%s3] sm:$0xff]
        %v885 = vld [vmem:[%s3 + $0x8] sm:$0xff]
        %v886 = vld [vmem:[%s3 + $0x10] sm:$0xff]
        %v887 = vld [vmem:[%s3 + $0x18] sm:$0xff]
        %v888 = vld [vmem:[%s3 + $0x20] sm:$0xff]
        %v889 = vld [vmem:[%s3 + $0x28] sm:$0xff]
        %v890 = vld [vmem:[%s3 + $0x30] sm:$0xff]
        %v891 = vld [vmem:[%s3 + $0x38] sm:$0xff]
        %893 = vset.pattern.permute.xlu0 0
        %894 = vperm.xlu0 %893, %v884
        %v895 = vpop.permute.xlu0 %894
        %898 = vset.pattern.permute.xlu0 0
        %899 = vperm.xlu0 %898, %v885
        %v900 = vpop.permute.xlu0 %899
        %903 = vset.pattern.permute.xlu0 0
        %904 = vperm.xlu0 %903, %v886
        %v905 = vpop.permute.xlu0 %904
        %908 = vset.pattern.permute.xlu0 0
        %909 = vperm.xlu0 %908, %v887
        %v910 = vpop.permute.xlu0 %909
        %913 = vset.pattern.permute.xlu0 0
        %914 = vperm.xlu0 %913, %v888
        %v915 = vpop.permute.xlu0 %914
        %918 = vset.pattern.permute.xlu0 0
        %919 = vperm.xlu0 %918, %v889
        %v920 = vpop.permute.xlu0 %919
        %923 = vset.pattern.permute.xlu0 0
        %924 = vperm.xlu0 %923, %v890
        %v925 = vpop.permute.xlu0 %924
        %928 = vset.pattern.permute.xlu0 0
        %929 = vperm.xlu0 %928, %v891
        %v930 = vpop.permute.xlu0 %929
        %v932 = vmul.f32 %v876, %v895
        %v933 = vmul.f32 %v877, %v900
        %v934 = vmul.f32 %v878, %v905
        %v935 = vmul.f32 %v879, %v910
        %v936 = vmul.f32 %v880, %v915
        %v937 = vmul.f32 %v881, %v920
        %v938 = vmul.f32 %v882, %v925
        %v939 = vmul.f32 %v883, %v930
        %v940 = vld [vmem:[%s4] sm:$0xff]
        %v941 = vld [vmem:[%s4 + $0x8] sm:$0xff]
        %v942 = vld [vmem:[%s4 + $0x10] sm:$0xff]
        %v943 = vld [vmem:[%s4 + $0x18] sm:$0xff]
        %v944 = vld [vmem:[%s4 + $0x20] sm:$0xff]
        %v945 = vld [vmem:[%s4 + $0x28] sm:$0xff]
        %v946 = vld [vmem:[%s4 + $0x30] sm:$0xff]
        %v947 = vld [vmem:[%s4 + $0x38] sm:$0xff]
        %949 = vset.pattern.permute.xlu0 0
        %950 = vperm.xlu0 %949, %v940
        %v951 = vpop.permute.xlu0 %950
        %954 = vset.pattern.permute.xlu0 0
        %955 = vperm.xlu0 %954, %v941
        %v956 = vpop.permute.xlu0 %955
        %959 = vset.pattern.permute.xlu0 0
        %960 = vperm.xlu0 %959, %v942
        %v961 = vpop.permute.xlu0 %960
        %964 = vset.pattern.permute.xlu0 0
        %965 = vperm.xlu0 %964, %v943
        %v966 = vpop.permute.xlu0 %965
        %969 = vset.pattern.permute.xlu0 0
        %970 = vperm.xlu0 %969, %v944
        %v971 = vpop.permute.xlu0 %970
        %974 = vset.pattern.permute.xlu0 0
        %975 = vperm.xlu0 %974, %v945
        %v976 = vpop.permute.xlu0 %975
        %979 = vset.pattern.permute.xlu0 0
        %980 = vperm.xlu0 %979, %v946
        %v981 = vpop.permute.xlu0 %980
        %984 = vset.pattern.permute.xlu0 0
        %985 = vperm.xlu0 %984, %v947
        %v986 = vpop.permute.xlu0 %985
        %v988 = vadd.f32 %v932, %v951
        %v989 = vadd.f32 %v933, %v956
        %v990 = vadd.f32 %v934, %v961
        %v991 = vadd.f32 %v935, %v966
        %v992 = vadd.f32 %v936, %v971
        %v993 = vadd.f32 %v937, %v976
        %v994 = vadd.f32 %v938, %v981
        %v995 = vadd.f32 %v939, %v986
        %v996 = vlaneseq
        %v997 = vand.u32 %v996, 127
        %998 = vrot.lane.b32.xlu0 %v988, 3
        %v999 = vpop.permute.xlu0 %998
        %vm1000 = vcmp.ge.s32.totalorder %v997, 3
        %v1001 = vsel %vm1000, %v999, 0.0
        %1002 = vrot.lane.b32.xlu0 %v988, 2
        %v1003 = vpop.permute.xlu0 %1002
        %vm1004 = vcmp.ge.s32.totalorder %v997, 2
        %v1005 = vsel %vm1004, %v1003, 0.0
        %1006 = vrot.lane.b32.xlu0 %v988, 1
        %v1007 = vpop.permute.xlu0 %1006
        %vm1008 = vcmp.ge.s32.totalorder %v997, 1
        %v1009 = vsel %vm1008, %v1007, 0.0
        %1010 = vrot.lane.b32.xlu0 %v988, 127
        %v1011 = vpop.permute.xlu0 %1010
        %vm1012 = vcmp.lt.s32.totalorder %v997, 127
        %v1013 = vsel %vm1012, %v1011, 0.0
        %1014 = vrot.lane.b32.xlu0 %v988, 126
        %v1015 = vpop.permute.xlu0 %1014
        %vm1016 = vcmp.lt.s32.totalorder %v997, 126
        %v1017 = vsel %vm1016, %v1015, 0.0
        %1018 = vrot.lane.b32.xlu0 %v988, 125
        %v1019 = vpop.permute.xlu0 %1018
        %vm1020 = vcmp.lt.s32.totalorder %v997, 125
        %v1021 = vsel %vm1020, %v1019, 0.0
        %v1022 = vld [vmem:[%s5] sm:$0xf]
        %v1023 = vld [vmem:[%s5 + $0x4] sm:$0xf]
        %v1024 = vpack.c.bf16 %v1005, %v1001
        %v1025 = vpack.c.bf16 %v988, %v1009
        %v1026 = vpack.c.bf16 %v1017, %v1013
        %v1027 = vpack.c.bf16 0.0, %v1021
        %v1028 = vld [vmem:[%s6] sm:$0xff]
        %v1029 = vld [vmem:[%s6 + $0x8] sm:$0xff]
        %1031 = vset.pattern.permute.xlu0 0
        %1032 = vperm.xlu0 %1031, %v1028
        %v1033 = vpop.permute.xlu0 %1032
        %1036 = vset.pattern.permute.xlu0 0
        %1037 = vperm.xlu0 %1036, %v1029
        %v1038 = vpop.permute.xlu0 %1037
        %v1042 = vunpack.c.l.b16 %v1022
        %v1043 = vunpack.c.l.b16 %v1023
        %v1044 = vpack.c.b16 %v1043, %v1042
        %v1046 = vsel %vm798, %v1044, 0
        %1048 = vmatprep.subr.bf16.mxu0 0
        %1049 = vmatpush1.bf16.msra.mxu0 %v1024
        %1050 = vmatprep.subr.bf16.mxu0 0
        %1051 = vmatpush1.bf16.msra.mxu0 %v1025
        %1052 = vmatprep.subr.bf16.mxu0 0
        %1053 = vmatpush1.bf16.msra.mxu0 %v1026
        %1054 = vmatprep.subr.bf16.mxu0 0
        %1055 = vmatpush1.bf16.msra.mxu0 %v1027
        %1056 = vmatprep.subr.bf16.mxu0 0
        %1057 = vmatpush1.bf16.msra.mxu0 0
        %1058 = vmatprep.subr.bf16.mxu0 0
        %1059 = vmatpush1.bf16.msra.mxu0 0
        %1060 = vmatprep.subr.bf16.mxu0 0
        %1061 = vmatpush1.bf16.msra.mxu0 0
        %1062 = vmatprep.subr.bf16.mxu0 0
        %1063 = vmatpush1.bf16.msra.mxu0 0
        %1064 = vmatprep.subr.bf16.mxu0 0
        %1065 = vmatpush1.bf16.msra.mxu0 0
        %1066 = vmatprep.subr.bf16.mxu0 0
        %1067 = vmatpush1.bf16.msra.mxu0 0
        %1068 = vmatprep.subr.bf16.mxu0 0
        %1069 = vmatpush1.bf16.msra.mxu0 0
        %1070 = vmatprep.subr.bf16.mxu0 0
        %1071 = vmatpush1.bf16.msra.mxu0 0
        %1072 = vmatprep.subr.bf16.mxu0 0
        %1073 = vmatpush1.bf16.msra.mxu0 0
        %1074 = vmatprep.subr.bf16.mxu0 0
        %1075 = vmatpush1.bf16.msra.mxu0 0
        %1076 = vmatprep.subr.bf16.mxu0 0
        %1077 = vmatpush1.bf16.msra.mxu0 0
        %1078 = vmatprep.subr.bf16.mxu0 0
        %1079 = vmatpush1.bf16.msra.mxu0 0
        %1080 = vmatprep.mubr.bf16.mxu0 0
        %1081 = vmatmul.mubr.bf16.gmra.mrb[0].mxu0 %v1046
        %v1082 = vpop.f32.mrb[0].mxu0
        %v1083 = vadd.f32 %v1033, %v1082
        %v1084 = vpop.f32.mrb[0].mxu0
        %v1085 = vpop.f32.mrb[0].mxu0
        %v1086 = vadd.f32 %v1038, %v1085
        %v1087 = vpop.f32.mrb[0].mxu0
        %1088 = vdwg.mxu0
        %v1089 = vmax.f32 %v1083, 0.0
        %v1090 = vmax.f32 %v1086, 0.0
        %v1091 = vld [vmem:[%s7] sm:$0xff]
        %v1092 = vld [vmem:[%s7 + $0x8] sm:$0xff]
        %1094 = vset.pattern.permute.xlu0 0
        %1095 = vperm.xlu0 %1094, %v1091
        %v1096 = vpop.permute.xlu0 %1095
        %1099 = vset.pattern.permute.xlu0 0
        %1100 = vperm.xlu0 %1099, %v1092
        %v1101 = vpop.permute.xlu0 %1100
        %v1103 = vmul.f32 %v1089, %v1096
        %v1104 = vmul.f32 %v1090, %v1101
        %v1105 = vld [vmem:[%s8] sm:$0xff]
        %v1106 = vld [vmem:[%s8 + $0x8] sm:$0xff]
        %1108 = vset.pattern.permute.xlu0 0
        %1109 = vperm.xlu0 %1108, %v1105
        %v1110 = vpop.permute.xlu0 %1109
        %1113 = vset.pattern.permute.xlu0 0
        %1114 = vperm.xlu0 %1113, %v1106
        %v1115 = vpop.permute.xlu0 %1114
        %v1117 = vadd.f32 %v1103, %v1110
        %v1118 = vadd.f32 %v1104, %v1115
        %v1119 = vadd.f32 %v1117, %v1118
        %1120 = vadd.xlane.f32.xlu0 %v1119
        %v1121 = vpop.xlane.xlu0 %1120
        %v1122 = vrcp.pop 128.0
        %v1123 = vmul.f32 %v1121, %v1122
        %v1124 = vld [vmem:[%s9] sm:$0xf]
        %v1125 = vld [vmem:[%s9 + $0x4] sm:$0xf]
        %v1126 = vpack.c.bf16 %v1123, %v1123
        %v1127 = vld [vmem:[%s10] sm:$0xff]
        %v1128 = vld [vmem:[%s10 + $0x8] sm:$0xff]
        %1130 = vset.pattern.permute.xlu0 0
        %1131 = vperm.xlu0 %1130, %v1127
        %v1132 = vpop.permute.xlu0 %1131
        %1135 = vset.pattern.permute.xlu0 0
        %1136 = vperm.xlu0 %1135, %v1128
        %v1137 = vpop.permute.xlu0 %1136
        %v1141 = vunpack.c.l.b16 %v1124
        %v1142 = vunpack.c.l.b16 %v1125
        %v1143 = vpack.c.b16 %v1142, %v1141
        %vm1144 = vcmask 64512
        %v1146 = vsel %vm1144, %v1143, 0
        %vm1148 = vcmask 1043456
        %v1150 = vsel %vm1148, %v1126, 0
        %1152 = vmatprep.subr.bf16.mxu0 0
        %1153 = vmatpush1.bf16.msra.mxu0 %v1150
        %1154 = vmatprep.subr.bf16.mxu0 0
        %1155 = vmatpush1.bf16.msra.mxu0 0
        %1156 = vmatprep.subr.bf16.mxu0 0
        %1157 = vmatpush1.bf16.msra.mxu0 0
        %1158 = vmatprep.subr.bf16.mxu0 0
        %1159 = vmatpush1.bf16.msra.mxu0 0
        %1160 = vmatprep.subr.bf16.mxu0 0
        %1161 = vmatpush1.bf16.msra.mxu0 0
        %1162 = vmatprep.subr.bf16.mxu0 0
        %1163 = vmatpush1.bf16.msra.mxu0 0
        %1164 = vmatprep.subr.bf16.mxu0 0
        %1165 = vmatpush1.bf16.msra.mxu0 0
        %1166 = vmatprep.subr.bf16.mxu0 0
        %1167 = vmatpush1.bf16.msra.mxu0 0
        %1168 = vmatprep.subr.bf16.mxu0 0
        %1169 = vmatpush1.bf16.msra.mxu0 0
        %1170 = vmatprep.subr.bf16.mxu0 0
        %1171 = vmatpush1.bf16.msra.mxu0 0
        %1172 = vmatprep.subr.bf16.mxu0 0
        %1173 = vmatpush1.bf16.msra.mxu0 0
        %1174 = vmatprep.subr.bf16.mxu0 0
        %1175 = vmatpush1.bf16.msra.mxu0 0
        %1176 = vmatprep.subr.bf16.mxu0 0
        %1177 = vmatpush1.bf16.msra.mxu0 0
        %1178 = vmatprep.subr.bf16.mxu0 0
        %1179 = vmatpush1.bf16.msra.mxu0 0
        %1180 = vmatprep.subr.bf16.mxu0 0
        %1181 = vmatpush1.bf16.msra.mxu0 0
        %1182 = vmatprep.subr.bf16.mxu0 0
        %1183 = vmatpush1.bf16.msra.mxu0 0
        %1184 = vmatprep.mubr.bf16.mxu0 0
        %1185 = vmatmul.mubr.bf16.gmra.mrb[0].mxu0 %v1146
        %v1186 = vpop.f32.mrb[0].mxu0
        %v1187 = vadd.f32 %v1132, %v1186
        %v1188 = vpop.f32.mrb[0].mxu0
        %v1189 = vpop.f32.mrb[0].mxu0
        %v1190 = vadd.f32 %v1137, %v1189
        %v1191 = vpop.f32.mrb[0].mxu0
        %1192 = vdwg.mxu0
        %v1193 = vmax.f32 %v1187, 0.0
        %v1194 = vmax.f32 %v1190, 0.0
        %v1195 = vld [vmem:[%s11] sm:$0xf]
        %v1196 = vld [vmem:[%s11 + $0x4] sm:$0xf]
        %v1197 = vpack.c.bf16 %v1194, %v1193
        %v1198 = vld [vmem:[%s12] sm:$0xff]
        %v1199 = vld [vmem:[%s12 + $0x8] sm:$0xff]
        %1201 = vset.pattern.permute.xlu0 0
        %1202 = vperm.xlu0 %1201, %v1198
        %v1203 = vpop.permute.xlu0 %1202
        %1206 = vset.pattern.permute.xlu0 0
        %1207 = vperm.xlu0 %1206, %v1199
        %v1208 = vpop.permute.xlu0 %1207
        %v1212 = vunpack.c.l.b16 %v1195
        %v1213 = vunpack.c.l.b16 %v1196
        %v1214 = vpack.c.b16 %v1213, %v1212
        %vm1215 = vcmask 130048
        %v1217 = vsel %vm1215, %v1214, 0
        %1219 = vmatprep.subr.bf16.mxu0 0
        %1220 = vmatpush1.bf16.msra.mxu0 %v1197
        %1221 = vmatprep.subr.bf16.mxu0 0
        %1222 = vmatpush1.bf16.msra.mxu0 0
        %1223 = vmatprep.subr.bf16.mxu0 0
        %1224 = vmatpush1.bf16.msra.mxu0 0
        %1225 = vmatprep.subr.bf16.mxu0 0
        %1226 = vmatpush1.bf16.msra.mxu0 0
        %1227 = vmatprep.subr.bf16.mxu0 0
        %1228 = vmatpush1.bf16.msra.mxu0 0
        %1229 = vmatprep.subr.bf16.mxu0 0
        %1230 = vmatpush1.bf16.msra.mxu0 0
        %1231 = vmatprep.subr.bf16.mxu0 0
        %1232 = vmatpush1.bf16.msra.mxu0 0
        %1233 = vmatprep.subr.bf16.mxu0 0
        %1234 = vmatpush1.bf16.msra.mxu0 0
        %1235 = vmatprep.subr.bf16.mxu0 0
        %1236 = vmatpush1.bf16.msra.mxu0 0
        %1237 = vmatprep.subr.bf16.mxu0 0
        %1238 = vmatpush1.bf16.msra.mxu0 0
        %1239 = vmatprep.subr.bf16.mxu0 0
        %1240 = vmatpush1.bf16.msra.mxu0 0
        %1241 = vmatprep.subr.bf16.mxu0 0
        %1242 = vmatpush1.bf16.msra.mxu0 0
        %1243 = vmatprep.subr.bf16.mxu0 0
        %1244 = vmatpush1.bf16.msra.mxu0 0
        %1245 = vmatprep.subr.bf16.mxu0 0
        %1246 = vmatpush1.bf16.msra.mxu0 0
        %1247 = vmatprep.subr.bf16.mxu0 0
        %1248 = vmatpush1.bf16.msra.mxu0 0
        %1249 = vmatprep.subr.bf16.mxu0 0
        %1250 = vmatpush1.bf16.msra.mxu0 0
        %1251 = vmatprep.mubr.bf16.mxu0 0
        %1252 = vmatmul.mubr.bf16.gmra.mrb[0].mxu0 %v1217
        %v1253 = vpop.f32.mrb[0].mxu0
        %v1254 = vadd.f32 %v1203, %v1253
        %v1255 = vpop.f32.mrb[0].mxu0
        %v1256 = vpop.f32.mrb[0].mxu0
        %v1257 = vadd.f32 %v1208, %v1256
        %v1258 = vpop.f32.mrb[0].mxu0
        %1259 = vdwg.mxu0
        %v1260 = vmax.f32 %v1254, %v1257
        %v1261 = vsub.f32 %v1254, %v1260
        %v1262 = vmul.f32 %v1261, 1.442695
        %v1263 = vpow.pop %v1262
        %v1264 = vsub.f32 %v1257, %v1260
        %v1265 = vmul.f32 %v1264, 1.442695
        %v1266 = vpow.pop %v1265
        %v1267 = vadd.f32 %v1263, %v1266
        %v1268 = vrcp.pop %v1267
        %v1269 = vmul.f32 %v1263, %v1268
        %v1270 = vmul.f32 %v1269, %v1117
        %v1271 = vmul.f32 %v1266, %v1268
        %v1272 = vmul.f32 %v1271, %v1118
        %v1273 = vadd.f32 %v1270, %v1272
        %1274 = vst [vmem:[#allocation2] sm:$0xff] %v1273
        %v1275 = vadd.f32 %v1273, %v989
        %1276 = vrot.lane.b32.xlu0 %v1275, 3
        %v1277 = vpop.permute.xlu0 %1276
        %v1278 = vsel %vm1000, %v1277, 0.0
        %1279 = vrot.lane.b32.xlu0 %v1275, 2
        %v1280 = vpop.permute.xlu0 %1279
        %v1281 = vsel %vm1004, %v1280, 0.0
        %1282 = vrot.lane.b32.xlu0 %v1275, 1
        %v1283 = vpop.permute.xlu0 %1282
        %v1284 = vsel %vm1008, %v1283, 0.0
        %1285 = vrot.lane.b32.xlu0 %v1275, 127
        %v1286 = vpop.permute.xlu0 %1285
        %v1287 = vsel %vm1012, %v1286, 0.0
        %1288 = vrot.lane.b32.xlu0 %v1275, 126
        %v1289 = vpop.permute.xlu0 %1288
        %v1290 = vsel %vm1016, %v1289, 0.0
        %1291 = vrot.lane.b32.xlu0 %v1275, 125
        %v1292 = vpop.permute.xlu0 %1291
        %v1293 = vsel %vm1020, %v1292, 0.0
        %s1294 = scalar_lea.vmem %s5, 8
        %v1295 = vld [vmem:[%s1294] sm:$0xf]
        %v1296 = vld [vmem:[%s1294 + $0x4] sm:$0xf]
        %v1297 = vpack.c.bf16 %v1281, %v1278
        %v1298 = vpack.c.bf16 %v1275, %v1284
        %v1299 = vpack.c.bf16 %v1290, %v1287
        %v1300 = vpack.c.bf16 0.0, %v1293
        %s1301 = scalar_lea.vmem %s6, 16
        %v1302 = vld [vmem:[%s1301] sm:$0xff]
        %v1303 = vld [vmem:[%s1301 + $0x8] sm:$0xff]
        %1305 = vset.pattern.permute.xlu0 0
        %1306 = vperm.xlu0 %1305, %v1302
        %v1307 = vpop.permute.xlu0 %1306
        %1310 = vset.pattern.permute.xlu0 0
        %1311 = vperm.xlu0 %1310, %v1303
        %v1312 = vpop.permute.xlu0 %1311
        %v1316 = vunpack.c.l.b16 %v1295
        %v1317 = vunpack.c.l.b16 %v1296
        %v1318 = vpack.c.b16 %v1317, %v1316
        %v1320 = vsel %vm798, %v1318, 0
        %1322 = vmatprep.subr.bf16.mxu0 0
        %1323 = vmatpush1.bf16.msra.mxu0 %v1297
        %1324 = vmatprep.subr.bf16.mxu0 0
        %1325 = vmatpush1.bf16.msra.mxu0 %v1298
        %1326 = vmatprep.subr.bf16.mxu0 0
        %1327 = vmatpush1.bf16.msra.mxu0 %v1299
        %1328 = vmatprep.subr.bf16.mxu0 0
        %1329 = vmatpush1.bf16.msra.mxu0 %v1300
        %1330 = vmatprep.subr.bf16.mxu0 0
        %1331 = vmatpush1.bf16.msra.mxu0 0
        %1332 = vmatprep.subr.bf16.mxu0 0
        %1333 = vmatpush1.bf16.msra.mxu0 0
        %1334 = vmatprep.subr.bf16.mxu0 0
        %1335 = vmatpush1.bf16.msra.mxu0 0
        %1336 = vmatprep.subr.bf16.mxu0 0
        %1337 = vmatpush1.bf16.msra.mxu0 0
        %1338 = vmatprep.subr.bf16.mxu0 0
        %1339 = vmatpush1.bf16.msra.mxu0 0
        %1340 = vmatprep.subr.bf16.mxu0 0
        %1341 = vmatpush1.bf16.msra.mxu0 0
        %1342 = vmatprep.subr.bf16.mxu0 0
        %1343 = vmatpush1.bf16.msra.mxu0 0
        %1344 = vmatprep.subr.bf16.mxu0 0
        %1345 = vmatpush1.bf16.msra.mxu0 0
        %1346 = vmatprep.subr.bf16.mxu0 0
        %1347 = vmatpush1.bf16.msra.mxu0 0
        %1348 = vmatprep.subr.bf16.mxu0 0
        %1349 = vmatpush1.bf16.msra.mxu0 0
        %1350 = vmatprep.subr.bf16.mxu0 0
        %1351 = vmatpush1.bf16.msra.mxu0 0
        %1352 = vmatprep.subr.bf16.mxu0 0
        %1353 = vmatpush1.bf16.msra.mxu0 0
        %1354 = vmatprep.mubr.bf16.mxu0 0
        %1355 = vmatmul.mubr.bf16.gmra.mrb[0].mxu0 %v1320
        %v1356 = vpop.f32.mrb[0].mxu0
        %v1357 = vadd.f32 %v1307, %v1356
        %v1358 = vpop.f32.mrb[0].mxu0
        %v1359 = vpop.f32.mrb[0].mxu0
        %v1360 = vadd.f32 %v1312, %v1359
        %v1361 = vpop.f32.mrb[0].mxu0
        %1362 = vdwg.mxu0
        %v1363 = vmax.f32 %v1357, 0.0
        %v1364 = vmax.f32 %v1360, 0.0
        %s1365 = scalar_lea.vmem %s7, 16
        %v1366 = vld [vmem:[%s1365] sm:$0xff]
        %v1367 = vld [vmem:[%s1365 + $0x8] sm:$0xff]
        %1369 = vset.pattern.permute.xlu0 0
        %1370 = vperm.xlu0 %1369, %v1366
        %v1371 = vpop.permute.xlu0 %1370
        %1374 = vset.pattern.permute.xlu0 0
        %1375 = vperm.xlu0 %1374, %v1367
        %v1376 = vpop.permute.xlu0 %1375
        %v1378 = vmul.f32 %v1363, %v1371
        %v1379 = vmul.f32 %v1364, %v1376
        %s1380 = scalar_lea.vmem %s8, 16
        %v1381 = vld [vmem:[%s1380] sm:$0xff]
        %v1382 = vld [vmem:[%s1380 + $0x8] sm:$0xff]
        %1384 = vset.pattern.permute.xlu0 0
        %1385 = vperm.xlu0 %1384, %v1381
        %v1386 = vpop.permute.xlu0 %1385
        %1389 = vset.pattern.permute.xlu0 0
        %1390 = vperm.xlu0 %1389, %v1382
        %v1391 = vpop.permute.xlu0 %1390
        %v1393 = vadd.f32 %v1378, %v1386
        %v1394 = vadd.f32 %v1379, %v1391
        %v1395 = vadd.f32 %v1393, %v1394
        %1396 = vadd.xlane.f32.xlu0 %v1395
        %v1397 = vpop.xlane.xlu0 %1396
        %v1398 = vmul.f32 %v1397, %v1122
        %s1399 = scalar_lea.vmem %s9, 8
        %v1400 = vld [vmem:[%s1399] sm:$0xf]
        %v1401 = vld [vmem:[%s1399 + $0x4] sm:$0xf]
        %v1402 = vpack.c.bf16 %v1398, %v1398
        %s1403 = scalar_lea.vmem %s10, 16
        %v1404 = vld [vmem:[%s1403] sm:$0xff]
        %v1405 = vld [vmem:[%s1403 + $0x8] sm:$0xff]
        %1407 = vset.pattern.permute.xlu0 0
        %1408 = vperm.xlu0 %1407, %v1404
        %v1409 = vpop.permute.xlu0 %1408
        %1412 = vset.pattern.permute.xlu0 0
        %1413 = vperm.xlu0 %1412, %v1405
        %v1414 = vpop.permute.xlu0 %1413
        %v1418 = vunpack.c.l.b16 %v1400
        %v1419 = vunpack.c.l.b16 %v1401
        %v1420 = vpack.c.b16 %v1419, %v1418
        %v1422 = vsel %vm1144, %v1420, 0
        %v1425 = vsel %vm1148, %v1402, 0
        %1427 = vmatprep.subr.bf16.mxu0 0
        %1428 = vmatpush1.bf16.msra.mxu0 %v1425
        %1429 = vmatprep.subr.bf16.mxu0 0
        %1430 = vmatpush1.bf16.msra.mxu0 0
        %1431 = vmatprep.subr.bf16.mxu0 0
        %1432 = vmatpush1.bf16.msra.mxu0 0
        %1433 = vmatprep.subr.bf16.mxu0 0
        %1434 = vmatpush1.bf16.msra.mxu0 0
        %1435 = vmatprep.subr.bf16.mxu0 0
        %1436 = vmatpush1.bf16.msra.mxu0 0
        %1437 = vmatprep.subr.bf16.mxu0 0
        %1438 = vmatpush1.bf16.msra.mxu0 0
        %1439 = vmatprep.subr.bf16.mxu0 0
        %1440 = vmatpush1.bf16.msra.mxu0 0
        %1441 = vmatprep.subr.bf16.mxu0 0
        %1442 = vmatpush1.bf16.msra.mxu0 0
        %1443 = vmatprep.subr.bf16.mxu0 0
        %1444 = vmatpush1.bf16.msra.mxu0 0
        %1445 = vmatprep.subr.bf16.mxu0 0
        %1446 = vmatpush1.bf16.msra.mxu0 0
        %1447 = vmatprep.subr.bf16.mxu0 0
        %1448 = vmatpush1.bf16.msra.mxu0 0
        %1449 = vmatprep.subr.bf16.mxu0 0
        %1450 = vmatpush1.bf16.msra.mxu0 0
        %1451 = vmatprep.subr.bf16.mxu0 0
        %1452 = vmatpush1.bf16.msra.mxu0 0
        %1453 = vmatprep.subr.bf16.mxu0 0
        %1454 = vmatpush1.bf16.msra.mxu0 0
        %1455 = vmatprep.subr.bf16.mxu0 0
        %1456 = vmatpush1.bf16.msra.mxu0 0
        %1457 = vmatprep.subr.bf16.mxu0 0
        %1458 = vmatpush1.bf16.msra.mxu0 0
        %1459 = vmatprep.mubr.bf16.mxu0 0
        %1460 = vmatmul.mubr.bf16.gmra.mrb[0].mxu0 %v1422
        %v1461 = vpop.f32.mrb[0].mxu0
        %v1462 = vadd.f32 %v1409, %v1461
        %v1463 = vpop.f32.mrb[0].mxu0
        %v1464 = vpop.f32.mrb[0].mxu0
        %v1465 = vadd.f32 %v1414, %v1464
        %v1466 = vpop.f32.mrb[0].mxu0
        %1467 = vdwg.mxu0
        %v1468 = vmax.f32 %v1462, 0.0
        %v1469 = vmax.f32 %v1465, 0.0
        %s1470 = scalar_lea.vmem %s11, 8
        %v1471 = vld [vmem:[%s1470] sm:$0xf]
        %v1472 = vld [vmem:[%s1470 + $0x4] sm:$0xf]
        %v1473 = vpack.c.bf16 %v1469, %v1468
        %s1474 = scalar_lea.vmem %s12, 16
        %v1475 = vld [vmem:[%s1474] sm:$0xff]
        %v1476 = vld [vmem:[%s1474 + $0x8] sm:$0xff]
        %1478 = vset.pattern.permute.xlu0 0
        %1479 = vperm.xlu0 %1478, %v1475
        %v1480 = vpop.permute.xlu0 %1479
        %1483 = vset.pattern.permute.xlu0 0
        %1484 = vperm.xlu0 %1483, %v1476
        %v1485 = vpop.permute.xlu0 %1484
        %v1489 = vunpack.c.l.b16 %v1471
        %v1490 = vunpack.c.l.b16 %v1472
        %v1491 = vpack.c.b16 %v1490, %v1489
        %v1493 = vsel %vm1215, %v1491, 0
        %1495 = vmatprep.subr.bf16.mxu0 0
        %1496 = vmatpush1.bf16.msra.mxu0 %v1473
        %1497 = vmatprep.subr.bf16.mxu0 0
        %1498 = vmatpush1.bf16.msra.mxu0 0
        %1499 = vmatprep.subr.bf16.mxu0 0
        %1500 = vmatpush1.bf16.msra.mxu0 0
        %1501 = vmatprep.subr.bf16.mxu0 0
        %1502 = vmatpush1.bf16.msra.mxu0 0
        %1503 = vmatprep.subr.bf16.mxu0 0
        %1504 = vmatpush1.bf16.msra.mxu0 0
        %1505 = vmatprep.subr.bf16.mxu0 0
        %1506 = vmatpush1.bf16.msra.mxu0 0
        %1507 = vmatprep.subr.bf16.mxu0 0
        %1508 = vmatpush1.bf16.msra.mxu0 0
        %1509 = vmatprep.subr.bf16.mxu0 0
        %1510 = vmatpush1.bf16.msra.mxu0 0
        %1511 = vmatprep.subr.bf16.mxu0 0
        %1512 = vmatpush1.bf16.msra.mxu0 0
        %1513 = vmatprep.subr.bf16.mxu0 0
        %1514 = vmatpush1.bf16.msra.mxu0 0
        %1515 = vmatprep.subr.bf16.mxu0 0
        %1516 = vmatpush1.bf16.msra.mxu0 0
        %1517 = vmatprep.subr.bf16.mxu0 0
        %1518 = vmatpush1.bf16.msra.mxu0 0
        %1519 = vmatprep.subr.bf16.mxu0 0
        %1520 = vmatpush1.bf16.msra.mxu0 0
        %1521 = vmatprep.subr.bf16.mxu0 0
        %1522 = vmatpush1.bf16.msra.mxu0 0
        %1523 = vmatprep.subr.bf16.mxu0 0
        %1524 = vmatpush1.bf16.msra.mxu0 0
        %1525 = vmatprep.subr.bf16.mxu0 0
        %1526 = vmatpush1.bf16.msra.mxu0 0
        %1527 = vmatprep.mubr.bf16.mxu0 0
        %1528 = vmatmul.mubr.bf16.gmra.mrb[0].mxu0 %v1493
        %v1529 = vpop.f32.mrb[0].mxu0
        %v1530 = vadd.f32 %v1480, %v1529
        %v1531 = vpop.f32.mrb[0].mxu0
        %v1532 = vpop.f32.mrb[0].mxu0
        %v1533 = vadd.f32 %v1485, %v1532
        %v1534 = vpop.f32.mrb[0].mxu0
        %1535 = vdwg.mxu0
        %v1536 = vmax.f32 %v1530, %v1533
        %v1537 = vsub.f32 %v1530, %v1536
        %v1538 = vmul.f32 %v1537, 1.442695
        %v1539 = vpow.pop %v1538
        %v1540 = vsub.f32 %v1533, %v1536
        %v1541 = vmul.f32 %v1540, 1.442695
        %v1542 = vpow.pop %v1541
        %v1543 = vadd.f32 %v1539, %v1542
        %v1544 = vrcp.pop %v1543
        %v1545 = vmul.f32 %v1539, %v1544
        %v1546 = vmul.f32 %v1545, %v1393
        %v1547 = vmul.f32 %v1542, %v1544
        %v1548 = vmul.f32 %v1547, %v1394
        %v1549 = vadd.f32 %v1546, %v1548
        %1550 = vst [vmem:[#allocation2 + $0x8] sm:$0xff] %v1549
        %v1551 = vadd.f32 %v1549, %v990
        %1552 = vrot.lane.b32.xlu0 %v1551, 3
        %v1553 = vpop.permute.xlu0 %1552
        %v1554 = vsel %vm1000, %v1553, 0.0
        %1555 = vrot.lane.b32.xlu0 %v1551, 2
        %v1556 = vpop.permute.xlu0 %1555
        %v1557 = vsel %vm1004, %v1556, 0.0
        %1558 = vrot.lane.b32.xlu0 %v1551, 1
        %v1559 = vpop.permute.xlu0 %1558
        %v1560 = vsel %vm1008, %v1559, 0.0
        %1561 = vrot.lane.b32.xlu0 %v1551, 127
        %v1562 = vpop.permute.xlu0 %1561
        %v1563 = vsel %vm1012, %v1562, 0.0
        %1564 = vrot.lane.b32.xlu0 %v1551, 126
        %v1565 = vpop.permute.xlu0 %1564
        %v1566 = vsel %vm1016, %v1565, 0.0
        %1567 = vrot.lane.b32.xlu0 %v1551, 125
        %v1568 = vpop.permute.xlu0 %1567
        %v1569 = vsel %vm1020, %v1568, 0.0
        %s1570 = scalar_lea.vmem %s5, 16
        %v1571 = vld [vmem:[%s1570] sm:$0xf]
        %v1572 = vld [vmem:[%s1570 + $0x4] sm:$0xf]
        %v1573 = vpack.c.bf16 %v1557, %v1554
        %v1574 = vpack.c.bf16 %v1551, %v1560
        %v1575 = vpack.c.bf16 %v1566, %v1563
        %v1576 = vpack.c.bf16 0.0, %v1569
        %s1577 = scalar_lea.vmem %s6, 32
        %v1578 = vld [vmem:[%s1577] sm:$0xff]
        %v1579 = vld [vmem:[%s1577 + $0x8] sm:$0xff]
        %1581 = vset.pattern.permute.xlu0 0
        %1582 = vperm.xlu0 %1581, %v1578
        %v1583 = vpop.permute.xlu0 %1582
        %1586 = vset.pattern.permute.xlu0 0
        %1587 = vperm.xlu0 %1586, %v1579
        %v1588 = vpop.permute.xlu0 %1587
        %v1592 = vunpack.c.l.b16 %v1571
        %v1593 = vunpack.c.l.b16 %v1572
        %v1594 = vpack.c.b16 %v1593, %v1592
        %v1596 = vsel %vm798, %v1594, 0
        %1598 = vmatprep.subr.bf16.mxu0 0
        %1599 = vmatpush1.bf16.msra.mxu0 %v1573
        %1600 = vmatprep.subr.bf16.mxu0 0
        %1601 = vmatpush1.bf16.msra.mxu0 %v1574
        %1602 = vmatprep.subr.bf16.mxu0 0
        %1603 = vmatpush1.bf16.msra.mxu0 %v1575
        %1604 = vmatprep.subr.bf16.mxu0 0
        %1605 = vmatpush1.bf16.msra.mxu0 %v1576
        %1606 = vmatprep.subr.bf16.mxu0 0
        %1607 = vmatpush1.bf16.msra.mxu0 0
        %1608 = vmatprep.subr.bf16.mxu0 0
        %1609 = vmatpush1.bf16.msra.mxu0 0
        %1610 = vmatprep.subr.bf16.mxu0 0
        %1611 = vmatpush1.bf16.msra.mxu0 0
        %1612 = vmatprep.subr.bf16.mxu0 0
        %1613 = vmatpush1.bf16.msra.mxu0 0
        %1614 = vmatprep.subr.bf16.mxu0 0
        %1615 = vmatpush1.bf16.msra.mxu0 0
        %1616 = vmatprep.subr.bf16.mxu0 0
        %1617 = vmatpush1.bf16.msra.mxu0 0
        %1618 = vmatprep.subr.bf16.mxu0 0
        %1619 = vmatpush1.bf16.msra.mxu0 0
        %1620 = vmatprep.subr.bf16.mxu0 0
        %1621 = vmatpush1.bf16.msra.mxu0 0
        %1622 = vmatprep.subr.bf16.mxu0 0
        %1623 = vmatpush1.bf16.msra.mxu0 0
        %1624 = vmatprep.subr.bf16.mxu0 0
        %1625 = vmatpush1.bf16.msra.mxu0 0
        %1626 = vmatprep.subr.bf16.mxu0 0
        %1627 = vmatpush1.bf16.msra.mxu0 0
        %1628 = vmatprep.subr.bf16.mxu0 0
        %1629 = vmatpush1.bf16.msra.mxu0 0
        %1630 = vmatprep.mubr.bf16.mxu0 0
        %1631 = vmatmul.mubr.bf16.gmra.mrb[0].mxu0 %v1596
        %v1632 = vpop.f32.mrb[0].mxu0
        %v1633 = vadd.f32 %v1583, %v1632
        %v1634 = vpop.f32.mrb[0].mxu0
        %v1635 = vpop.f32.mrb[0].mxu0
        %v1636 = vadd.f32 %v1588, %v1635
        %v1637 = vpop.f32.mrb[0].mxu0
        %1638 = vdwg.mxu0
        %v1639 = vmax.f32 %v1633, 0.0
        %v1640 = vmax.f32 %v1636, 0.0
        %s1641 = scalar_lea.vmem %s7, 32
        %v1642 = vld [vmem:[%s1641] sm:$0xff]
        %v1643 = vld [vmem:[%s1641 + $0x8] sm:$0xff]
        %1645 = vset.pattern.permute.xlu0 0
        %1646 = vperm.xlu0 %1645, %v1642
        %v1647 = vpop.permute.xlu0 %1646
        %1650 = vset.pattern.permute.xlu0 0
        %1651 = vperm.xlu0 %1650, %v1643
        %v1652 = vpop.permute.xlu0 %1651
        %v1654 = vmul.f32 %v1639, %v1647
        %v1655 = vmul.f32 %v1640, %v1652
        %s1656 = scalar_lea.vmem %s8, 32
        %v1657 = vld [vmem:[%s1656] sm:$0xff]
        %v1658 = vld [vmem:[%s1656 + $0x8] sm:$0xff]
        %1660 = vset.pattern.permute.xlu0 0
        %1661 = vperm.xlu0 %1660, %v1657
        %v1662 = vpop.permute.xlu0 %1661
        %1665 = vset.pattern.permute.xlu0 0
        %1666 = vperm.xlu0 %1665, %v1658
        %v1667 = vpop.permute.xlu0 %1666
        %v1669 = vadd.f32 %v1654, %v1662
        %v1670 = vadd.f32 %v1655, %v1667
        %v1671 = vadd.f32 %v1669, %v1670
        %1672 = vadd.xlane.f32.xlu0 %v1671
        %v1673 = vpop.xlane.xlu0 %1672
        %v1674 = vmul.f32 %v1673, %v1122
        %s1675 = scalar_lea.vmem %s9, 16
        %v1676 = vld [vmem:[%s1675] sm:$0xf]
        %v1677 = vld [vmem:[%s1675 + $0x4] sm:$0xf]
        %v1678 = vpack.c.bf16 %v1674, %v1674
        %s1679 = scalar_lea.vmem %s10, 32
        %v1680 = vld [vmem:[%s1679] sm:$0xff]
        %v1681 = vld [vmem:[%s1679 + $0x8] sm:$0xff]
        %1683 = vset.pattern.permute.xlu0 0
        %1684 = vperm.xlu0 %1683, %v1680
        %v1685 = vpop.permute.xlu0 %1684
        %1688 = vset.pattern.permute.xlu0 0
        %1689 = vperm.xlu0 %1688, %v1681
        %v1690 = vpop.permute.xlu0 %1689
        %v1694 = vunpack.c.l.b16 %v1676
        %v1695 = vunpack.c.l.b16 %v1677
        %v1696 = vpack.c.b16 %v1695, %v1694
        %v1698 = vsel %vm1144, %v1696, 0
        %v1701 = vsel %vm1148, %v1678, 0
        %1703 = vmatprep.subr.bf16.mxu0 0
        %1704 = vmatpush1.bf16.msra.mxu0 %v1701
        %1705 = vmatprep.subr.bf16.mxu0 0
        %1706 = vmatpush1.bf16.msra.mxu0 0
        %1707 = vmatprep.subr.bf16.mxu0 0
        %1708 = vmatpush1.bf16.msra.mxu0 0
        %1709 = vmatprep.subr.bf16.mxu0 0
        %1710 = vmatpush1.bf16.msra.mxu0 0
        %1711 = vmatprep.subr.bf16.mxu0 0
        %1712 = vmatpush1.bf16.msra.mxu0 0
        %1713 = vmatprep.subr.bf16.mxu0 0
        %1714 = vmatpush1.bf16.msra.mxu0 0
        %1715 = vmatprep.subr.bf16.mxu0 0
        %1716 = vmatpush1.bf16.msra.mxu0 0
        %1717 = vmatprep.subr.bf16.mxu0 0
        %1718 = vmatpush1.bf16.msra.mxu0 0
        %1719 = vmatprep.subr.bf16.mxu0 0
        %1720 = vmatpush1.bf16.msra.mxu0 0
        %1721 = vmatprep.subr.bf16.mxu0 0
        %1722 = vmatpush1.bf16.msra.mxu0 0
        %1723 = vmatprep.subr.bf16.mxu0 0
        %1724 = vmatpush1.bf16.msra.mxu0 0
        %1725 = vmatprep.subr.bf16.mxu0 0
        %1726 = vmatpush1.bf16.msra.mxu0 0
        %1727 = vmatprep.subr.bf16.mxu0 0
        %1728 = vmatpush1.bf16.msra.mxu0 0
        %1729 = vmatprep.subr.bf16.mxu0 0
        %1730 = vmatpush1.bf16.msra.mxu0 0
        %1731 = vmatprep.subr.bf16.mxu0 0
        %1732 = vmatpush1.bf16.msra.mxu0 0
        %1733 = vmatprep.subr.bf16.mxu0 0
        %1734 = vmatpush1.bf16.msra.mxu0 0
        %1735 = vmatprep.mubr.bf16.mxu0 0
        %1736 = vmatmul.mubr.bf16.gmra.mrb[0].mxu0 %v1698
        %v1737 = vpop.f32.mrb[0].mxu0
        %v1738 = vadd.f32 %v1685, %v1737
        %v1739 = vpop.f32.mrb[0].mxu0
        %v1740 = vpop.f32.mrb[0].mxu0
        %v1741 = vadd.f32 %v1690, %v1740
        %v1742 = vpop.f32.mrb[0].mxu0
        %1743 = vdwg.mxu0
        %v1744 = vmax.f32 %v1738, 0.0
        %v1745 = vmax.f32 %v1741, 0.0
        %s1746 = scalar_lea.vmem %s11, 16
        %v1747 = vld [vmem:[%s1746] sm:$0xf]
        %v1748 = vld [vmem:[%s1746 + $0x4] sm:$0xf]
        %v1749 = vpack.c.bf16 %v1745, %v1744
        %s1750 = scalar_lea.vmem %s12, 32
        %v1751 = vld [vmem:[%s1750] sm:$0xff]
        %v1752 = vld [vmem:[%s1750 + $0x8] sm:$0xff]
        %1754 = vset.pattern.permute.xlu0 0
        %1755 = vperm.xlu0 %1754, %v1751
        %v1756 = vpop.permute.xlu0 %1755
        %1759 = vset.pattern.permute.xlu0 0
        %1760 = vperm.xlu0 %1759, %v1752
        %v1761 = vpop.permute.xlu0 %1760
        %v1765 = vunpack.c.l.b16 %v1747
        %v1766 = vunpack.c.l.b16 %v1748
        %v1767 = vpack.c.b16 %v1766, %v1765
        %v1769 = vsel %vm1215, %v1767, 0
        %1771 = vmatprep.subr.bf16.mxu0 0
        %1772 = vmatpush1.bf16.msra.mxu0 %v1749
        %1773 = vmatprep.subr.bf16.mxu0 0
        %1774 = vmatpush1.bf16.msra.mxu0 0
        %1775 = vmatprep.subr.bf16.mxu0 0
        %1776 = vmatpush1.bf16.msra.mxu0 0
        %1777 = vmatprep.subr.bf16.mxu0 0
        %1778 = vmatpush1.bf16.msra.mxu0 0
        %1779 = vmatprep.subr.bf16.mxu0 0
        %1780 = vmatpush1.bf16.msra.mxu0 0
        %1781 = vmatprep.subr.bf16.mxu0 0
        %1782 = vmatpush1.bf16.msra.mxu0 0
        %1783 = vmatprep.subr.bf16.mxu0 0
        %1784 = vmatpush1.bf16.msra.mxu0 0
        %1785 = vmatprep.subr.bf16.mxu0 0
        %1786 = vmatpush1.bf16.msra.mxu0 0
        %1787 = vmatprep.subr.bf16.mxu0 0
        %1788 = vmatpush1.bf16.msra.mxu0 0
        %1789 = vmatprep.subr.bf16.mxu0 0
        %1790 = vmatpush1.bf16.msra.mxu0 0
        %1791 = vmatprep.subr.bf16.mxu0 0
        %1792 = vmatpush1.bf16.msra.mxu0 0
        %1793 = vmatprep.subr.bf16.mxu0 0
        %1794 = vmatpush1.bf16.msra.mxu0 0
        %1795 = vmatprep.subr.bf16.mxu0 0
        %1796 = vmatpush1.bf16.msra.mxu0 0
        %1797 = vmatprep.subr.bf16.mxu0 0
        %1798 = vmatpush1.bf16.msra.mxu0 0
        %1799 = vmatprep.subr.bf16.mxu0 0
        %1800 = vmatpush1.bf16.msra.mxu0 0
        %1801 = vmatprep.subr.bf16.mxu0 0
        %1802 = vmatpush1.bf16.msra.mxu0 0
        %1803 = vmatprep.mubr.bf16.mxu0 0
        %1804 = vmatmul.mubr.bf16.gmra.mrb[0].mxu0 %v1769
        %v1805 = vpop.f32.mrb[0].mxu0
        %v1806 = vadd.f32 %v1756, %v1805
        %v1807 = vpop.f32.mrb[0].mxu0
        %v1808 = vpop.f32.mrb[0].mxu0
        %v1809 = vadd.f32 %v1761, %v1808
        %v1810 = vpop.f32.mrb[0].mxu0
        %1811 = vdwg.mxu0
        %v1812 = vmax.f32 %v1806, %v1809
        %v1813 = vsub.f32 %v1806, %v1812
        %v1814 = vmul.f32 %v1813, 1.442695
        %v1815 = vpow.pop %v1814
        %v1816 = vsub.f32 %v1809, %v1812
        %v1817 = vmul.f32 %v1816, 1.442695
        %v1818 = vpow.pop %v1817
        %v1819 = vadd.f32 %v1815, %v1818
        %v1820 = vrcp.pop %v1819
        %v1821 = vmul.f32 %v1815, %v1820
        %v1822 = vmul.f32 %v1821, %v1669
        %v1823 = vmul.f32 %v1818, %v1820
        %v1824 = vmul.f32 %v1823, %v1670
        %v1825 = vadd.f32 %v1822, %v1824
        %1826 = vst [vmem:[#allocation2 + $0x10] sm:$0xff] %v1825
        %v1827 = vadd.f32 %v1825, %v991
        %1828 = vrot.lane.b32.xlu0 %v1827, 3
        %v1829 = vpop.permute.xlu0 %1828
        %v1830 = vsel %vm1000, %v1829, 0.0
        %1831 = vrot.lane.b32.xlu0 %v1827, 2
        %v1832 = vpop.permute.xlu0 %1831
        %v1833 = vsel %vm1004, %v1832, 0.0
        %1834 = vrot.lane.b32.xlu0 %v1827, 1
        %v1835 = vpop.permute.xlu0 %1834
        %v1836 = vsel %vm1008, %v1835, 0.0
        %1837 = vrot.lane.b32.xlu0 %v1827, 127
        %v1838 = vpop.permute.xlu0 %1837
        %v1839 = vsel %vm1012, %v1838, 0.0
        %1840 = vrot.lane.b32.xlu0 %v1827, 126
        %v1841 = vpop.permute.xlu0 %1840
        %v1842 = vsel %vm1016, %v1841, 0.0
        %1843 = vrot.lane.b32.xlu0 %v1827, 125
        %v1844 = vpop.permute.xlu0 %1843
        %v1845 = vsel %vm1020, %v1844, 0.0
        %s1846 = scalar_lea.vmem %s5, 24
        %v1847 = vld [vmem:[%s1846] sm:$0xf]
        %v1848 = vld [vmem:[%s1846 + $0x4] sm:$0xf]
        %v1849 = vpack.c.bf16 %v1833, %v1830
        %v1850 = vpack.c.bf16 %v1827, %v1836
        %v1851 = vpack.c.bf16 %v1842, %v1839
        %v1852 = vpack.c.bf16 0.0, %v1845
        %s1853 = scalar_lea.vmem %s6, 48
        %v1854 = vld [vmem:[%s1853] sm:$0xff]
        %v1855 = vld [vmem:[%s1853 + $0x8] sm:$0xff]
        %1857 = vset.pattern.permute.xlu0 0
        %1858 = vperm.xlu0 %1857, %v1854
        %v1859 = vpop.permute.xlu0 %1858
        %1862 = vset.pattern.permute.xlu0 0
        %1863 = vperm.xlu0 %1862, %v1855
        %v1864 = vpop.permute.xlu0 %1863
        %v1868 = vunpack.c.l.b16 %v1847
        %v1869 = vunpack.c.l.b16 %v1848
        %v1870 = vpack.c.b16 %v1869, %v1868
        %v1872 = vsel %vm798, %v1870, 0
        %1874 = vmatprep.subr.bf16.mxu0 0
        %1875 = vmatpush1.bf16.msra.mxu0 %v1849
        %1876 = vmatprep.subr.bf16.mxu0 0
        %1877 = vmatpush1.bf16.msra.mxu0 %v1850
        %1878 = vmatprep.subr.bf16.mxu0 0
        %1879 = vmatpush1.bf16.msra.mxu0 %v1851
        %1880 = vmatprep.subr.bf16.mxu0 0
        %1881 = vmatpush1.bf16.msra.mxu0 %v1852
        %1882 = vmatprep.subr.bf16.mxu0 0
        %1883 = vmatpush1.bf16.msra.mxu0 0
        %1884 = vmatprep.subr.bf16.mxu0 0
        %1885 = vmatpush1.bf16.msra.mxu0 0
        %1886 = vmatprep.subr.bf16.mxu0 0
        %1887 = vmatpush1.bf16.msra.mxu0 0
        %1888 = vmatprep.subr.bf16.mxu0 0
        %1889 = vmatpush1.bf16.msra.mxu0 0
        %1890 = vmatprep.subr.bf16.mxu0 0
        %1891 = vmatpush1.bf16.msra.mxu0 0
        %1892 = vmatprep.subr.bf16.mxu0 0
        %1893 = vmatpush1.bf16.msra.mxu0 0
        %1894 = vmatprep.subr.bf16.mxu0 0
        %1895 = vmatpush1.bf16.msra.mxu0 0
        %1896 = vmatprep.subr.bf16.mxu0 0
        %1897 = vmatpush1.bf16.msra.mxu0 0
        %1898 = vmatprep.subr.bf16.mxu0 0
        %1899 = vmatpush1.bf16.msra.mxu0 0
        %1900 = vmatprep.subr.bf16.mxu0 0
        %1901 = vmatpush1.bf16.msra.mxu0 0
        %1902 = vmatprep.subr.bf16.mxu0 0
        %1903 = vmatpush1.bf16.msra.mxu0 0
        %1904 = vmatprep.subr.bf16.mxu0 0
        %1905 = vmatpush1.bf16.msra.mxu0 0
        %1906 = vmatprep.mubr.bf16.mxu0 0
        %1907 = vmatmul.mubr.bf16.gmra.mrb[0].mxu0 %v1872
        %v1908 = vpop.f32.mrb[0].mxu0
        %v1909 = vadd.f32 %v1859, %v1908
        %v1910 = vpop.f32.mrb[0].mxu0
        %v1911 = vpop.f32.mrb[0].mxu0
        %v1912 = vadd.f32 %v1864, %v1911
        %v1913 = vpop.f32.mrb[0].mxu0
        %1914 = vdwg.mxu0
        %v1915 = vmax.f32 %v1909, 0.0
        %v1916 = vmax.f32 %v1912, 0.0
        %s1917 = scalar_lea.vmem %s7, 48
        %v1918 = vld [vmem:[%s1917] sm:$0xff]
        %v1919 = vld [vmem:[%s1917 + $0x8] sm:$0xff]
        %1921 = vset.pattern.permute.xlu0 0
        %1922 = vperm.xlu0 %1921, %v1918
        %v1923 = vpop.permute.xlu0 %1922
        %1926 = vset.pattern.permute.xlu0 0
        %1927 = vperm.xlu0 %1926, %v1919
        %v1928 = vpop.permute.xlu0 %1927
        %v1930 = vmul.f32 %v1915, %v1923
        %v1931 = vmul.f32 %v1916, %v1928
        %s1932 = scalar_lea.vmem %s8, 48
        %v1933 = vld [vmem:[%s1932] sm:$0xff]
        %v1934 = vld [vmem:[%s1932 + $0x8] sm:$0xff]
        %1936 = vset.pattern.permute.xlu0 0
        %1937 = vperm.xlu0 %1936, %v1933
        %v1938 = vpop.permute.xlu0 %1937
        %1941 = vset.pattern.permute.xlu0 0
        %1942 = vperm.xlu0 %1941, %v1934
        %v1943 = vpop.permute.xlu0 %1942
        %v1945 = vadd.f32 %v1930, %v1938
        %v1946 = vadd.f32 %v1931, %v1943
        %v1947 = vadd.f32 %v1945, %v1946
        %1948 = vadd.xlane.f32.xlu0 %v1947
        %v1949 = vpop.xlane.xlu0 %1948
        %v1950 = vmul.f32 %v1949, %v1122
        %s1951 = scalar_lea.vmem %s9, 24
        %v1952 = vld [vmem:[%s1951] sm:$0xf]
        %v1953 = vld [vmem:[%s1951 + $0x4] sm:$0xf]
        %v1954 = vpack.c.bf16 %v1950, %v1950
        %s1955 = scalar_lea.vmem %s10, 48
        %v1956 = vld [vmem:[%s1955] sm:$0xff]
        %v1957 = vld [vmem:[%s1955 + $0x8] sm:$0xff]
        %1959 = vset.pattern.permute.xlu0 0
        %1960 = vperm.xlu0 %1959, %v1956
        %v1961 = vpop.permute.xlu0 %1960
        %1964 = vset.pattern.permute.xlu0 0
        %1965 = vperm.xlu0 %1964, %v1957
        %v1966 = vpop.permute.xlu0 %1965
        %v1970 = vunpack.c.l.b16 %v1952
        %v1971 = vunpack.c.l.b16 %v1953
        %v1972 = vpack.c.b16 %v1971, %v1970
        %v1974 = vsel %vm1144, %v1972, 0
        %v1977 = vsel %vm1148, %v1954, 0
        %1979 = vmatprep.subr.bf16.mxu0 0
        %1980 = vmatpush1.bf16.msra.mxu0 %v1977
        %1981 = vmatprep.subr.bf16.mxu0 0
        %1982 = vmatpush1.bf16.msra.mxu0 0
        %1983 = vmatprep.subr.bf16.mxu0 0
        %1984 = vmatpush1.bf16.msra.mxu0 0
        %1985 = vmatprep.subr.bf16.mxu0 0
        %1986 = vmatpush1.bf16.msra.mxu0 0
        %1987 = vmatprep.subr.bf16.mxu0 0
        %1988 = vmatpush1.bf16.msra.mxu0 0
        %1989 = vmatprep.subr.bf16.mxu0 0
        %1990 = vmatpush1.bf16.msra.mxu0 0
        %1991 = vmatprep.subr.bf16.mxu0 0
        %1992 = vmatpush1.bf16.msra.mxu0 0
        %1993 = vmatprep.subr.bf16.mxu0 0
        %1994 = vmatpush1.bf16.msra.mxu0 0
        %1995 = vmatprep.subr.bf16.mxu0 0
        %1996 = vmatpush1.bf16.msra.mxu0 0
        %1997 = vmatprep.subr.bf16.mxu0 0
        %1998 = vmatpush1.bf16.msra.mxu0 0
        %1999 = vmatprep.subr.bf16.mxu0 0
        %2000 = vmatpush1.bf16.msra.mxu0 0
        %2001 = vmatprep.subr.bf16.mxu0 0
        %2002 = vmatpush1.bf16.msra.mxu0 0
        %2003 = vmatprep.subr.bf16.mxu0 0
        %2004 = vmatpush1.bf16.msra.mxu0 0
        %2005 = vmatprep.subr.bf16.mxu0 0
        %2006 = vmatpush1.bf16.msra.mxu0 0
        %2007 = vmatprep.subr.bf16.mxu0 0
        %2008 = vmatpush1.bf16.msra.mxu0 0
        %2009 = vmatprep.subr.bf16.mxu0 0
        %2010 = vmatpush1.bf16.msra.mxu0 0
        %2011 = vmatprep.mubr.bf16.mxu0 0
        %2012 = vmatmul.mubr.bf16.gmra.mrb[0].mxu0 %v1974
        %v2013 = vpop.f32.mrb[0].mxu0
        %v2014 = vadd.f32 %v1961, %v2013
        %v2015 = vpop.f32.mrb[0].mxu0
        %v2016 = vpop.f32.mrb[0].mxu0
        %v2017 = vadd.f32 %v1966, %v2016
        %v2018 = vpop.f32.mrb[0].mxu0
        %2019 = vdwg.mxu0
        %v2020 = vmax.f32 %v2014, 0.0
        %v2021 = vmax.f32 %v2017, 0.0
        %s2022 = scalar_lea.vmem %s11, 24
        %v2023 = vld [vmem:[%s2022] sm:$0xf]
        %v2024 = vld [vmem:[%s2022 + $0x4] sm:$0xf]
        %v2025 = vpack.c.bf16 %v2021, %v2020
        %s2026 = scalar_lea.vmem %s12, 48
        %v2027 = vld [vmem:[%s2026] sm:$0xff]
        %v2028 = vld [vmem:[%s2026 + $0x8] sm:$0xff]
        %2030 = vset.pattern.permute.xlu0 0
        %2031 = vperm.xlu0 %2030, %v2027
        %v2032 = vpop.permute.xlu0 %2031
        %2035 = vset.pattern.permute.xlu0 0
        %2036 = vperm.xlu0 %2035, %v2028
        %v2037 = vpop.permute.xlu0 %2036
        %v2041 = vunpack.c.l.b16 %v2023
        %v2042 = vunpack.c.l.b16 %v2024
        %v2043 = vpack.c.b16 %v2042, %v2041
        %v2045 = vsel %vm1215, %v2043, 0
        %2047 = vmatprep.subr.bf16.mxu0 0
        %2048 = vmatpush1.bf16.msra.mxu0 %v2025
        %2049 = vmatprep.subr.bf16.mxu0 0
        %2050 = vmatpush1.bf16.msra.mxu0 0
        %2051 = vmatprep.subr.bf16.mxu0 0
        %2052 = vmatpush1.bf16.msra.mxu0 0
        %2053 = vmatprep.subr.bf16.mxu0 0
        %2054 = vmatpush1.bf16.msra.mxu0 0
        %2055 = vmatprep.subr.bf16.mxu0 0
        %2056 = vmatpush1.bf16.msra.mxu0 0
        %2057 = vmatprep.subr.bf16.mxu0 0
        %2058 = vmatpush1.bf16.msra.mxu0 0
        %2059 = vmatprep.subr.bf16.mxu0 0
        %2060 = vmatpush1.bf16.msra.mxu0 0
        %2061 = vmatprep.subr.bf16.mxu0 0
        %2062 = vmatpush1.bf16.msra.mxu0 0
        %2063 = vmatprep.subr.bf16.mxu0 0
        %2064 = vmatpush1.bf16.msra.mxu0 0
        %2065 = vmatprep.subr.bf16.mxu0 0
        %2066 = vmatpush1.bf16.msra.mxu0 0
        %2067 = vmatprep.subr.bf16.mxu0 0
        %2068 = vmatpush1.bf16.msra.mxu0 0
        %2069 = vmatprep.subr.bf16.mxu0 0
        %2070 = vmatpush1.bf16.msra.mxu0 0
        %2071 = vmatprep.subr.bf16.mxu0 0
        %2072 = vmatpush1.bf16.msra.mxu0 0
        %2073 = vmatprep.subr.bf16.mxu0 0
        %2074 = vmatpush1.bf16.msra.mxu0 0
        %2075 = vmatprep.subr.bf16.mxu0 0
        %2076 = vmatpush1.bf16.msra.mxu0 0
        %2077 = vmatprep.subr.bf16.mxu0 0
        %2078 = vmatpush1.bf16.msra.mxu0 0
        %2079 = vmatprep.mubr.bf16.mxu0 0
        %2080 = vmatmul.mubr.bf16.gmra.mrb[0].mxu0 %v2045
        %v2081 = vpop.f32.mrb[0].mxu0
        %v2082 = vadd.f32 %v2032, %v2081
        %v2083 = vpop.f32.mrb[0].mxu0
        %v2084 = vpop.f32.mrb[0].mxu0
        %v2085 = vadd.f32 %v2037, %v2084
        %v2086 = vpop.f32.mrb[0].mxu0
        %2087 = vdwg.mxu0
        %v2088 = vmax.f32 %v2082, %v2085
        %v2089 = vsub.f32 %v2082, %v2088
        %v2090 = vmul.f32 %v2089, 1.442695
        %v2091 = vpow.pop %v2090
        %v2092 = vsub.f32 %v2085, %v2088
        %v2093 = vmul.f32 %v2092, 1.442695
        %v2094 = vpow.pop %v2093
        %v2095 = vadd.f32 %v2091, %v2094
        %v2096 = vrcp.pop %v2095
        %v2097 = vmul.f32 %v2091, %v2096
        %v2098 = vmul.f32 %v2097, %v1945
        %v2099 = vmul.f32 %v2094, %v2096
        %v2100 = vmul.f32 %v2099, %v1946
        %v2101 = vadd.f32 %v2098, %v2100
        %2102 = vst [vmem:[#allocation2 + $0x18] sm:$0xff] %v2101
        %v2103 = vadd.f32 %v2101, %v992
        %2104 = vrot.lane.b32.xlu0 %v2103, 3
        %v2105 = vpop.permute.xlu0 %2104
        %v2106 = vsel %vm1000, %v2105, 0.0
        %2107 = vrot.lane.b32.xlu0 %v2103, 2
        %v2108 = vpop.permute.xlu0 %2107
        %v2109 = vsel %vm1004, %v2108, 0.0
        %2110 = vrot.lane.b32.xlu0 %v2103, 1
        %v2111 = vpop.permute.xlu0 %2110
        %v2112 = vsel %vm1008, %v2111, 0.0
        %2113 = vrot.lane.b32.xlu0 %v2103, 127
        %v2114 = vpop.permute.xlu0 %2113
        %v2115 = vsel %vm1012, %v2114, 0.0
        %2116 = vrot.lane.b32.xlu0 %v2103, 126
        %v2117 = vpop.permute.xlu0 %2116
        %v2118 = vsel %vm1016, %v2117, 0.0
        %2119 = vrot.lane.b32.xlu0 %v2103, 125
        %v2120 = vpop.permute.xlu0 %2119
        %v2121 = vsel %vm1020, %v2120, 0.0
        %s2122 = scalar_lea.vmem %s5, 32
        %v2123 = vld [vmem:[%s2122] sm:$0xf]
        %v2124 = vld [vmem:[%s2122 + $0x4] sm:$0xf]
        %v2125 = vpack.c.bf16 %v2109, %v2106
        %v2126 = vpack.c.bf16 %v2103, %v2112
        %v2127 = vpack.c.bf16 %v2118, %v2115
        %v2128 = vpack.c.bf16 0.0, %v2121
        %s2129 = scalar_lea.vmem %s6, 64
        %v2130 = vld [vmem:[%s2129] sm:$0xff]
        %v2131 = vld [vmem:[%s2129 + $0x8] sm:$0xff]
        %2133 = vset.pattern.permute.xlu0 0
        %2134 = vperm.xlu0 %2133, %v2130
        %v2135 = vpop.permute.xlu0 %2134
        %2138 = vset.pattern.permute.xlu0 0
        %2139 = vperm.xlu0 %2138, %v2131
        %v2140 = vpop.permute.xlu0 %2139
        %v2144 = vunpack.c.l.b16 %v2123
        %v2145 = vunpack.c.l.b16 %v2124
        %v2146 = vpack.c.b16 %v2145, %v2144
        %v2148 = vsel %vm798, %v2146, 0
        %2150 = vmatprep.subr.bf16.mxu0 0
        %2151 = vmatpush1.bf16.msra.mxu0 %v2125
        %2152 = vmatprep.subr.bf16.mxu0 0
        %2153 = vmatpush1.bf16.msra.mxu0 %v2126
        %2154 = vmatprep.subr.bf16.mxu0 0
        %2155 = vmatpush1.bf16.msra.mxu0 %v2127
        %2156 = vmatprep.subr.bf16.mxu0 0
        %2157 = vmatpush1.bf16.msra.mxu0 %v2128
        %2158 = vmatprep.subr.bf16.mxu0 0
        %2159 = vmatpush1.bf16.msra.mxu0 0
        %2160 = vmatprep.subr.bf16.mxu0 0
        %2161 = vmatpush1.bf16.msra.mxu0 0
        %2162 = vmatprep.subr.bf16.mxu0 0
        %2163 = vmatpush1.bf16.msra.mxu0 0
        %2164 = vmatprep.subr.bf16.mxu0 0
        %2165 = vmatpush1.bf16.msra.mxu0 0
        %2166 = vmatprep.subr.bf16.mxu0 0
        %2167 = vmatpush1.bf16.msra.mxu0 0
        %2168 = vmatprep.subr.bf16.mxu0 0
        %2169 = vmatpush1.bf16.msra.mxu0 0
        %2170 = vmatprep.subr.bf16.mxu0 0
        %2171 = vmatpush1.bf16.msra.mxu0 0
        %2172 = vmatprep.subr.bf16.mxu0 0
        %2173 = vmatpush1.bf16.msra.mxu0 0
        %2174 = vmatprep.subr.bf16.mxu0 0
        %2175 = vmatpush1.bf16.msra.mxu0 0
        %2176 = vmatprep.subr.bf16.mxu0 0
        %2177 = vmatpush1.bf16.msra.mxu0 0
        %2178 = vmatprep.subr.bf16.mxu0 0
        %2179 = vmatpush1.bf16.msra.mxu0 0
        %2180 = vmatprep.subr.bf16.mxu0 0
        %2181 = vmatpush1.bf16.msra.mxu0 0
        %2182 = vmatprep.mubr.bf16.mxu0 0
        %2183 = vmatmul.mubr.bf16.gmra.mrb[0].mxu0 %v2148
        %v2184 = vpop.f32.mrb[0].mxu0
        %v2185 = vadd.f32 %v2135, %v2184
        %v2186 = vpop.f32.mrb[0].mxu0
        %v2187 = vpop.f32.mrb[0].mxu0
        %v2188 = vadd.f32 %v2140, %v2187
        %v2189 = vpop.f32.mrb[0].mxu0
        %2190 = vdwg.mxu0
        %v2191 = vmax.f32 %v2185, 0.0
        %v2192 = vmax.f32 %v2188, 0.0
        %s2193 = scalar_lea.vmem %s7, 64
        %v2194 = vld [vmem:[%s2193] sm:$0xff]
        %v2195 = vld [vmem:[%s2193 + $0x8] sm:$0xff]
        %2197 = vset.pattern.permute.xlu0 0
        %2198 = vperm.xlu0 %2197, %v2194
        %v2199 = vpop.permute.xlu0 %2198
        %2202 = vset.pattern.permute.xlu0 0
        %2203 = vperm.xlu0 %2202, %v2195
        %v2204 = vpop.permute.xlu0 %2203
        %v2206 = vmul.f32 %v2191, %v2199
        %v2207 = vmul.f32 %v2192, %v2204
        %s2208 = scalar_lea.vmem %s8, 64
        %v2209 = vld [vmem:[%s2208] sm:$0xff]
        %v2210 = vld [vmem:[%s2208 + $0x8] sm:$0xff]
        %2212 = vset.pattern.permute.xlu0 0
        %2213 = vperm.xlu0 %2212, %v2209
        %v2214 = vpop.permute.xlu0 %2213
        %2217 = vset.pattern.permute.xlu0 0
        %2218 = vperm.xlu0 %2217, %v2210
        %v2219 = vpop.permute.xlu0 %2218
        %v2221 = vadd.f32 %v2206, %v2214
        %v2222 = vadd.f32 %v2207, %v2219
        %v2223 = vadd.f32 %v2221, %v2222
        %2224 = vadd.xlane.f32.xlu0 %v2223
        %v2225 = vpop.xlane.xlu0 %2224
        %v2226 = vmul.f32 %v2225, %v1122
        %s2227 = scalar_lea.vmem %s9, 32
        %v2228 = vld [vmem:[%s2227] sm:$0xf]
        %v2229 = vld [vmem:[%s2227 + $0x4] sm:$0xf]
        %v2230 = vpack.c.bf16 %v2226, %v2226
        %s2231 = scalar_lea.vmem %s10, 64
        %v2232 = vld [vmem:[%s2231] sm:$0xff]
        %v2233 = vld [vmem:[%s2231 + $0x8] sm:$0xff]
        %2235 = vset.pattern.permute.xlu0 0
        %2236 = vperm.xlu0 %2235, %v2232
        %v2237 = vpop.permute.xlu0 %2236
        %2240 = vset.pattern.permute.xlu0 0
        %2241 = vperm.xlu0 %2240, %v2233
        %v2242 = vpop.permute.xlu0 %2241
        %v2246 = vunpack.c.l.b16 %v2228
        %v2247 = vunpack.c.l.b16 %v2229
        %v2248 = vpack.c.b16 %v2247, %v2246
        %v2250 = vsel %vm1144, %v2248, 0
        %v2253 = vsel %vm1148, %v2230, 0
        %2255 = vmatprep.subr.bf16.mxu0 0
        %2256 = vmatpush1.bf16.msra.mxu0 %v2253
        %2257 = vmatprep.subr.bf16.mxu0 0
        %2258 = vmatpush1.bf16.msra.mxu0 0
        %2259 = vmatprep.subr.bf16.mxu0 0
        %2260 = vmatpush1.bf16.msra.mxu0 0
        %2261 = vmatprep.subr.bf16.mxu0 0
        %2262 = vmatpush1.bf16.msra.mxu0 0
        %2263 = vmatprep.subr.bf16.mxu0 0
        %2264 = vmatpush1.bf16.msra.mxu0 0
        %2265 = vmatprep.subr.bf16.mxu0 0
        %2266 = vmatpush1.bf16.msra.mxu0 0
        %2267 = vmatprep.subr.bf16.mxu0 0
        %2268 = vmatpush1.bf16.msra.mxu0 0
        %2269 = vmatprep.subr.bf16.mxu0 0
        %2270 = vmatpush1.bf16.msra.mxu0 0
        %2271 = vmatprep.subr.bf16.mxu0 0
        %2272 = vmatpush1.bf16.msra.mxu0 0
        %2273 = vmatprep.subr.bf16.mxu0 0
        %2274 = vmatpush1.bf16.msra.mxu0 0
        %2275 = vmatprep.subr.bf16.mxu0 0
        %2276 = vmatpush1.bf16.msra.mxu0 0
        %2277 = vmatprep.subr.bf16.mxu0 0
        %2278 = vmatpush1.bf16.msra.mxu0 0
        %2279 = vmatprep.subr.bf16.mxu0 0
        %2280 = vmatpush1.bf16.msra.mxu0 0
        %2281 = vmatprep.subr.bf16.mxu0 0
        %2282 = vmatpush1.bf16.msra.mxu0 0
        %2283 = vmatprep.subr.bf16.mxu0 0
        %2284 = vmatpush1.bf16.msra.mxu0 0
        %2285 = vmatprep.subr.bf16.mxu0 0
        %2286 = vmatpush1.bf16.msra.mxu0 0
        %2287 = vmatprep.mubr.bf16.mxu0 0
        %2288 = vmatmul.mubr.bf16.gmra.mrb[0].mxu0 %v2250
        %v2289 = vpop.f32.mrb[0].mxu0
        %v2290 = vadd.f32 %v2237, %v2289
        %v2291 = vpop.f32.mrb[0].mxu0
        %v2292 = vpop.f32.mrb[0].mxu0
        %v2293 = vadd.f32 %v2242, %v2292
        %v2294 = vpop.f32.mrb[0].mxu0
        %2295 = vdwg.mxu0
        %v2296 = vmax.f32 %v2290, 0.0
        %v2297 = vmax.f32 %v2293, 0.0
        %s2298 = scalar_lea.vmem %s11, 32
        %v2299 = vld [vmem:[%s2298] sm:$0xf]
        %v2300 = vld [vmem:[%s2298 + $0x4] sm:$0xf]
        %v2301 = vpack.c.bf16 %v2297, %v2296
        %s2302 = scalar_lea.vmem %s12, 64
        %v2303 = vld [vmem:[%s2302] sm:$0xff]
        %v2304 = vld [vmem:[%s2302 + $0x8] sm:$0xff]
        %2306 = vset.pattern.permute.xlu0 0
        %2307 = vperm.xlu0 %2306, %v2303
        %v2308 = vpop.permute.xlu0 %2307
        %2311 = vset.pattern.permute.xlu0 0
        %2312 = vperm.xlu0 %2311, %v2304
        %v2313 = vpop.permute.xlu0 %2312
        %v2317 = vunpack.c.l.b16 %v2299
        %v2318 = vunpack.c.l.b16 %v2300
        %v2319 = vpack.c.b16 %v2318, %v2317
        %v2321 = vsel %vm1215, %v2319, 0
        %2323 = vmatprep.subr.bf16.mxu0 0
        %2324 = vmatpush1.bf16.msra.mxu0 %v2301
        %2325 = vmatprep.subr.bf16.mxu0 0
        %2326 = vmatpush1.bf16.msra.mxu0 0
        %2327 = vmatprep.subr.bf16.mxu0 0
        %2328 = vmatpush1.bf16.msra.mxu0 0
        %2329 = vmatprep.subr.bf16.mxu0 0
        %2330 = vmatpush1.bf16.msra.mxu0 0
        %2331 = vmatprep.subr.bf16.mxu0 0
        %2332 = vmatpush1.bf16.msra.mxu0 0
        %2333 = vmatprep.subr.bf16.mxu0 0
        %2334 = vmatpush1.bf16.msra.mxu0 0
        %2335 = vmatprep.subr.bf16.mxu0 0
        %2336 = vmatpush1.bf16.msra.mxu0 0
        %2337 = vmatprep.subr.bf16.mxu0 0
        %2338 = vmatpush1.bf16.msra.mxu0 0
        %2339 = vmatprep.subr.bf16.mxu0 0
        %2340 = vmatpush1.bf16.msra.mxu0 0
        %2341 = vmatprep.subr.bf16.mxu0 0
        %2342 = vmatpush1.bf16.msra.mxu0 0
        %2343 = vmatprep.subr.bf16.mxu0 0
        %2344 = vmatpush1.bf16.msra.mxu0 0
        %2345 = vmatprep.subr.bf16.mxu0 0
        %2346 = vmatpush1.bf16.msra.mxu0 0
        %2347 = vmatprep.subr.bf16.mxu0 0
        %2348 = vmatpush1.bf16.msra.mxu0 0
        %2349 = vmatprep.subr.bf16.mxu0 0
        %2350 = vmatpush1.bf16.msra.mxu0 0
        %2351 = vmatprep.subr.bf16.mxu0 0
        %2352 = vmatpush1.bf16.msra.mxu0 0
        %2353 = vmatprep.subr.bf16.mxu0 0
        %2354 = vmatpush1.bf16.msra.mxu0 0
        %2355 = vmatprep.mubr.bf16.mxu0 0
        %2356 = vmatmul.mubr.bf16.gmra.mrb[0].mxu0 %v2321
        %v2357 = vpop.f32.mrb[0].mxu0
        %v2358 = vadd.f32 %v2308, %v2357
        %v2359 = vpop.f32.mrb[0].mxu0
        %v2360 = vpop.f32.mrb[0].mxu0
        %v2361 = vadd.f32 %v2313, %v2360
        %v2362 = vpop.f32.mrb[0].mxu0
        %2363 = vdwg.mxu0
        %v2364 = vmax.f32 %v2358, %v2361
        %v2365 = vsub.f32 %v2358, %v2364
        %v2366 = vmul.f32 %v2365, 1.442695
        %v2367 = vpow.pop %v2366
        %v2368 = vsub.f32 %v2361, %v2364
        %v2369 = vmul.f32 %v2368, 1.442695
        %v2370 = vpow.pop %v2369
        %v2371 = vadd.f32 %v2367, %v2370
        %v2372 = vrcp.pop %v2371
        %v2373 = vmul.f32 %v2367, %v2372
        %v2374 = vmul.f32 %v2373, %v2221
        %v2375 = vmul.f32 %v2370, %v2372
        %v2376 = vmul.f32 %v2375, %v2222
        %v2377 = vadd.f32 %v2374, %v2376
        %2378 = vst [vmem:[#allocation2 + $0x20] sm:$0xff] %v2377
        %v2379 = vadd.f32 %v2377, %v993
        %2380 = vrot.lane.b32.xlu0 %v2379, 3
        %v2381 = vpop.permute.xlu0 %2380
        %v2382 = vsel %vm1000, %v2381, 0.0
        %2383 = vrot.lane.b32.xlu0 %v2379, 2
        %v2384 = vpop.permute.xlu0 %2383
        %v2385 = vsel %vm1004, %v2384, 0.0
        %2386 = vrot.lane.b32.xlu0 %v2379, 1
        %v2387 = vpop.permute.xlu0 %2386
        %v2388 = vsel %vm1008, %v2387, 0.0
        %2389 = vrot.lane.b32.xlu0 %v2379, 127
        %v2390 = vpop.permute.xlu0 %2389
        %v2391 = vsel %vm1012, %v2390, 0.0
        %2392 = vrot.lane.b32.xlu0 %v2379, 126
        %v2393 = vpop.permute.xlu0 %2392
        %v2394 = vsel %vm1016, %v2393, 0.0
        %2395 = vrot.lane.b32.xlu0 %v2379, 125
        %v2396 = vpop.permute.xlu0 %2395
        %v2397 = vsel %vm1020, %v2396, 0.0
        %s2398 = scalar_lea.vmem %s5, 40
        %v2399 = vld [vmem:[%s2398] sm:$0xf]
        %v2400 = vld [vmem:[%s2398 + $0x4] sm:$0xf]
        %v2401 = vpack.c.bf16 %v2385, %v2382
        %v2402 = vpack.c.bf16 %v2379, %v2388
        %v2403 = vpack.c.bf16 %v2394, %v2391
        %v2404 = vpack.c.bf16 0.0, %v2397
        %s2405 = scalar_lea.vmem %s6, 80
        %v2406 = vld [vmem:[%s2405] sm:$0xff]
        %v2407 = vld [vmem:[%s2405 + $0x8] sm:$0xff]
        %2409 = vset.pattern.permute.xlu0 0
        %2410 = vperm.xlu0 %2409, %v2406
        %v2411 = vpop.permute.xlu0 %2410
        %2414 = vset.pattern.permute.xlu0 0
        %2415 = vperm.xlu0 %2414, %v2407
        %v2416 = vpop.permute.xlu0 %2415
        %v2420 = vunpack.c.l.b16 %v2399
        %v2421 = vunpack.c.l.b16 %v2400
        %v2422 = vpack.c.b16 %v2421, %v2420
        %v2424 = vsel %vm798, %v2422, 0
        %2426 = vmatprep.subr.bf16.mxu0 0
        %2427 = vmatpush1.bf16.msra.mxu0 %v2401
        %2428 = vmatprep.subr.bf16.mxu0 0
        %2429 = vmatpush1.bf16.msra.mxu0 %v2402
        %2430 = vmatprep.subr.bf16.mxu0 0
        %2431 = vmatpush1.bf16.msra.mxu0 %v2403
        %2432 = vmatprep.subr.bf16.mxu0 0
        %2433 = vmatpush1.bf16.msra.mxu0 %v2404
        %2434 = vmatprep.subr.bf16.mxu0 0
        %2435 = vmatpush1.bf16.msra.mxu0 0
        %2436 = vmatprep.subr.bf16.mxu0 0
        %2437 = vmatpush1.bf16.msra.mxu0 0
        %2438 = vmatprep.subr.bf16.mxu0 0
        %2439 = vmatpush1.bf16.msra.mxu0 0
        %2440 = vmatprep.subr.bf16.mxu0 0
        %2441 = vmatpush1.bf16.msra.mxu0 0
        %2442 = vmatprep.subr.bf16.mxu0 0
        %2443 = vmatpush1.bf16.msra.mxu0 0
        %2444 = vmatprep.subr.bf16.mxu0 0
        %2445 = vmatpush1.bf16.msra.mxu0 0
        %2446 = vmatprep.subr.bf16.mxu0 0
        %2447 = vmatpush1.bf16.msra.mxu0 0
        %2448 = vmatprep.subr.bf16.mxu0 0
        %2449 = vmatpush1.bf16.msra.mxu0 0
        %2450 = vmatprep.subr.bf16.mxu0 0
        %2451 = vmatpush1.bf16.msra.mxu0 0
        %2452 = vmatprep.subr.bf16.mxu0 0
        %2453 = vmatpush1.bf16.msra.mxu0 0
        %2454 = vmatprep.subr.bf16.mxu0 0
        %2455 = vmatpush1.bf16.msra.mxu0 0
        %2456 = vmatprep.subr.bf16.mxu0 0
        %2457 = vmatpush1.bf16.msra.mxu0 0
        %2458 = vmatprep.mubr.bf16.mxu0 0
        %2459 = vmatmul.mubr.bf16.gmra.mrb[0].mxu0 %v2424
        %v2460 = vpop.f32.mrb[0].mxu0
        %v2461 = vadd.f32 %v2411, %v2460
        %v2462 = vpop.f32.mrb[0].mxu0
        %v2463 = vpop.f32.mrb[0].mxu0
        %v2464 = vadd.f32 %v2416, %v2463
        %v2465 = vpop.f32.mrb[0].mxu0
        %2466 = vdwg.mxu0
        %v2467 = vmax.f32 %v2461, 0.0
        %v2468 = vmax.f32 %v2464, 0.0
        %s2469 = scalar_lea.vmem %s7, 80
        %v2470 = vld [vmem:[%s2469] sm:$0xff]
        %v2471 = vld [vmem:[%s2469 + $0x8] sm:$0xff]
        %2473 = vset.pattern.permute.xlu0 0
        %2474 = vperm.xlu0 %2473, %v2470
        %v2475 = vpop.permute.xlu0 %2474
        %2478 = vset.pattern.permute.xlu0 0
        %2479 = vperm.xlu0 %2478, %v2471
        %v2480 = vpop.permute.xlu0 %2479
        %v2482 = vmul.f32 %v2467, %v2475
        %v2483 = vmul.f32 %v2468, %v2480
        %s2484 = scalar_lea.vmem %s8, 80
        %v2485 = vld [vmem:[%s2484] sm:$0xff]
        %v2486 = vld [vmem:[%s2484 + $0x8] sm:$0xff]
        %2488 = vset.pattern.permute.xlu0 0
        %2489 = vperm.xlu0 %2488, %v2485
        %v2490 = vpop.permute.xlu0 %2489
        %2493 = vset.pattern.permute.xlu0 0
        %2494 = vperm.xlu0 %2493, %v2486
        %v2495 = vpop.permute.xlu0 %2494
        %v2497 = vadd.f32 %v2482, %v2490
        %v2498 = vadd.f32 %v2483, %v2495
        %v2499 = vadd.f32 %v2497, %v2498
        %2500 = vadd.xlane.f32.xlu0 %v2499
        %v2501 = vpop.xlane.xlu0 %2500
        %v2502 = vmul.f32 %v2501, %v1122
        %s2503 = scalar_lea.vmem %s9, 40
        %v2504 = vld [vmem:[%s2503] sm:$0xf]
        %v2505 = vld [vmem:[%s2503 + $0x4] sm:$0xf]
        %v2506 = vpack.c.bf16 %v2502, %v2502
        %s2507 = scalar_lea.vmem %s10, 80
        %v2508 = vld [vmem:[%s2507] sm:$0xff]
        %v2509 = vld [vmem:[%s2507 + $0x8] sm:$0xff]
        %2511 = vset.pattern.permute.xlu0 0
        %2512 = vperm.xlu0 %2511, %v2508
        %v2513 = vpop.permute.xlu0 %2512
        %2516 = vset.pattern.permute.xlu0 0
        %2517 = vperm.xlu0 %2516, %v2509
        %v2518 = vpop.permute.xlu0 %2517
        %v2522 = vunpack.c.l.b16 %v2504
        %v2523 = vunpack.c.l.b16 %v2505
        %v2524 = vpack.c.b16 %v2523, %v2522
        %v2526 = vsel %vm1144, %v2524, 0
        %v2529 = vsel %vm1148, %v2506, 0
        %2531 = vmatprep.subr.bf16.mxu0 0
        %2532 = vmatpush1.bf16.msra.mxu0 %v2529
        %2533 = vmatprep.subr.bf16.mxu0 0
        %2534 = vmatpush1.bf16.msra.mxu0 0
        %2535 = vmatprep.subr.bf16.mxu0 0
        %2536 = vmatpush1.bf16.msra.mxu0 0
        %2537 = vmatprep.subr.bf16.mxu0 0
        %2538 = vmatpush1.bf16.msra.mxu0 0
        %2539 = vmatprep.subr.bf16.mxu0 0
        %2540 = vmatpush1.bf16.msra.mxu0 0
        %2541 = vmatprep.subr.bf16.mxu0 0
        %2542 = vmatpush1.bf16.msra.mxu0 0
        %2543 = vmatprep.subr.bf16.mxu0 0
        %2544 = vmatpush1.bf16.msra.mxu0 0
        %2545 = vmatprep.subr.bf16.mxu0 0
        %2546 = vmatpush1.bf16.msra.mxu0 0
        %2547 = vmatprep.subr.bf16.mxu0 0
        %2548 = vmatpush1.bf16.msra.mxu0 0
        %2549 = vmatprep.subr.bf16.mxu0 0
        %2550 = vmatpush1.bf16.msra.mxu0 0
        %2551 = vmatprep.subr.bf16.mxu0 0
        %2552 = vmatpush1.bf16.msra.mxu0 0
        %2553 = vmatprep.subr.bf16.mxu0 0
        %2554 = vmatpush1.bf16.msra.mxu0 0
        %2555 = vmatprep.subr.bf16.mxu0 0
        %2556 = vmatpush1.bf16.msra.mxu0 0
        %2557 = vmatprep.subr.bf16.mxu0 0
        %2558 = vmatpush1.bf16.msra.mxu0 0
        %2559 = vmatprep.subr.bf16.mxu0 0
        %2560 = vmatpush1.bf16.msra.mxu0 0
        %2561 = vmatprep.subr.bf16.mxu0 0
        %2562 = vmatpush1.bf16.msra.mxu0 0
        %2563 = vmatprep.mubr.bf16.mxu0 0
        %2564 = vmatmul.mubr.bf16.gmra.mrb[0].mxu0 %v2526
        %v2565 = vpop.f32.mrb[0].mxu0
        %v2566 = vadd.f32 %v2513, %v2565
        %v2567 = vpop.f32.mrb[0].mxu0
        %v2568 = vpop.f32.mrb[0].mxu0
        %v2569 = vadd.f32 %v2518, %v2568
        %v2570 = vpop.f32.mrb[0].mxu0
        %2571 = vdwg.mxu0
        %v2572 = vmax.f32 %v2566, 0.0
        %v2573 = vmax.f32 %v2569, 0.0
        %s2574 = scalar_lea.vmem %s11, 40
        %v2575 = vld [vmem:[%s2574] sm:$0xf]
        %v2576 = vld [vmem:[%s2574 + $0x4] sm:$0xf]
        %v2577 = vpack.c.bf16 %v2573, %v2572
        %s2578 = scalar_lea.vmem %s12, 80
        %v2579 = vld [vmem:[%s2578] sm:$0xff]
        %v2580 = vld [vmem:[%s2578 + $0x8] sm:$0xff]
        %2582 = vset.pattern.permute.xlu0 0
        %2583 = vperm.xlu0 %2582, %v2579
        %v2584 = vpop.permute.xlu0 %2583
        %2587 = vset.pattern.permute.xlu0 0
        %2588 = vperm.xlu0 %2587, %v2580
        %v2589 = vpop.permute.xlu0 %2588
        %v2593 = vunpack.c.l.b16 %v2575
        %v2594 = vunpack.c.l.b16 %v2576
        %v2595 = vpack.c.b16 %v2594, %v2593
        %v2597 = vsel %vm1215, %v2595, 0
        %2599 = vmatprep.subr.bf16.mxu0 0
        %2600 = vmatpush1.bf16.msra.mxu0 %v2577
        %2601 = vmatprep.subr.bf16.mxu0 0
        %2602 = vmatpush1.bf16.msra.mxu0 0
        %2603 = vmatprep.subr.bf16.mxu0 0
        %2604 = vmatpush1.bf16.msra.mxu0 0
        %2605 = vmatprep.subr.bf16.mxu0 0
        %2606 = vmatpush1.bf16.msra.mxu0 0
        %2607 = vmatprep.subr.bf16.mxu0 0
        %2608 = vmatpush1.bf16.msra.mxu0 0
        %2609 = vmatprep.subr.bf16.mxu0 0
        %2610 = vmatpush1.bf16.msra.mxu0 0
        %2611 = vmatprep.subr.bf16.mxu0 0
        %2612 = vmatpush1.bf16.msra.mxu0 0
        %2613 = vmatprep.subr.bf16.mxu0 0
        %2614 = vmatpush1.bf16.msra.mxu0 0
        %2615 = vmatprep.subr.bf16.mxu0 0
        %2616 = vmatpush1.bf16.msra.mxu0 0
        %2617 = vmatprep.subr.bf16.mxu0 0
        %2618 = vmatpush1.bf16.msra.mxu0 0
        %2619 = vmatprep.subr.bf16.mxu0 0
        %2620 = vmatpush1.bf16.msra.mxu0 0
        %2621 = vmatprep.subr.bf16.mxu0 0
        %2622 = vmatpush1.bf16.msra.mxu0 0
        %2623 = vmatprep.subr.bf16.mxu0 0
        %2624 = vmatpush1.bf16.msra.mxu0 0
        %2625 = vmatprep.subr.bf16.mxu0 0
        %2626 = vmatpush1.bf16.msra.mxu0 0
        %2627 = vmatprep.subr.bf16.mxu0 0
        %2628 = vmatpush1.bf16.msra.mxu0 0
        %2629 = vmatprep.subr.bf16.mxu0 0
        %2630 = vmatpush1.bf16.msra.mxu0 0
        %2631 = vmatprep.mubr.bf16.mxu0 0
        %2632 = vmatmul.mubr.bf16.gmra.mrb[0].mxu0 %v2597
        %v2633 = vpop.f32.mrb[0].mxu0
        %v2634 = vadd.f32 %v2584, %v2633
        %v2635 = vpop.f32.mrb[0].mxu0
        %v2636 = vpop.f32.mrb[0].mxu0
        %v2637 = vadd.f32 %v2589, %v2636
        %v2638 = vpop.f32.mrb[0].mxu0
        %2639 = vdwg.mxu0
        %v2640 = vmax.f32 %v2634, %v2637
        %v2641 = vsub.f32 %v2634, %v2640
        %v2642 = vmul.f32 %v2641, 1.442695
        %v2643 = vpow.pop %v2642
        %v2644 = vsub.f32 %v2637, %v2640
        %v2645 = vmul.f32 %v2644, 1.442695
        %v2646 = vpow.pop %v2645
        %v2647 = vadd.f32 %v2643, %v2646
        %v2648 = vrcp.pop %v2647
        %v2649 = vmul.f32 %v2643, %v2648
        %v2650 = vmul.f32 %v2649, %v2497
        %v2651 = vmul.f32 %v2646, %v2648
        %v2652 = vmul.f32 %v2651, %v2498
        %v2653 = vadd.f32 %v2650, %v2652
        %2654 = vst [vmem:[#allocation2 + $0x28] sm:$0xff] %v2653
        %v2655 = vadd.f32 %v2653, %v994
        %2656 = vrot.lane.b32.xlu0 %v2655, 3
        %v2657 = vpop.permute.xlu0 %2656
        %v2658 = vsel %vm1000, %v2657, 0.0
        %2659 = vrot.lane.b32.xlu0 %v2655, 2
        %v2660 = vpop.permute.xlu0 %2659
        %v2661 = vsel %vm1004, %v2660, 0.0
        %2662 = vrot.lane.b32.xlu0 %v2655, 1
        %v2663 = vpop.permute.xlu0 %2662
        %v2664 = vsel %vm1008, %v2663, 0.0
        %2665 = vrot.lane.b32.xlu0 %v2655, 127
        %v2666 = vpop.permute.xlu0 %2665
        %v2667 = vsel %vm1012, %v2666, 0.0
        %2668 = vrot.lane.b32.xlu0 %v2655, 126
        %v2669 = vpop.permute.xlu0 %2668
        %v2670 = vsel %vm1016, %v2669, 0.0
        %2671 = vrot.lane.b32.xlu0 %v2655, 125
        %v2672 = vpop.permute.xlu0 %2671
        %v2673 = vsel %vm1020, %v2672, 0.0
        %s2674 = scalar_lea.vmem %s5, 48
        %v2675 = vld [vmem:[%s2674] sm:$0xf]
        %v2676 = vld [vmem:[%s2674 + $0x4] sm:$0xf]
        %v2677 = vpack.c.bf16 %v2661, %v2658
        %v2678 = vpack.c.bf16 %v2655, %v2664
        %v2679 = vpack.c.bf16 %v2670, %v2667
        %v2680 = vpack.c.bf16 0.0, %v2673
        %s2681 = scalar_lea.vmem %s6, 96
        %v2682 = vld [vmem:[%s2681] sm:$0xff]
        %v2683 = vld [vmem:[%s2681 + $0x8] sm:$0xff]
        %2685 = vset.pattern.permute.xlu0 0
        %2686 = vperm.xlu0 %2685, %v2682
        %v2687 = vpop.permute.xlu0 %2686
        %2690 = vset.pattern.permute.xlu0 0
        %2691 = vperm.xlu0 %2690, %v2683
        %v2692 = vpop.permute.xlu0 %2691
        %v2696 = vunpack.c.l.b16 %v2675
        %v2697 = vunpack.c.l.b16 %v2676
        %v2698 = vpack.c.b16 %v2697, %v2696
        %v2700 = vsel %vm798, %v2698, 0
        %2702 = vmatprep.subr.bf16.mxu0 0
        %2703 = vmatpush1.bf16.msra.mxu0 %v2677
        %2704 = vmatprep.subr.bf16.mxu0 0
        %2705 = vmatpush1.bf16.msra.mxu0 %v2678
        %2706 = vmatprep.subr.bf16.mxu0 0
        %2707 = vmatpush1.bf16.msra.mxu0 %v2679
        %2708 = vmatprep.subr.bf16.mxu0 0
        %2709 = vmatpush1.bf16.msra.mxu0 %v2680
        %2710 = vmatprep.subr.bf16.mxu0 0
        %2711 = vmatpush1.bf16.msra.mxu0 0
        %2712 = vmatprep.subr.bf16.mxu0 0
        %2713 = vmatpush1.bf16.msra.mxu0 0
        %2714 = vmatprep.subr.bf16.mxu0 0
        %2715 = vmatpush1.bf16.msra.mxu0 0
        %2716 = vmatprep.subr.bf16.mxu0 0
        %2717 = vmatpush1.bf16.msra.mxu0 0
        %2718 = vmatprep.subr.bf16.mxu0 0
        %2719 = vmatpush1.bf16.msra.mxu0 0
        %2720 = vmatprep.subr.bf16.mxu0 0
        %2721 = vmatpush1.bf16.msra.mxu0 0
        %2722 = vmatprep.subr.bf16.mxu0 0
        %2723 = vmatpush1.bf16.msra.mxu0 0
        %2724 = vmatprep.subr.bf16.mxu0 0
        %2725 = vmatpush1.bf16.msra.mxu0 0
        %2726 = vmatprep.subr.bf16.mxu0 0
        %2727 = vmatpush1.bf16.msra.mxu0 0
        %2728 = vmatprep.subr.bf16.mxu0 0
        %2729 = vmatpush1.bf16.msra.mxu0 0
        %2730 = vmatprep.subr.bf16.mxu0 0
        %2731 = vmatpush1.bf16.msra.mxu0 0
        %2732 = vmatprep.subr.bf16.mxu0 0
        %2733 = vmatpush1.bf16.msra.mxu0 0
        %2734 = vmatprep.mubr.bf16.mxu0 0
        %2735 = vmatmul.mubr.bf16.gmra.mrb[0].mxu0 %v2700
        %v2736 = vpop.f32.mrb[0].mxu0
        %v2737 = vadd.f32 %v2687, %v2736
        %v2738 = vpop.f32.mrb[0].mxu0
        %v2739 = vpop.f32.mrb[0].mxu0
        %v2740 = vadd.f32 %v2692, %v2739
        %v2741 = vpop.f32.mrb[0].mxu0
        %2742 = vdwg.mxu0
        %v2743 = vmax.f32 %v2737, 0.0
        %v2744 = vmax.f32 %v2740, 0.0
        %s2745 = scalar_lea.vmem %s7, 96
        %v2746 = vld [vmem:[%s2745] sm:$0xff]
        %v2747 = vld [vmem:[%s2745 + $0x8] sm:$0xff]
        %2749 = vset.pattern.permute.xlu0 0
        %2750 = vperm.xlu0 %2749, %v2746
        %v2751 = vpop.permute.xlu0 %2750
        %2754 = vset.pattern.permute.xlu0 0
        %2755 = vperm.xlu0 %2754, %v2747
        %v2756 = vpop.permute.xlu0 %2755
        %v2758 = vmul.f32 %v2743, %v2751
        %v2759 = vmul.f32 %v2744, %v2756
        %s2760 = scalar_lea.vmem %s8, 96
        %v2761 = vld [vmem:[%s2760] sm:$0xff]
        %v2762 = vld [vmem:[%s2760 + $0x8] sm:$0xff]
        %2764 = vset.pattern.permute.xlu0 0
        %2765 = vperm.xlu0 %2764, %v2761
        %v2766 = vpop.permute.xlu0 %2765
        %2769 = vset.pattern.permute.xlu0 0
        %2770 = vperm.xlu0 %2769, %v2762
        %v2771 = vpop.permute.xlu0 %2770
        %v2773 = vadd.f32 %v2758, %v2766
        %v2774 = vadd.f32 %v2759, %v2771
        %v2775 = vadd.f32 %v2773, %v2774
        %2776 = vadd.xlane.f32.xlu0 %v2775
        %v2777 = vpop.xlane.xlu0 %2776
        %v2778 = vmul.f32 %v2777, %v1122
        %s2779 = scalar_lea.vmem %s9, 48
        %v2780 = vld [vmem:[%s2779] sm:$0xf]
        %v2781 = vld [vmem:[%s2779 + $0x4] sm:$0xf]
        %v2782 = vpack.c.bf16 %v2778, %v2778
        %s2783 = scalar_lea.vmem %s10, 96
        %v2784 = vld [vmem:[%s2783] sm:$0xff]
        %v2785 = vld [vmem:[%s2783 + $0x8] sm:$0xff]
        %2787 = vset.pattern.permute.xlu0 0
        %2788 = vperm.xlu0 %2787, %v2784
        %v2789 = vpop.permute.xlu0 %2788
        %2792 = vset.pattern.permute.xlu0 0
        %2793 = vperm.xlu0 %2792, %v2785
        %v2794 = vpop.permute.xlu0 %2793
        %v2798 = vunpack.c.l.b16 %v2780
        %v2799 = vunpack.c.l.b16 %v2781
        %v2800 = vpack.c.b16 %v2799, %v2798
        %v2802 = vsel %vm1144, %v2800, 0
        %v2805 = vsel %vm1148, %v2782, 0
        %2807 = vmatprep.subr.bf16.mxu0 0
        %2808 = vmatpush1.bf16.msra.mxu0 %v2805
        %2809 = vmatprep.subr.bf16.mxu0 0
        %2810 = vmatpush1.bf16.msra.mxu0 0
        %2811 = vmatprep.subr.bf16.mxu0 0
        %2812 = vmatpush1.bf16.msra.mxu0 0
        %2813 = vmatprep.subr.bf16.mxu0 0
        %2814 = vmatpush1.bf16.msra.mxu0 0
        %2815 = vmatprep.subr.bf16.mxu0 0
        %2816 = vmatpush1.bf16.msra.mxu0 0
        %2817 = vmatprep.subr.bf16.mxu0 0
        %2818 = vmatpush1.bf16.msra.mxu0 0
        %2819 = vmatprep.subr.bf16.mxu0 0
        %2820 = vmatpush1.bf16.msra.mxu0 0
        %2821 = vmatprep.subr.bf16.mxu0 0
        %2822 = vmatpush1.bf16.msra.mxu0 0
        %2823 = vmatprep.subr.bf16.mxu0 0
        %2824 = vmatpush1.bf16.msra.mxu0 0
        %2825 = vmatprep.subr.bf16.mxu0 0
        %2826 = vmatpush1.bf16.msra.mxu0 0
        %2827 = vmatprep.subr.bf16.mxu0 0
        %2828 = vmatpush1.bf16.msra.mxu0 0
        %2829 = vmatprep.subr.bf16.mxu0 0
        %2830 = vmatpush1.bf16.msra.mxu0 0
        %2831 = vmatprep.subr.bf16.mxu0 0
        %2832 = vmatpush1.bf16.msra.mxu0 0
        %2833 = vmatprep.subr.bf16.mxu0 0
        %2834 = vmatpush1.bf16.msra.mxu0 0
        %2835 = vmatprep.subr.bf16.mxu0 0
        %2836 = vmatpush1.bf16.msra.mxu0 0
        %2837 = vmatprep.subr.bf16.mxu0 0
        %2838 = vmatpush1.bf16.msra.mxu0 0
        %2839 = vmatprep.mubr.bf16.mxu0 0
        %2840 = vmatmul.mubr.bf16.gmra.mrb[0].mxu0 %v2802
        %v2841 = vpop.f32.mrb[0].mxu0
        %v2842 = vadd.f32 %v2789, %v2841
        %v2843 = vpop.f32.mrb[0].mxu0
        %v2844 = vpop.f32.mrb[0].mxu0
        %v2845 = vadd.f32 %v2794, %v2844
        %v2846 = vpop.f32.mrb[0].mxu0
        %2847 = vdwg.mxu0
        %v2848 = vmax.f32 %v2842, 0.0
        %v2849 = vmax.f32 %v2845, 0.0
        %s2850 = scalar_lea.vmem %s11, 48
        %v2851 = vld [vmem:[%s2850] sm:$0xf]
        %v2852 = vld [vmem:[%s2850 + $0x4] sm:$0xf]
        %v2853 = vpack.c.bf16 %v2849, %v2848
        %s2854 = scalar_lea.vmem %s12, 96
        %v2855 = vld [vmem:[%s2854] sm:$0xff]
        %v2856 = vld [vmem:[%s2854 + $0x8] sm:$0xff]
        %2858 = vset.pattern.permute.xlu0 0
        %2859 = vperm.xlu0 %2858, %v2855
        %v2860 = vpop.permute.xlu0 %2859
        %2863 = vset.pattern.permute.xlu0 0
        %2864 = vperm.xlu0 %2863, %v2856
        %v2865 = vpop.permute.xlu0 %2864
        %v2869 = vunpack.c.l.b16 %v2851
        %v2870 = vunpack.c.l.b16 %v2852
        %v2871 = vpack.c.b16 %v2870, %v2869
        %v2873 = vsel %vm1215, %v2871, 0
        %2875 = vmatprep.subr.bf16.mxu0 0
        %2876 = vmatpush1.bf16.msra.mxu0 %v2853
        %2877 = vmatprep.subr.bf16.mxu0 0
        %2878 = vmatpush1.bf16.msra.mxu0 0
        %2879 = vmatprep.subr.bf16.mxu0 0
        %2880 = vmatpush1.bf16.msra.mxu0 0
        %2881 = vmatprep.subr.bf16.mxu0 0
        %2882 = vmatpush1.bf16.msra.mxu0 0
        %2883 = vmatprep.subr.bf16.mxu0 0
        %2884 = vmatpush1.bf16.msra.mxu0 0
        %2885 = vmatprep.subr.bf16.mxu0 0
        %2886 = vmatpush1.bf16.msra.mxu0 0
        %2887 = vmatprep.subr.bf16.mxu0 0
        %2888 = vmatpush1.bf16.msra.mxu0 0
        %2889 = vmatprep.subr.bf16.mxu0 0
        %2890 = vmatpush1.bf16.msra.mxu0 0
        %2891 = vmatprep.subr.bf16.mxu0 0
        %2892 = vmatpush1.bf16.msra.mxu0 0
        %2893 = vmatprep.subr.bf16.mxu0 0
        %2894 = vmatpush1.bf16.msra.mxu0 0
        %2895 = vmatprep.subr.bf16.mxu0 0
        %2896 = vmatpush1.bf16.msra.mxu0 0
        %2897 = vmatprep.subr.bf16.mxu0 0
        %2898 = vmatpush1.bf16.msra.mxu0 0
        %2899 = vmatprep.subr.bf16.mxu0 0
        %2900 = vmatpush1.bf16.msra.mxu0 0
        %2901 = vmatprep.subr.bf16.mxu0 0
        %2902 = vmatpush1.bf16.msra.mxu0 0
        %2903 = vmatprep.subr.bf16.mxu0 0
        %2904 = vmatpush1.bf16.msra.mxu0 0
        %2905 = vmatprep.subr.bf16.mxu0 0
        %2906 = vmatpush1.bf16.msra.mxu0 0
        %2907 = vmatprep.mubr.bf16.mxu0 0
        %2908 = vmatmul.mubr.bf16.gmra.mrb[0].mxu0 %v2873
        %v2909 = vpop.f32.mrb[0].mxu0
        %v2910 = vadd.f32 %v2860, %v2909
        %v2911 = vpop.f32.mrb[0].mxu0
        %v2912 = vpop.f32.mrb[0].mxu0
        %v2913 = vadd.f32 %v2865, %v2912
        %v2914 = vpop.f32.mrb[0].mxu0
        %2915 = vdwg.mxu0
        %v2916 = vmax.f32 %v2910, %v2913
        %v2917 = vsub.f32 %v2910, %v2916
        %v2918 = vmul.f32 %v2917, 1.442695
        %v2919 = vpow.pop %v2918
        %v2920 = vsub.f32 %v2913, %v2916
        %v2921 = vmul.f32 %v2920, 1.442695
        %v2922 = vpow.pop %v2921
        %v2923 = vadd.f32 %v2919, %v2922
        %v2924 = vrcp.pop %v2923
        %v2925 = vmul.f32 %v2919, %v2924
        %v2926 = vmul.f32 %v2925, %v2773
        %v2927 = vmul.f32 %v2922, %v2924
        %v2928 = vmul.f32 %v2927, %v2774
        %v2929 = vadd.f32 %v2926, %v2928
        %2930 = vst [vmem:[#allocation2 + $0x30] sm:$0xff] %v2929
        %2931 = vst [vmem:[#allocation2 + $0x38] sm:$0xff] %v995
        %v2932 = vld [vmem:[%s13] sm:$0xf]
        %v2933 = vld [vmem:[%s13 + $0x4] sm:$0xf]
        %v2934 = vld [vmem:[%s13 + $0x8] sm:$0xf]
        %v2935 = vld [vmem:[%s13 + $0xc] sm:$0xf]
        %v2936 = vld [vmem:[%s13 + $0x10] sm:$0xf]
        %v2937 = vld [vmem:[%s13 + $0x14] sm:$0xf]
        %v2938 = vld [vmem:[%s13 + $0x18] sm:$0xf]
        %v2939 = vld [vmem:[%s13 + $0x1c] sm:$0xf]
        %v2940 = vld [vmem:[#allocation2] sm:$0xff]
        %v2941 = vld [vmem:[#allocation2 + $0x8] sm:$0xff]
        %v2942 = vld [vmem:[#allocation2 + $0x10] sm:$0xff]
        %v2943 = vld [vmem:[#allocation2 + $0x18] sm:$0xff]
        %v2944 = vld [vmem:[#allocation2 + $0x20] sm:$0xff]
        %v2945 = vld [vmem:[#allocation2 + $0x28] sm:$0xff]
        %v2946 = vld [vmem:[#allocation2 + $0x30] sm:$0xff]
        %v2947 = vld [vmem:[#allocation2 + $0x38] sm:$0xff]
        %v2948 = vpack.c.bf16 %v2941, %v2940
        %v2949 = vpack.c.bf16 %v2943, %v2942
        %v2950 = vpack.c.bf16 %v2945, %v2944
        %v2951 = vpack.c.bf16 %v2947, %v2946
        %v2952 = vld [vmem:[%s14] sm:$0xff]
        %v2953 = vld [vmem:[%s14 + $0x8] sm:$0xff]
        %v2954 = vld [vmem:[%s14 + $0x10] sm:$0xff]
        %v2955 = vld [vmem:[%s14 + $0x18] sm:$0xff]
        %v2956 = vld [vmem:[%s14 + $0x20] sm:$0xff]
        %v2957 = vld [vmem:[%s14 + $0x28] sm:$0xff]
        %v2958 = vld [vmem:[%s14 + $0x30] sm:$0xff]
        %v2959 = vld [vmem:[%s14 + $0x38] sm:$0xff]
        %2961 = vset.pattern.permute.xlu0 0
        %2962 = vperm.xlu0 %2961, %v2952
        %v2963 = vpop.permute.xlu0 %2962
        %2966 = vset.pattern.permute.xlu0 0
        %2967 = vperm.xlu0 %2966, %v2953
        %v2968 = vpop.permute.xlu0 %2967
        %2971 = vset.pattern.permute.xlu0 0
        %2972 = vperm.xlu0 %2971, %v2954
        %v2973 = vpop.permute.xlu0 %2972
        %2976 = vset.pattern.permute.xlu0 0
        %2977 = vperm.xlu0 %2976, %v2955
        %v2978 = vpop.permute.xlu0 %2977
        %2981 = vset.pattern.permute.xlu0 0
        %2982 = vperm.xlu0 %2981, %v2956
        %v2983 = vpop.permute.xlu0 %2982
        %2986 = vset.pattern.permute.xlu0 0
        %2987 = vperm.xlu0 %2986, %v2957
        %v2988 = vpop.permute.xlu0 %2987
        %2991 = vset.pattern.permute.xlu0 0
        %2992 = vperm.xlu0 %2991, %v2958
        %v2993 = vpop.permute.xlu0 %2992
        %2996 = vset.pattern.permute.xlu0 0
        %2997 = vperm.xlu0 %2996, %v2959
        %v2998 = vpop.permute.xlu0 %2997
        %v3008 = vunpack.c.l.b16 %v2932
        %v3009 = vunpack.c.l.b16 %v2933
        %v3010 = vunpack.c.l.b16 %v2934
        %v3011 = vunpack.c.l.b16 %v2935
        %v3012 = vunpack.c.l.b16 %v2936
        %v3013 = vunpack.c.l.b16 %v2937
        %v3014 = vunpack.c.l.b16 %v2938
        %v3015 = vunpack.c.l.b16 %v2939
        %v3016 = vpack.c.b16 %v3009, %v3008
        %v3017 = vpack.c.b16 %v3011, %v3010
        %v3018 = vpack.c.b16 %v3013, %v3012
        %v3019 = vpack.c.b16 %v3015, %v3014
        %v3021 = vsel %vm798, %v3016, 0
        %v3024 = vsel %vm798, %v3017, 0
        %v3027 = vsel %vm798, %v3018, 0
        %v3030 = vsel %vm798, %v3019, 0
        %3032 = vmatprep.subr.bf16.mxu0 0
        %3033 = vmatpush1.bf16.msra.mxu0 %v2948
        %3034 = vmatprep.subr.bf16.mxu0 0
        %3035 = vmatpush1.bf16.msra.mxu0 %v2949
        %3036 = vmatprep.subr.bf16.mxu0 0
        %3037 = vmatpush1.bf16.msra.mxu0 %v2950
        %3038 = vmatprep.subr.bf16.mxu0 0
        %3039 = vmatpush1.bf16.msra.mxu0 %v2951
        %3040 = vmatprep.subr.bf16.mxu0 0
        %3041 = vmatpush1.bf16.msra.mxu0 0
        %3042 = vmatprep.subr.bf16.mxu0 0
        %3043 = vmatpush1.bf16.msra.mxu0 0
        %3044 = vmatprep.subr.bf16.mxu0 0
        %3045 = vmatpush1.bf16.msra.mxu0 0
        %3046 = vmatprep.subr.bf16.mxu0 0
        %3047 = vmatpush1.bf16.msra.mxu0 0
        %3048 = vmatprep.subr.bf16.mxu0 0
        %3049 = vmatpush1.bf16.msra.mxu0 0
        %3050 = vmatprep.subr.bf16.mxu0 0
        %3051 = vmatpush1.bf16.msra.mxu0 0
        %3052 = vmatprep.subr.bf16.mxu0 0
        %3053 = vmatpush1.bf16.msra.mxu0 0
        %3054 = vmatprep.subr.bf16.mxu0 0
        %3055 = vmatpush1.bf16.msra.mxu0 0
        %3056 = vmatprep.subr.bf16.mxu0 0
        %3057 = vmatpush1.bf16.msra.mxu0 0
        %3058 = vmatprep.subr.bf16.mxu0 0
        %3059 = vmatpush1.bf16.msra.mxu0 0
        %3060 = vmatprep.subr.bf16.mxu0 0
        %3061 = vmatpush1.bf16.msra.mxu0 0
        %3062 = vmatprep.subr.bf16.mxu0 0
        %3063 = vmatpush1.bf16.msra.mxu0 0
        %3064 = vmatprep.mubr.bf16.mxu0 0
        %3065 = vmatmul.mubr.bf16.gmra.mrb[0].mxu0 %v3021
        %v3066 = vpop.f32.mrb[0].mxu0
        %v3067 = vadd.f32 %v2963, %v3066
        %v3068 = vpop.f32.mrb[0].mxu0
        %v3069 = vpop.f32.mrb[0].mxu0
        %v3070 = vadd.f32 %v2968, %v3069
        %v3071 = vpop.f32.mrb[0].mxu0
        %3072 = vmatprep.mubr.bf16.mxu0 0
        %3073 = vmatmul.mubr.bf16.gmra.mrb[0].mxu0 %v3024
        %v3074 = vpop.f32.mrb[0].mxu0
        %v3075 = vadd.f32 %v2973, %v3074
        %v3076 = vpop.f32.mrb[0].mxu0
        %v3077 = vpop.f32.mrb[0].mxu0
        %v3078 = vadd.f32 %v2978, %v3077
        %v3079 = vpop.f32.mrb[0].mxu0
        %3080 = vmatprep.mubr.bf16.mxu0 0
        %3081 = vmatmul.mubr.bf16.gmra.mrb[0].mxu0 %v3027
        %v3082 = vpop.f32.mrb[0].mxu0
        %v3083 = vadd.f32 %v2983, %v3082
        %v3084 = vpop.f32.mrb[0].mxu0
        %v3085 = vpop.f32.mrb[0].mxu0
        %v3086 = vadd.f32 %v2988, %v3085
        %v3087 = vpop.f32.mrb[0].mxu0
        %3088 = vmatprep.mubr.bf16.mxu0 0
        %3089 = vmatmul.mubr.bf16.gmra.mrb[0].mxu0 %v3030
        %v3090 = vpop.f32.mrb[0].mxu0
        %v3091 = vadd.f32 %v2993, %v3090
        %v3092 = vpop.f32.mrb[0].mxu0
        %v3093 = vpop.f32.mrb[0].mxu0
        %v3094 = vadd.f32 %v2998, %v3093
        %v3095 = vpop.f32.mrb[0].mxu0
        %3096 = vdwg.mxu0
        %v3097 = vmax.f32 %v3067, 0.0
        %v3098 = vmax.f32 %v3070, 0.0
        %v3099 = vmax.f32 %v3075, 0.0
        %v3100 = vmax.f32 %v3078, 0.0
        %v3101 = vmax.f32 %v3083, 0.0
        %v3102 = vmax.f32 %v3086, 0.0
        %v3103 = vmax.f32 %v3091, 0.0
        %v3104 = vmax.f32 %v3094, 0.0
        %v3105 = vld [vmem:[%s15] sm:$0xff]
        %v3106 = vld [vmem:[%s15 + $0x8] sm:$0xff]
        %v3107 = vld [vmem:[%s15 + $0x10] sm:$0xff]
        %v3108 = vld [vmem:[%s15 + $0x18] sm:$0xff]
        %v3109 = vld [vmem:[%s15 + $0x20] sm:$0xff]
        %v3110 = vld [vmem:[%s15 + $0x28] sm:$0xff]
        %v3111 = vld [vmem:[%s15 + $0x30] sm:$0xff]
        %v3112 = vld [vmem:[%s15 + $0x38] sm:$0xff]
        %3114 = vset.pattern.permute.xlu0 0
        %3115 = vperm.xlu0 %3114, %v3105
        %v3116 = vpop.permute.xlu0 %3115
        %3119 = vset.pattern.permute.xlu0 0
        %3120 = vperm.xlu0 %3119, %v3106
        %v3121 = vpop.permute.xlu0 %3120
        %3124 = vset.pattern.permute.xlu0 0
        %3125 = vperm.xlu0 %3124, %v3107
        %v3126 = vpop.permute.xlu0 %3125
        %3129 = vset.pattern.permute.xlu0 0
        %3130 = vperm.xlu0 %3129, %v3108
        %v3131 = vpop.permute.xlu0 %3130
        %3134 = vset.pattern.permute.xlu0 0
        %3135 = vperm.xlu0 %3134, %v3109
        %v3136 = vpop.permute.xlu0 %3135
        %3139 = vset.pattern.permute.xlu0 0
        %3140 = vperm.xlu0 %3139, %v3110
        %v3141 = vpop.permute.xlu0 %3140
        %3144 = vset.pattern.permute.xlu0 0
        %3145 = vperm.xlu0 %3144, %v3111
        %v3146 = vpop.permute.xlu0 %3145
        %3149 = vset.pattern.permute.xlu0 0
        %3150 = vperm.xlu0 %3149, %v3112
        %v3151 = vpop.permute.xlu0 %3150
        %v3153 = vmul.f32 %v3097, %v3116
        %v3154 = vmul.f32 %v3098, %v3121
        %v3155 = vmul.f32 %v3099, %v3126
        %v3156 = vmul.f32 %v3100, %v3131
        %v3157 = vmul.f32 %v3101, %v3136
        %v3158 = vmul.f32 %v3102, %v3141
        %v3159 = vmul.f32 %v3103, %v3146
        %v3160 = vmul.f32 %v3104, %v3151
        %v3161 = vld [vmem:[%s16] sm:$0xff]
        %v3162 = vld [vmem:[%s16 + $0x8] sm:$0xff]
        %v3163 = vld [vmem:[%s16 + $0x10] sm:$0xff]
        %v3164 = vld [vmem:[%s16 + $0x18] sm:$0xff]
        %v3165 = vld [vmem:[%s16 + $0x20] sm:$0xff]
        %v3166 = vld [vmem:[%s16 + $0x28] sm:$0xff]
        %v3167 = vld [vmem:[%s16 + $0x30] sm:$0xff]
        %v3168 = vld [vmem:[%s16 + $0x38] sm:$0xff]
        %3170 = vset.pattern.permute.xlu0 0
        %3171 = vperm.xlu0 %3170, %v3161
        %v3172 = vpop.permute.xlu0 %3171
        %3175 = vset.pattern.permute.xlu0 0
        %3176 = vperm.xlu0 %3175, %v3162
        %v3177 = vpop.permute.xlu0 %3176
        %3180 = vset.pattern.permute.xlu0 0
        %3181 = vperm.xlu0 %3180, %v3163
        %v3182 = vpop.permute.xlu0 %3181
        %3185 = vset.pattern.permute.xlu0 0
        %3186 = vperm.xlu0 %3185, %v3164
        %v3187 = vpop.permute.xlu0 %3186
        %3190 = vset.pattern.permute.xlu0 0
        %3191 = vperm.xlu0 %3190, %v3165
        %v3192 = vpop.permute.xlu0 %3191
        %3195 = vset.pattern.permute.xlu0 0
        %3196 = vperm.xlu0 %3195, %v3166
        %v3197 = vpop.permute.xlu0 %3196
        %3200 = vset.pattern.permute.xlu0 0
        %3201 = vperm.xlu0 %3200, %v3167
        %v3202 = vpop.permute.xlu0 %3201
        %3205 = vset.pattern.permute.xlu0 0
        %3206 = vperm.xlu0 %3205, %v3168
        %v3207 = vpop.permute.xlu0 %3206
        %v3209 = vadd.f32 %v3153, %v3172
        %v3210 = vadd.f32 %v3154, %v3177
        %v3211 = vadd.f32 %v3155, %v3182
        %v3212 = vadd.f32 %v3156, %v3187
        %v3213 = vadd.f32 %v3157, %v3192
        %v3214 = vadd.f32 %v3158, %v3197
        %v3215 = vadd.f32 %v3159, %v3202
        %v3216 = vadd.f32 %v3160, %v3207
        %3217 = vadd.xlane.f32.xlu0 %v3209
        %v3218 = vpop.xlane.xlu0 %3217
        %3219 = vadd.xlane.f32.xlu0 %v3210
        %v3220 = vpop.xlane.xlu0 %3219
        %3221 = vadd.xlane.f32.xlu0 %v3211
        %v3222 = vpop.xlane.xlu0 %3221
        %3223 = vadd.xlane.f32.xlu0 %v3212
        %v3224 = vpop.xlane.xlu0 %3223
        %3225 = vadd.xlane.f32.xlu0 %v3213
        %v3226 = vpop.xlane.xlu0 %3225
        %3227 = vadd.xlane.f32.xlu0 %v3214
        %v3228 = vpop.xlane.xlu0 %3227
        %3229 = vadd.xlane.f32.xlu0 %v3215
        %v3230 = vpop.xlane.xlu0 %3229
        %3231 = vadd.xlane.f32.xlu0 %v3216
        %v3232 = vpop.xlane.xlu0 %3231
        %v3233 = vmul.f32 %v3218, %v1122
        %v3234 = vmul.f32 %v3220, %v1122
        %v3235 = vmul.f32 %v3222, %v1122
        %v3236 = vmul.f32 %v3224, %v1122
        %v3237 = vmul.f32 %v3226, %v1122
        %v3238 = vmul.f32 %v3228, %v1122
        %v3239 = vmul.f32 %v3230, %v1122
        %v3240 = vmul.f32 %v3232, %v1122
        %v3241 = vld [vmem:[%s17] sm:$0xf]
        %v3242 = vld [vmem:[%s17 + $0x4] sm:$0xf]
        %v3243 = vld [vmem:[%s17 + $0x8] sm:$0xf]
        %v3244 = vld [vmem:[%s17 + $0xc] sm:$0xf]
        %v3245 = vld [vmem:[%s17 + $0x10] sm:$0xf]
        %v3246 = vld [vmem:[%s17 + $0x14] sm:$0xf]
        %v3247 = vld [vmem:[%s17 + $0x18] sm:$0xf]
        %v3248 = vld [vmem:[%s17 + $0x1c] sm:$0xf]
        %v3249 = vld [vmem:[%s17 + $0x20] sm:$0xf]
        %v3250 = vld [vmem:[%s17 + $0x24] sm:$0xf]
        %v3251 = vld [vmem:[%s17 + $0x28] sm:$0xf]
        %v3252 = vld [vmem:[%s17 + $0x2c] sm:$0xf]
        %v3253 = vld [vmem:[%s17 + $0x30] sm:$0xf]
        %v3254 = vld [vmem:[%s17 + $0x34] sm:$0xf]
        %v3255 = vld [vmem:[%s17 + $0x38] sm:$0xf]
        %v3256 = vld [vmem:[%s17 + $0x3c] sm:$0xf]
        %v3257 = vpack.c.bf16 %v3234, %v3233
        %v3258 = vpack.c.bf16 %v3236, %v3235
        %v3259 = vpack.c.bf16 %v3238, %v3237
        %v3260 = vpack.c.bf16 %v3240, %v3239
        %v3261 = vld [vmem:[%s18] sm:$0xff]
        %v3262 = vld [vmem:[%s18 + $0x8] sm:$0xff]
        %v3263 = vld [vmem:[%s18 + $0x10] sm:$0xff]
        %v3264 = vld [vmem:[%s18 + $0x18] sm:$0xff]
        %v3265 = vld [vmem:[%s18 + $0x20] sm:$0xff]
        %v3266 = vld [vmem:[%s18 + $0x28] sm:$0xff]
        %v3267 = vld [vmem:[%s18 + $0x30] sm:$0xff]
        %v3268 = vld [vmem:[%s18 + $0x38] sm:$0xff]
        %v3269 = vld [vmem:[%s18 + $0x40] sm:$0xff]
        %v3270 = vld [vmem:[%s18 + $0x48] sm:$0xff]
        %v3271 = vld [vmem:[%s18 + $0x50] sm:$0xff]
        %v3272 = vld [vmem:[%s18 + $0x58] sm:$0xff]
        %v3273 = vld [vmem:[%s18 + $0x60] sm:$0xff]
        %v3274 = vld [vmem:[%s18 + $0x68] sm:$0xff]
        %v3275 = vld [vmem:[%s18 + $0x70] sm:$0xff]
        %v3276 = vld [vmem:[%s18 + $0x78] sm:$0xff]
        %3278 = vset.pattern.permute.xlu0 0
        %3279 = vperm.xlu0 %3278, %v3261
        %v3280 = vpop.permute.xlu0 %3279
        %3283 = vset.pattern.permute.xlu0 0
        %3284 = vperm.xlu0 %3283, %v3262
        %v3285 = vpop.permute.xlu0 %3284
        %3288 = vset.pattern.permute.xlu0 0
        %3289 = vperm.xlu0 %3288, %v3263
        %v3290 = vpop.permute.xlu0 %3289
        %3293 = vset.pattern.permute.xlu0 0
        %3294 = vperm.xlu0 %3293, %v3264
        %v3295 = vpop.permute.xlu0 %3294
        %3298 = vset.pattern.permute.xlu0 0
        %3299 = vperm.xlu0 %3298, %v3265
        %v3300 = vpop.permute.xlu0 %3299
        %3303 = vset.pattern.permute.xlu0 0
        %3304 = vperm.xlu0 %3303, %v3266
        %v3305 = vpop.permute.xlu0 %3304
        %3308 = vset.pattern.permute.xlu0 0
        %3309 = vperm.xlu0 %3308, %v3267
        %v3310 = vpop.permute.xlu0 %3309
        %3313 = vset.pattern.permute.xlu0 0
        %3314 = vperm.xlu0 %3313, %v3268
        %v3315 = vpop.permute.xlu0 %3314
        %3318 = vset.pattern.permute.xlu0 0
        %3319 = vperm.xlu0 %3318, %v3269
        %v3320 = vpop.permute.xlu0 %3319
        %3323 = vset.pattern.permute.xlu0 0
        %3324 = vperm.xlu0 %3323, %v3270
        %v3325 = vpop.permute.xlu0 %3324
        %3328 = vset.pattern.permute.xlu0 0
        %3329 = vperm.xlu0 %3328, %v3271
        %v3330 = vpop.permute.xlu0 %3329
        %3333 = vset.pattern.permute.xlu0 0
        %3334 = vperm.xlu0 %3333, %v3272
        %v3335 = vpop.permute.xlu0 %3334
        %3338 = vset.pattern.permute.xlu0 0
        %3339 = vperm.xlu0 %3338, %v3273
        %v3340 = vpop.permute.xlu0 %3339
        %3343 = vset.pattern.permute.xlu0 0
        %3344 = vperm.xlu0 %3343, %v3274
        %v3345 = vpop.permute.xlu0 %3344
        %3348 = vset.pattern.permute.xlu0 0
        %3349 = vperm.xlu0 %3348, %v3275
        %v3350 = vpop.permute.xlu0 %3349
        %3353 = vset.pattern.permute.xlu0 0
        %3354 = vperm.xlu0 %3353, %v3276
        %v3355 = vpop.permute.xlu0 %3354
        %v3373 = vunpack.c.l.b16 %v3241
        %v3374 = vunpack.c.l.b16 %v3242
        %v3375 = vunpack.c.l.b16 %v3243
        %v3376 = vunpack.c.l.b16 %v3244
        %v3377 = vunpack.c.l.b16 %v3245
        %v3378 = vunpack.c.l.b16 %v3246
        %v3379 = vunpack.c.l.b16 %v3247
        %v3380 = vunpack.c.l.b16 %v3248
        %v3381 = vunpack.c.l.b16 %v3249
        %v3382 = vunpack.c.l.b16 %v3250
        %v3383 = vunpack.c.l.b16 %v3251
        %v3384 = vunpack.c.l.b16 %v3252
        %v3385 = vunpack.c.l.b16 %v3253
        %v3386 = vunpack.c.l.b16 %v3254
        %v3387 = vunpack.c.l.b16 %v3255
        %v3388 = vunpack.c.l.b16 %v3256
        %v3389 = vpack.c.b16 %v3374, %v3373
        %v3390 = vpack.c.b16 %v3376, %v3375
        %v3391 = vpack.c.b16 %v3378, %v3377
        %v3392 = vpack.c.b16 %v3380, %v3379
        %v3393 = vpack.c.b16 %v3382, %v3381
        %v3394 = vpack.c.b16 %v3384, %v3383
        %v3395 = vpack.c.b16 %v3386, %v3385
        %v3396 = vpack.c.b16 %v3388, %v3387
        %v3398 = vsel %vm798, %v3389, 0
        %v3401 = vsel %vm798, %v3390, 0
        %v3404 = vsel %vm798, %v3391, 0
        %v3407 = vsel %vm798, %v3392, 0
        %v3410 = vsel %vm798, %v3393, 0
        %v3413 = vsel %vm798, %v3394, 0
        %v3416 = vsel %vm798, %v3395, 0
        %v3419 = vsel %vm798, %v3396, 0
        %3421 = vmatprep.subr.bf16.mxu0 0
        %3422 = vmatpush1.bf16.msra.mxu0 %v3257
        %3423 = vmatprep.subr.bf16.mxu0 0
        %3424 = vmatpush1.bf16.msra.mxu0 %v3258
        %3425 = vmatprep.subr.bf16.mxu0 0
        %3426 = vmatpush1.bf16.msra.mxu0 %v3259
        %3427 = vmatprep.subr.bf16.mxu0 0
        %3428 = vmatpush1.bf16.msra.mxu0 %v3260
        %3429 = vmatprep.subr.bf16.mxu0 0
        %3430 = vmatpush1.bf16.msra.mxu0 0
        %3431 = vmatprep.subr.bf16.mxu0 0
        %3432 = vmatpush1.bf16.msra.mxu0 0
        %3433 = vmatprep.subr.bf16.mxu0 0
        %3434 = vmatpush1.bf16.msra.mxu0 0
        %3435 = vmatprep.subr.bf16.mxu0 0
        %3436 = vmatpush1.bf16.msra.mxu0 0
        %3437 = vmatprep.subr.bf16.mxu0 0
        %3438 = vmatpush1.bf16.msra.mxu0 0
        %3439 = vmatprep.subr.bf16.mxu0 0
        %3440 = vmatpush1.bf16.msra.mxu0 0
        %3441 = vmatprep.subr.bf16.mxu0 0
        %3442 = vmatpush1.bf16.msra.mxu0 0
        %3443 = vmatprep.subr.bf16.mxu0 0
        %3444 = vmatpush1.bf16.msra.mxu0 0
        %3445 = vmatprep.subr.bf16.mxu0 0
        %3446 = vmatpush1.bf16.msra.mxu0 0
        %3447 = vmatprep.subr.bf16.mxu0 0
        %3448 = vmatpush1.bf16.msra.mxu0 0
        %3449 = vmatprep.subr.bf16.mxu0 0
        %3450 = vmatpush1.bf16.msra.mxu0 0
        %3451 = vmatprep.subr.bf16.mxu0 0
        %3452 = vmatpush1.bf16.msra.mxu0 0
        %3453 = vmatprep.mubr.bf16.mxu0 0
        %3454 = vmatmul.mubr.bf16.gmra.mrb[0].mxu0 %v3398
        %v3455 = vpop.f32.mrb[0].mxu0
        %v3456 = vadd.f32 %v3280, %v3455
        %v3457 = vpop.f32.mrb[0].mxu0
        %v3458 = vpop.f32.mrb[0].mxu0
        %v3459 = vadd.f32 %v3285, %v3458
        %v3460 = vpop.f32.mrb[0].mxu0
        %3461 = vmatprep.mubr.bf16.mxu0 0
        %3462 = vmatmul.mubr.bf16.gmra.mrb[0].mxu0 %v3401
        %v3463 = vpop.f32.mrb[0].mxu0
        %v3464 = vadd.f32 %v3290, %v3463
        %v3465 = vpop.f32.mrb[0].mxu0
        %v3466 = vpop.f32.mrb[0].mxu0
        %v3467 = vadd.f32 %v3295, %v3466
        %v3468 = vpop.f32.mrb[0].mxu0
        %3469 = vmatprep.mubr.bf16.mxu0 0
        %3470 = vmatmul.mubr.bf16.gmra.mrb[0].mxu0 %v3404
        %v3471 = vpop.f32.mrb[0].mxu0
        %v3472 = vadd.f32 %v3300, %v3471
        %v3473 = vpop.f32.mrb[0].mxu0
        %v3474 = vpop.f32.mrb[0].mxu0
        %v3475 = vadd.f32 %v3305, %v3474
        %v3476 = vpop.f32.mrb[0].mxu0
        %3477 = vmatprep.mubr.bf16.mxu0 0
        %3478 = vmatmul.mubr.bf16.gmra.mrb[0].mxu0 %v3407
        %v3479 = vpop.f32.mrb[0].mxu0
        %v3480 = vadd.f32 %v3310, %v3479
        %v3481 = vpop.f32.mrb[0].mxu0
        %v3482 = vpop.f32.mrb[0].mxu0
        %v3483 = vadd.f32 %v3315, %v3482
        %v3484 = vpop.f32.mrb[0].mxu0
        %3485 = vmatprep.mubr.bf16.mxu0 0
        %3486 = vmatmul.mubr.bf16.gmra.mrb[0].mxu0 %v3410
        %v3487 = vpop.f32.mrb[0].mxu0
        %v3488 = vadd.f32 %v3320, %v3487
        %v3489 = vpop.f32.mrb[0].mxu0
        %v3490 = vpop.f32.mrb[0].mxu0
        %v3491 = vadd.f32 %v3325, %v3490
        %v3492 = vpop.f32.mrb[0].mxu0
        %3493 = vmatprep.mubr.bf16.mxu0 0
        %3494 = vmatmul.mubr.bf16.gmra.mrb[0].mxu0 %v3413
        %v3495 = vpop.f32.mrb[0].mxu0
        %v3496 = vadd.f32 %v3330, %v3495
        %v3497 = vpop.f32.mrb[0].mxu0
        %v3498 = vpop.f32.mrb[0].mxu0
        %v3499 = vadd.f32 %v3335, %v3498
        %v3500 = vpop.f32.mrb[0].mxu0
        %3501 = vmatprep.mubr.bf16.mxu0 0
        %3502 = vmatmul.mubr.bf16.gmra.mrb[0].mxu0 %v3416
        %v3503 = vpop.f32.mrb[0].mxu0
        %v3504 = vadd.f32 %v3340, %v3503
        %v3505 = vpop.f32.mrb[0].mxu0
        %v3506 = vpop.f32.mrb[0].mxu0
        %v3507 = vadd.f32 %v3345, %v3506
        %v3508 = vpop.f32.mrb[0].mxu0
        %3509 = vmatprep.mubr.bf16.mxu0 0
        %3510 = vmatmul.mubr.bf16.gmra.mrb[0].mxu0 %v3419
        %v3511 = vpop.f32.mrb[0].mxu0
        %v3512 = vadd.f32 %v3350, %v3511
        %v3513 = vpop.f32.mrb[0].mxu0
        %v3514 = vpop.f32.mrb[0].mxu0
        %v3515 = vadd.f32 %v3355, %v3514
        %v3516 = vpop.f32.mrb[0].mxu0
        %3517 = vdwg.mxu0
        %v3518 = vmax.f32 %v3456, 0.0
        %v3519 = vmax.f32 %v3459, 0.0
        %v3520 = vmax.f32 %v3464, 0.0
        %v3521 = vmax.f32 %v3467, 0.0
        %v3522 = vmax.f32 %v3472, 0.0
        %v3523 = vmax.f32 %v3475, 0.0
        %v3524 = vmax.f32 %v3480, 0.0
        %v3525 = vmax.f32 %v3483, 0.0
        %v3526 = vmax.f32 %v3488, 0.0
        %v3527 = vmax.f32 %v3491, 0.0
        %v3528 = vmax.f32 %v3496, 0.0
        %v3529 = vmax.f32 %v3499, 0.0
        %v3530 = vmax.f32 %v3504, 0.0
        %v3531 = vmax.f32 %v3507, 0.0
        %v3532 = vmax.f32 %v3512, 0.0
        %v3533 = vmax.f32 %v3515, 0.0
        %v3534 = vld [vmem:[%s19] sm:$0xff]
        %v3535 = vld [vmem:[%s19 + $0x8] sm:$0xff]
        %v3536 = vld [vmem:[%s19 + $0x10] sm:$0xff]
        %v3537 = vld [vmem:[%s19 + $0x18] sm:$0xff]
        %v3538 = vld [vmem:[%s19 + $0x20] sm:$0xff]
        %v3539 = vld [vmem:[%s19 + $0x28] sm:$0xff]
        %v3540 = vld [vmem:[%s19 + $0x30] sm:$0xff]
        %v3541 = vld [vmem:[%s19 + $0x38] sm:$0xff]
        %v3542 = vld [vmem:[%s19 + $0x40] sm:$0xff]
        %v3543 = vld [vmem:[%s19 + $0x48] sm:$0xff]
        %v3544 = vld [vmem:[%s19 + $0x50] sm:$0xff]
        %v3545 = vld [vmem:[%s19 + $0x58] sm:$0xff]
        %v3546 = vld [vmem:[%s19 + $0x60] sm:$0xff]
        %v3547 = vld [vmem:[%s19 + $0x68] sm:$0xff]
        %v3548 = vld [vmem:[%s19 + $0x70] sm:$0xff]
        %v3549 = vld [vmem:[%s19 + $0x78] sm:$0xff]
        %3551 = vset.pattern.permute.xlu0 0
        %3552 = vperm.xlu0 %3551, %v3534
        %v3553 = vpop.permute.xlu0 %3552
        %3556 = vset.pattern.permute.xlu0 0
        %3557 = vperm.xlu0 %3556, %v3535
        %v3558 = vpop.permute.xlu0 %3557
        %3561 = vset.pattern.permute.xlu0 0
        %3562 = vperm.xlu0 %3561, %v3536
        %v3563 = vpop.permute.xlu0 %3562
        %3566 = vset.pattern.permute.xlu0 0
        %3567 = vperm.xlu0 %3566, %v3537
        %v3568 = vpop.permute.xlu0 %3567
        %3571 = vset.pattern.permute.xlu0 0
        %3572 = vperm.xlu0 %3571, %v3538
        %v3573 = vpop.permute.xlu0 %3572
        %3576 = vset.pattern.permute.xlu0 0
        %3577 = vperm.xlu0 %3576, %v3539
        %v3578 = vpop.permute.xlu0 %3577
        %3581 = vset.pattern.permute.xlu0 0
        %3582 = vperm.xlu0 %3581, %v3540
        %v3583 = vpop.permute.xlu0 %3582
        %3586 = vset.pattern.permute.xlu0 0
        %3587 = vperm.xlu0 %3586, %v3541
        %v3588 = vpop.permute.xlu0 %3587
        %3591 = vset.pattern.permute.xlu0 0
        %3592 = vperm.xlu0 %3591, %v3542
        %v3593 = vpop.permute.xlu0 %3592
        %3596 = vset.pattern.permute.xlu0 0
        %3597 = vperm.xlu0 %3596, %v3543
        %v3598 = vpop.permute.xlu0 %3597
        %3601 = vset.pattern.permute.xlu0 0
        %3602 = vperm.xlu0 %3601, %v3544
        %v3603 = vpop.permute.xlu0 %3602
        %3606 = vset.pattern.permute.xlu0 0
        %3607 = vperm.xlu0 %3606, %v3545
        %v3608 = vpop.permute.xlu0 %3607
        %3611 = vset.pattern.permute.xlu0 0
        %3612 = vperm.xlu0 %3611, %v3546
        %v3613 = vpop.permute.xlu0 %3612
        %3616 = vset.pattern.permute.xlu0 0
        %3617 = vperm.xlu0 %3616, %v3547
        %v3618 = vpop.permute.xlu0 %3617
        %3621 = vset.pattern.permute.xlu0 0
        %3622 = vperm.xlu0 %3621, %v3548
        %v3623 = vpop.permute.xlu0 %3622
        %3626 = vset.pattern.permute.xlu0 0
        %3627 = vperm.xlu0 %3626, %v3549
        %v3628 = vpop.permute.xlu0 %3627
        %v3630 = vmul.f32 %v3518, %v3553
        %v3631 = vmul.f32 %v3519, %v3558
        %v3632 = vmul.f32 %v3520, %v3563
        %v3633 = vmul.f32 %v3521, %v3568
        %v3634 = vmul.f32 %v3522, %v3573
        %v3635 = vmul.f32 %v3523, %v3578
        %v3636 = vmul.f32 %v3524, %v3583
        %v3637 = vmul.f32 %v3525, %v3588
        %v3638 = vmul.f32 %v3526, %v3593
        %v3639 = vmul.f32 %v3527, %v3598
        %v3640 = vmul.f32 %v3528, %v3603
        %v3641 = vmul.f32 %v3529, %v3608
        %v3642 = vmul.f32 %v3530, %v3613
        %v3643 = vmul.f32 %v3531, %v3618
        %v3644 = vmul.f32 %v3532, %v3623
        %v3645 = vmul.f32 %v3533, %v3628
        %v3646 = vld [vmem:[%s20] sm:$0xff]
        %v3647 = vld [vmem:[%s20 + $0x8] sm:$0xff]
        %v3648 = vld [vmem:[%s20 + $0x10] sm:$0xff]
        %v3649 = vld [vmem:[%s20 + $0x18] sm:$0xff]
        %v3650 = vld [vmem:[%s20 + $0x20] sm:$0xff]
        %v3651 = vld [vmem:[%s20 + $0x28] sm:$0xff]
        %v3652 = vld [vmem:[%s20 + $0x30] sm:$0xff]
        %v3653 = vld [vmem:[%s20 + $0x38] sm:$0xff]
        %v3654 = vld [vmem:[%s20 + $0x40] sm:$0xff]
        %v3655 = vld [vmem:[%s20 + $0x48] sm:$0xff]
        %v3656 = vld [vmem:[%s20 + $0x50] sm:$0xff]
        %v3657 = vld [vmem:[%s20 + $0x58] sm:$0xff]
        %v3658 = vld [vmem:[%s20 + $0x60] sm:$0xff]
        %v3659 = vld [vmem:[%s20 + $0x68] sm:$0xff]
        %v3660 = vld [vmem:[%s20 + $0x70] sm:$0xff]
        %v3661 = vld [vmem:[%s20 + $0x78] sm:$0xff]
        %3663 = vset.pattern.permute.xlu0 0
        %3664 = vperm.xlu0 %3663, %v3646
        %v3665 = vpop.permute.xlu0 %3664
        %3668 = vset.pattern.permute.xlu0 0
        %3669 = vperm.xlu0 %3668, %v3647
        %v3670 = vpop.permute.xlu0 %3669
        %3673 = vset.pattern.permute.xlu0 0
        %3674 = vperm.xlu0 %3673, %v3648
        %v3675 = vpop.permute.xlu0 %3674
        %3678 = vset.pattern.permute.xlu0 0
        %3679 = vperm.xlu0 %3678, %v3649
        %v3680 = vpop.permute.xlu0 %3679
        %3683 = vset.pattern.permute.xlu0 0
        %3684 = vperm.xlu0 %3683, %v3650
        %v3685 = vpop.permute.xlu0 %3684
        %3688 = vset.pattern.permute.xlu0 0
        %3689 = vperm.xlu0 %3688, %v3651
        %v3690 = vpop.permute.xlu0 %3689
        %3693 = vset.pattern.permute.xlu0 0
        %3694 = vperm.xlu0 %3693, %v3652
        %v3695 = vpop.permute.xlu0 %3694
        %3698 = vset.pattern.permute.xlu0 0
        %3699 = vperm.xlu0 %3698, %v3653
        %v3700 = vpop.permute.xlu0 %3699
        %3703 = vset.pattern.permute.xlu0 0
        %3704 = vperm.xlu0 %3703, %v3654
        %v3705 = vpop.permute.xlu0 %3704
        %3708 = vset.pattern.permute.xlu0 0
        %3709 = vperm.xlu0 %3708, %v3655
        %v3710 = vpop.permute.xlu0 %3709
        %3713 = vset.pattern.permute.xlu0 0
        %3714 = vperm.xlu0 %3713, %v3656
        %v3715 = vpop.permute.xlu0 %3714
        %3718 = vset.pattern.permute.xlu0 0
        %3719 = vperm.xlu0 %3718, %v3657
        %v3720 = vpop.permute.xlu0 %3719
        %3723 = vset.pattern.permute.xlu0 0
        %3724 = vperm.xlu0 %3723, %v3658
        %v3725 = vpop.permute.xlu0 %3724
        %3728 = vset.pattern.permute.xlu0 0
        %3729 = vperm.xlu0 %3728, %v3659
        %v3730 = vpop.permute.xlu0 %3729
        %3733 = vset.pattern.permute.xlu0 0
        %3734 = vperm.xlu0 %3733, %v3660
        %v3735 = vpop.permute.xlu0 %3734
        %3738 = vset.pattern.permute.xlu0 0
        %3739 = vperm.xlu0 %3738, %v3661
        %v3740 = vpop.permute.xlu0 %3739
        %v3742 = vadd.f32 %v3630, %v3665
        %v3743 = vadd.f32 %v3631, %v3670
        %v3744 = vadd.f32 %v3632, %v3675
        %v3745 = vadd.f32 %v3633, %v3680
        %v3746 = vadd.f32 %v3634, %v3685
        %v3747 = vadd.f32 %v3635, %v3690
        %v3748 = vadd.f32 %v3636, %v3695
        %v3749 = vadd.f32 %v3637, %v3700
        %v3750 = vadd.f32 %v3638, %v3705
        %v3751 = vadd.f32 %v3639, %v3710
        %v3752 = vadd.f32 %v3640, %v3715
        %v3753 = vadd.f32 %v3641, %v3720
        %v3754 = vadd.f32 %v3642, %v3725
        %v3755 = vadd.f32 %v3643, %v3730
        %v3756 = vadd.f32 %v3644, %v3735
        %v3757 = vadd.f32 %v3645, %v3740
        %v3758 = vld [vmem:[%s21] sm:$0xf]
        %v3759 = vld [vmem:[%s21 + $0x4] sm:$0xf]
        %v3760 = vld [vmem:[%s21 + $0x8] sm:$0xf]
        %v3761 = vld [vmem:[%s21 + $0xc] sm:$0xf]
        %v3762 = vld [vmem:[%s21 + $0x10] sm:$0xf]
        %v3763 = vld [vmem:[%s21 + $0x14] sm:$0xf]
        %v3764 = vld [vmem:[%s21 + $0x18] sm:$0xf]
        %v3765 = vld [vmem:[%s21 + $0x1c] sm:$0xf]
        %v3766 = vpack.c.bf16 %v3743, %v3742
        %v3767 = vpack.c.bf16 %v3745, %v3744
        %v3768 = vpack.c.bf16 %v3747, %v3746
        %v3769 = vpack.c.bf16 %v3749, %v3748
        %v3770 = vpack.c.bf16 %v3751, %v3750
        %v3771 = vpack.c.bf16 %v3753, %v3752
        %v3772 = vpack.c.bf16 %v3755, %v3754
        %v3773 = vpack.c.bf16 %v3757, %v3756
        %v3774 = vld [vmem:[%s22] sm:$0xff]
        %v3775 = vld [vmem:[%s22 + $0x8] sm:$0xff]
        %v3776 = vld [vmem:[%s22 + $0x10] sm:$0xff]
        %v3777 = vld [vmem:[%s22 + $0x18] sm:$0xff]
        %v3778 = vld [vmem:[%s22 + $0x20] sm:$0xff]
        %v3779 = vld [vmem:[%s22 + $0x28] sm:$0xff]
        %v3780 = vld [vmem:[%s22 + $0x30] sm:$0xff]
        %v3781 = vld [vmem:[%s22 + $0x38] sm:$0xff]
        %3783 = vset.pattern.permute.xlu0 0
        %3784 = vperm.xlu0 %3783, %v3774
        %v3785 = vpop.permute.xlu0 %3784
        %3788 = vset.pattern.permute.xlu0 0
        %3789 = vperm.xlu0 %3788, %v3775
        %v3790 = vpop.permute.xlu0 %3789
        %3793 = vset.pattern.permute.xlu0 0
        %3794 = vperm.xlu0 %3793, %v3776
        %v3795 = vpop.permute.xlu0 %3794
        %3798 = vset.pattern.permute.xlu0 0
        %3799 = vperm.xlu0 %3798, %v3777
        %v3800 = vpop.permute.xlu0 %3799
        %3803 = vset.pattern.permute.xlu0 0
        %3804 = vperm.xlu0 %3803, %v3778
        %v3805 = vpop.permute.xlu0 %3804
        %3808 = vset.pattern.permute.xlu0 0
        %3809 = vperm.xlu0 %3808, %v3779
        %v3810 = vpop.permute.xlu0 %3809
        %3813 = vset.pattern.permute.xlu0 0
        %3814 = vperm.xlu0 %3813, %v3780
        %v3815 = vpop.permute.xlu0 %3814
        %3818 = vset.pattern.permute.xlu0 0
        %3819 = vperm.xlu0 %3818, %v3781
        %v3820 = vpop.permute.xlu0 %3819
        %v3830 = vunpack.c.l.b16 %v3758
        %v3831 = vunpack.c.l.b16 %v3759
        %v3832 = vunpack.c.l.b16 %v3760
        %v3833 = vunpack.c.l.b16 %v3761
        %v3834 = vunpack.c.l.b16 %v3762
        %v3835 = vunpack.c.l.b16 %v3763
        %v3836 = vunpack.c.l.b16 %v3764
        %v3837 = vunpack.c.l.b16 %v3765
        %v3838 = vpack.c.b16 %v3831, %v3830
        %v3839 = vpack.c.b16 %v3833, %v3832
        %v3840 = vpack.c.b16 %v3835, %v3834
        %v3841 = vpack.c.b16 %v3837, %v3836
        %3846 = vmatprep.subr.bf16.mxu0 0
        %3847 = vmatpush1.bf16.msra.mxu0 %v3766
        %3848 = vmatprep.subr.bf16.mxu0 0
        %3849 = vmatpush1.bf16.msra.mxu0 %v3767
        %3850 = vmatprep.subr.bf16.mxu0 0
        %3851 = vmatpush1.bf16.msra.mxu0 %v3768
        %3852 = vmatprep.subr.bf16.mxu0 0
        %3853 = vmatpush1.bf16.msra.mxu0 %v3769
        %3854 = vmatprep.subr.bf16.mxu0 0
        %3855 = vmatpush1.bf16.msra.mxu0 %v3770
        %3856 = vmatprep.subr.bf16.mxu0 0
        %3857 = vmatpush1.bf16.msra.mxu0 %v3771
        %3858 = vmatprep.subr.bf16.mxu0 0
        %3859 = vmatpush1.bf16.msra.mxu0 %v3772
        %3860 = vmatprep.subr.bf16.mxu0 0
        %3861 = vmatpush1.bf16.msra.mxu0 %v3773
        %3862 = vmatprep.subr.bf16.mxu0 0
        %3863 = vmatpush1.bf16.msra.mxu0 0
        %3864 = vmatprep.subr.bf16.mxu0 0
        %3865 = vmatpush1.bf16.msra.mxu0 0
        %3866 = vmatprep.subr.bf16.mxu0 0
        %3867 = vmatpush1.bf16.msra.mxu0 0
        %3868 = vmatprep.subr.bf16.mxu0 0
        %3869 = vmatpush1.bf16.msra.mxu0 0
        %3870 = vmatprep.subr.bf16.mxu0 0
        %3871 = vmatpush1.bf16.msra.mxu0 0
        %3872 = vmatprep.subr.bf16.mxu0 0
        %3873 = vmatpush1.bf16.msra.mxu0 0
        %3874 = vmatprep.subr.bf16.mxu0 0
        %3875 = vmatpush1.bf16.msra.mxu0 0
        %3876 = vmatprep.subr.bf16.mxu0 0
        %3877 = vmatpush1.bf16.msra.mxu0 0
        %3878 = vmatprep.mubr.bf16.mxu0 0
        %3879 = vmatmul.mubr.bf16.gmra.mrb[0].mxu0 %v3838
        %v3880 = vpop.f32.mrb[0].mxu0
        %v3881 = vadd.f32 %v3785, %v3880
        %v3882 = vpop.f32.mrb[0].mxu0
        %v3883 = vpop.f32.mrb[0].mxu0
        %v3884 = vadd.f32 %v3790, %v3883
        %v3885 = vpop.f32.mrb[0].mxu0
        %3886 = vmatprep.mubr.bf16.mxu0 0
        %3887 = vmatmul.mubr.bf16.gmra.mrb[0].mxu0 %v3839
        %v3888 = vpop.f32.mrb[0].mxu0
        %v3889 = vadd.f32 %v3795, %v3888
        %v3890 = vpop.f32.mrb[0].mxu0
        %v3891 = vpop.f32.mrb[0].mxu0
        %v3892 = vadd.f32 %v3800, %v3891
        %v3893 = vpop.f32.mrb[0].mxu0
        %3894 = vmatprep.mubr.bf16.mxu0 0
        %3895 = vmatmul.mubr.bf16.gmra.mrb[0].mxu0 %v3840
        %v3896 = vpop.f32.mrb[0].mxu0
        %v3897 = vadd.f32 %v3805, %v3896
        %v3898 = vpop.f32.mrb[0].mxu0
        %v3899 = vpop.f32.mrb[0].mxu0
        %v3900 = vadd.f32 %v3810, %v3899
        %v3901 = vpop.f32.mrb[0].mxu0
        %3902 = vmatprep.mubr.bf16.mxu0 0
        %3903 = vmatmul.mubr.bf16.gmra.mrb[0].mxu0 %v3841
        %v3904 = vpop.f32.mrb[0].mxu0
        %v3905 = vadd.f32 %v3815, %v3904
        %v3906 = vpop.f32.mrb[0].mxu0
        %v3907 = vpop.f32.mrb[0].mxu0
        %v3908 = vadd.f32 %v3820, %v3907
        %v3909 = vpop.f32.mrb[0].mxu0
        %3910 = vdwg.mxu0
        %v3911 = vsub.f32 0.0, %v3881
        %v3912 = vsub.f32 0.0, %v3884
        %v3913 = vsub.f32 0.0, %v3889
        %v3914 = vsub.f32 0.0, %v3892
        %v3915 = vsub.f32 0.0, %v3897
        %v3916 = vsub.f32 0.0, %v3900
        %v3917 = vsub.f32 0.0, %v3905
        %v3918 = vsub.f32 0.0, %v3908
        %v3919 = vmul.f32 %v3911, 1.442695
        %v3920 = vpow.pop %v3919
        %v3921 = vmul.f32 %v3912, 1.442695
        %v3922 = vpow.pop %v3921
        %v3923 = vmul.f32 %v3913, 1.442695
        %v3924 = vpow.pop %v3923
        %v3925 = vmul.f32 %v3914, 1.442695
        %v3926 = vpow.pop %v3925
        %v3927 = vmul.f32 %v3915, 1.442695
        %v3928 = vpow.pop %v3927
        %v3929 = vmul.f32 %v3916, 1.442695
        %v3930 = vpow.pop %v3929
        %v3931 = vmul.f32 %v3917, 1.442695
        %v3932 = vpow.pop %v3931
        %v3933 = vmul.f32 %v3918, 1.442695
        %v3934 = vpow.pop %v3933
        %v3935 = vadd.f32 %v3920, 1.0
        %v3936 = vadd.f32 %v3922, 1.0
        %v3937 = vadd.f32 %v3924, 1.0
        %v3938 = vadd.f32 %v3926, 1.0
        %v3939 = vadd.f32 %v3928, 1.0
        %v3940 = vadd.f32 %v3930, 1.0
        %v3941 = vadd.f32 %v3932, 1.0
        %v3942 = vadd.f32 %v3934, 1.0
        %v3943 = vrcp.pop %v3935
        %v3944 = vrcp.pop %v3936
        %v3945 = vrcp.pop %v3937
        %v3946 = vrcp.pop %v3938
        %v3947 = vrcp.pop %v3939
        %v3948 = vrcp.pop %v3940
        %v3949 = vrcp.pop %v3941
        %v3950 = vrcp.pop %v3942
        %v3951 = vmul.f32 %v3209, %v3943
        %v3952 = vmul.f32 %v3210, %v3944
        %v3953 = vmul.f32 %v3211, %v3945
        %v3954 = vmul.f32 %v3212, %v3946
        %v3955 = vmul.f32 %v3213, %v3947
        %v3956 = vmul.f32 %v3214, %v3948
        %v3957 = vmul.f32 %v3215, %v3949
        %v3958 = vmul.f32 %v3216, %v3950
        %v3959 = vadd.f32 %v3951, %v710
        %v3960 = vadd.f32 %v3952, %v711
        %v3961 = vadd.f32 %v3953, %v712
        %v3962 = vadd.f32 %v3954, %v713
        %v3963 = vadd.f32 %v3955, %v714
        %v3964 = vadd.f32 %v3956, %v715
        %v3965 = vadd.f32 %v3957, %v716
        %v3966 = vadd.f32 %v3958, %v717
        %3967 = vst [vmem:[%s703] sm:$0xff] %v3959
        %3968 = vst [vmem:[%s703 + $0x8] sm:$0xff] %v3960
        %3969 = vst [vmem:[%s703 + $0x10] sm:$0xff] %v3961
        %3970 = vst [vmem:[%s703 + $0x18] sm:$0xff] %v3962
        %3971 = vst [vmem:[%s703 + $0x20] sm:$0xff] %v3963
        %3972 = vst [vmem:[%s703 + $0x28] sm:$0xff] %v3964
        %3973 = vst [vmem:[%s703 + $0x30] sm:$0xff] %v3965
        %3974 = vst [vmem:[%s703 + $0x38] sm:$0xff] %v3966
        %s3975 = sand.u32 %s533, 1
        %s3976 = scalar_lea.sflag [#allocation4], %s3975
        %s3977 = sand.u32 %s533, 1
        %s3978 = smul.addr %s3977, 64
        %s3979 = scalar_lea.vmem [#allocation3], %s3978
        // Predicated region
        $region113: #{tpu_custom_call.1} parent=111 // pred_check
          %p3980 = pneg %p543
        $region114: #{tpu_custom_call.1} parent=111 // pred_check_branch
          %3982 = sbr.rel (%p3980) target = $region116
        $region115: #{tpu_custom_call.1} parent=111 // pred_region
          %s3984 = ssub.s32 1024, 1024
          %3985 = vsyncadd %s3976, %s3984
          %s3986 = smul.addr %s37, 8
          %s3987 = smul.addr %s3986, 128
          %s3988 = scalar_lea.hbm %s23, %s3987
          %s3989 = sshll.u32 %s3979, 4
          %s3990 = int_to_ptr.vmem [resolvable:$true] %s3989
          %3995 = dma.vmem_to_hbm [thread:$0]  %s3990, 1024, %s3988, %s3976, 128, 128, 8
        $region116: #{tpu_custom_call.1} parent=111 // pred_fallthru
          _
      $region112: #{tpu_custom_call.1} parent=5 // pred_fallthru
        _
      %p3996 = scmp.le.s32.totalorder 2, %s32
      // Predicated region
      $region117: #{tpu_custom_call.1} parent=5 // pred_check
        %p3997 = pneg %p3996
      $region118: #{tpu_custom_call.1} parent=5 // pred_check_branch
        %3999 = sbr.rel (%p3997) target = $region120
      $region119: #{tpu_custom_call.1} parent=5 // pred_region
        %s4000 = ssub.s32 %s32, 2
        // Predicated region
        $region121: #{tpu_custom_call.1} parent=119 // pred_check
          %p4001 = pneg %p549
        $region122: #{tpu_custom_call.1} parent=119 // pred_check_branch
          %4003 = sbr.rel (%p4001) target = $region124
        $region123: #{tpu_custom_call.1} parent=119 // pred_region
          %s4004 = sand.u32 %s534, 1
          %s4005 = scalar_lea.sflag [#allocation4], %s4004
          %s4006 = sand.u32 %s534, 1
          %s4007 = smul.addr %s4006, 64
          %s4008 = scalar_lea.vmem [#allocation3], %s4007
          %4009 = dma.done %s4005, 1024
        $region124: #{tpu_custom_call.1} parent=119 // pred_fallthru
          _
      $region120: #{tpu_custom_call.1} parent=5 // pred_fallthru
        _
    $region6: #{tpu_custom_call.1} parent=1 // loop_footer
      %s36 = sadd.s32 1, %s32
    $region7: #{tpu_custom_call.1} parent=1 // loop_footer_branch
      %31 = sbr.rel target = $region3
    $region8: #{tpu_custom_call.1} parent=1 // loop_exit
      _
    %4010 = vsyncpa [#allocation4], 1
    %s4011 = scalar_lea.sflag [#allocation4], 1
    %4012 = vsyncpa %s4011, 1

</llo_original>
